<compile_context>
chip_gen: v7x
topology: tpu7x:2x2x1
jax: 0.10.0
libtpu: 0.0.40
codegen_flags: <defaults>
</compile_context>

<pallas_src>
import numpy as np
import jax
import jax.numpy as jnp
from jax import lax
from jax.experimental import pallas as pl
from jax.experimental.pallas import tpu as pltpu

BN_EPS = 1e-5


def _round_up(x, m):
    return ((x + m - 1) // m) * m


# ----------------------------------------------------------------------------
# Pass 1: in-kernel 3x3x3 tap gather + conv matmul + masked batch-stat partials
# ----------------------------------------------------------------------------
def _make_conv_stats_kernel(tap_offsets, tl):
    def kernel(xa_ref, xb_ref, w_ref, mask_ref, y_ref, sum_ref, sq_ref):
        """Grid = (N, n_tiles); axis 0 'parallel', axis 1 'arbitrary'.

        xa_ref  : [1, Cin_p, TL]   activation lanes [i*TL, (i+1)*TL)
        xb_ref  : [1, Cin_p, TL]   activation lanes [(i+1)*TL, (i+2)*TL) (halo)
        w_ref   : [Cout_p, 27*Cin_p]  stacked conv weight (resident)
        mask_ref: [1, TL]          1.0 on valid output lanes, 0.0 on halo/pad
        y_ref   : [1, Cout_p, TL]  conv output tile (pre-BN)
        sum_ref : [1, Cout_p, 128] per-sample running sum(y)   (lane 0 used)
        sq_ref  : [1, Cout_p, 128] per-sample running sum(y*y) (lane 0 used)
        """
        i = pl.program_id(1)

        @pl.when(i == 0)
        def _():
            sum_ref[...] = jnp.zeros_like(sum_ref)
            sq_ref[...] = jnp.zeros_like(sq_ref)

        # Slab covering this tile plus the full 3x3x3 halo (maxoff <= TL).
        slab = jnp.concatenate([xa_ref[0], xb_ref[0]], axis=1)   # [Cin_p, 2*TL]

        # In-VMEM im2col: 27 lane-shifted views stacked along sublanes.
        xcol = jnp.concatenate(
            [slab[:, off:off + tl] for off in tap_offsets], axis=0)  # [27*Cin_p, TL]

        # Conv bias intentionally omitted (cancelled by BN mean subtraction).
        y = jnp.dot(w_ref[...], xcol, preferred_element_type=jnp.float32)
        y_ref[0] = y

        # Mask halo / padding lanes out of the batch statistics.
        ym = y * mask_ref[...]
        sum_ref[...] += jnp.sum(ym, axis=1, keepdims=True)
        sq_ref[...] += jnp.sum(ym * ym, axis=1, keepdims=True)

    return kernel


# ----------------------------------------------------------------------------
# Pass 2: folded BN affine (one FMA) + ReLU, in place
# ----------------------------------------------------------------------------
def bn_relu_kernel(y_ref, scale_ref, shift_ref, o_ref):
    o_ref[...] = jnp.maximum(y_ref[...] * scale_ref[...] + shift_ref[...], 0.0)


# ----------------------------------------------------------------------------
# Forward wrapper
# ----------------------------------------------------------------------------
def conv_block_3d(x, w, b, gamma, beta, *, tl=2048):
    """ConvBlock3D forward. x: [N, Cin, D, H, W] (NCDHW, like PyTorch).

    `b` (conv bias) is accepted for API parity but not applied: training-mode
    BatchNorm removes any per-channel constant exactly (asserted vs reference).
    If this block were run with eval-mode running stats, the bias would have to
    be re-introduced.
    """
    del b
    N, Cin, D, H, W = x.shape
    Cout = w.shape[0]
    Dp, Hp, Wp = D + 2, H + 2, W + 2
    Mext = Dp * Hp * Wp                      # extended (padded-grid) positions
    Cin_p = _round_up(Cin, 8)
    Cout_p = _round_up(Cout, 8)
    K = 27 * Cin_p

    # Flat-lane offset of each (kd, kh, kw) tap on the padded spatial grid.
    tap_offsets = tuple(kd * Hp * Wp + kh * Wp + kw
                        for kd in range(3) for kh in range(3) for kw in range(3))
    max_off = tap_offsets[-1]

    # Lane-tile size: large (HBM roofline), multiple of 128, >= halo extent so
    # (tile i, tile i+1) always covers tile i's taps, and capped so the
    # in-VMEM stacked im2col stays ~<=6 MiB (safe on v7x's 32 MiB scoped VMEM).
    tl_cap = max(128, (6 * 1024 * 1024) // (4 * K))
    TL = _round_up(max(min(tl, Mext, tl_cap), max_off, 128), 128)
    n_tiles = pl.cdiv(Mext, TL)
    Ly = n_tiles * TL                        # conv-output lanes
    Lx = (n_tiles + 1) * TL                  # input gets one extra halo tile

    # --- activation: channels-on-sublanes, flattened padded spatial (cheap) --
    xf = x.astype(jnp.float32)
    xp = jnp.pad(xf, ((0, 0), (0, 0), (1, 1), (1, 1), (1, 1)))     # [N,Cin,Dp,Hp,Wp]
    xpf = jnp.pad(xp.reshape(N, Cin, Mext),
                  ((0, 0), (0, Cin_p - Cin), (0, Lx - Mext)))      # [N,Cin_p,Lx]

    # --- weight: [Cout_p, 27*Cin_p], tap-major / channel-minor ---------------
    wt = jnp.transpose(w.astype(jnp.float32), (2, 3, 4, 0, 1)).reshape(27, Cout, Cin)
    wt = jnp.pad(wt, ((0, 0), (0, Cout_p - Cout), (0, Cin_p - Cin)))
    w2 = jnp.transpose(wt, (1, 0, 2)).reshape(Cout_p, K)           # [Cout_p, K]

    # --- static mask of valid output lanes ------------------------------------
    m_idx = np.arange(Ly)
    valid = ((m_idx // (Hp * Wp) < D)
             & ((m_idx // Wp) % Hp < H)
             & (m_idx % Wp < W))
    mask = jnp.asarray(valid.astype(np.float32)).reshape(1, Ly)

    # --- pass 1: conv + batch-stat partials -----------------------------------
    kernel1 = _make_conv_stats_kernel(tap_offsets, TL)
    y, ysum_p, ysq_p = pl.pallas_call(
        kernel1,
        grid=(N, n_tiles),
        in_specs=[
            pl.BlockSpec((1, Cin_p, TL), lambda n, i: (n, 0, i)),
            pl.BlockSpec((1, Cin_p, TL), lambda n, i: (n, 0, i + 1)),   # halo tile
            pl.BlockSpec((Cout_p, K), lambda n, i: (0, 0)),
            pl.BlockSpec((1, TL), lambda n, i: (0, i)),
        ],
        out_specs=(
            pl.BlockSpec((1, Cout_p, TL), lambda n, i: (n, 0, i)),
            pl.BlockSpec((1, Cout_p, 128), lambda n, i: (n, 0, 0)),
            pl.BlockSpec((1, Cout_p, 128), lambda n, i: (n, 0, 0)),
        ),
        out_shape=(
            jax.ShapeDtypeStruct((N, Cout_p, Ly), jnp.float32),
            jax.ShapeDtypeStruct((N, Cout_p, 128), jnp.float32),
            jax.ShapeDtypeStruct((N, Cout_p, 128), jnp.float32),
        ),
        compiler_params=pltpu.CompilerParams(
            dimension_semantics=("parallel", "arbitrary")),
        cost_estimate=pl.CostEstimate(
            flops=2 * N * n_tiles * Cout_p * K * TL,
            transcendentals=0,
            bytes_accessed=4 * (N * n_tiles * (2 * Cin_p + Cout_p + 1) * TL
                                + Cout_p * K)),
    )(xpf, xpf, w2, mask)

    # --- finalize batch stats, fold gamma/beta into scale/shift (tiny) -------
    count = N * D * H * W
    ysum = jnp.sum(ysum_p[:, :Cout, 0], axis=0)                    # [Cout]
    ysq = jnp.sum(ysq_p[:, :Cout, 0], axis=0)                      # [Cout]
    mean = ysum / count
    # NOTE: single-pass E[y^2]-E[y]^2 in f32; clamped to avoid tiny negatives.
    var = jnp.maximum(ysq / count - mean * mean, 0.0)              # biased var
    inv_std = lax.rsqrt(var + BN_EPS)
    scale_c = gamma.astype(jnp.float32) * inv_std
    shift_c = beta.astype(jnp.float32) - mean * scale_c
    scale_p = jnp.pad(scale_c, (0, Cout_p - Cout))
    shift_p = jnp.pad(shift_c, (0, Cout_p - Cout))
    NC = N * Cout_p
    scale2 = jnp.broadcast_to(scale_p[None, :], (N, Cout_p)).reshape(NC, 1)
    shift2 = jnp.broadcast_to(shift_p[None, :], (N, Cout_p)).reshape(NC, 1)

    # --- pass 2: y*scale + shift, ReLU, in place over the y slab --------------
    y2 = pl.pallas_call(
        bn_relu_kernel,
        grid=(n_tiles,),
        in_specs=[
            pl.BlockSpec((NC, TL), lambda i: (0, i)),
            pl.BlockSpec((NC, 1), lambda i: (0, 0)),
            pl.BlockSpec((NC, 1), lambda i: (0, 0)),
        ],
        out_specs=pl.BlockSpec((NC, TL), lambda i: (0, i)),
        out_shape=jax.ShapeDtypeStruct((NC, Ly), jnp.float32),
        input_output_aliases={0: 0},
        compiler_params=pltpu.CompilerParams(
            dimension_semantics=("arbitrary",)),
    )(y.reshape(NC, Ly), scale2, shift2)

    # Valid-region slice; output is already channel-major (no transpose).
    out = y2.reshape(N, Cout_p, Ly)[:, :Cout, :Mext]
    out = out.reshape(N, Cout, Dp, Hp, Wp)[:, :, :D, :H, :W]
    return out


# ----------------------------------------------------------------------------
# Pure-JAX reference matching PyTorch ConvBlock3D (training-mode BN, with bias)
# ----------------------------------------------------------------------------
def reference_forward(x, w, b, gamma, beta):
    y = lax.conv_general_dilated(
        x.astype(jnp.float32), w.astype(jnp.float32),
        window_strides=(1, 1, 1), padding=[(1, 1)] * 3,
        dimension_numbers=("NCDHW", "OIDHW", "NCDHW"))
    y = y + b.reshape(1, -1, 1, 1, 1)
    mean = jnp.mean(y, axis=(0, 2, 3, 4), keepdims=True)
    var = jnp.mean((y - mean) ** 2, axis=(0, 2, 3, 4), keepdims=True)  # biased
    yn = (y - mean) * lax.rsqrt(var + BN_EPS)
    yn = yn * gamma.reshape(1, -1, 1, 1, 1) + beta.reshape(1, -1, 1, 1, 1)
    return jnp.maximum(yn, 0.0)


if __name__ == "__main__":
    # Small shapes: batch=2, in_channels=4, out_channels=8, spatial=16^3
    # (exercises the multi-tile path and the cross-tile stat accumulation).
    N, Cin, Cout, D, H, W = 2, 4, 8, 16, 16, 16

    key = jax.random.PRNGKey(0)
    kx, kw, kb, kg, kbe = jax.random.split(key, 5)

    x = jax.random.normal(kx, (N, Cin, D, H, W), dtype=jnp.float32)
    fan_in = Cin * 27
    bound = 1.0 / np.sqrt(fan_in)
    w = jax.random.uniform(kw, (Cout, Cin, 3, 3, 3), jnp.float32, -bound, bound)
    b = jax.random.uniform(kb, (Cout,), jnp.float32, -bound, bound)
    gamma = 1.0 + 0.1 * jax.random.normal(kg, (Cout,), jnp.float32)
    beta = 0.1 * jax.random.normal(kbe, (Cout,), jnp.float32)

    fwd = jax.jit(conv_block_3d)
    out = jax.block_until_ready(fwd(x, w, b, gamma, beta))

    ref = jax.block_until_ready(reference_forward(x, w, b, gamma, beta))
    assert out.shape == (N, Cout, D, H, W), out.shape
    np.testing.assert_allclose(np.asarray(out), np.asarray(ref),
                               rtol=1e-4, atol=1e-4)
    print("KERNEL_OK")
</pallas_src>

<mosaic_0001>
module attributes {stable_mosaic.version = 11 : i64} {
  func.func @kernel(%arg0: i32, %arg1: i32, %arg2: memref<1x8x2048xf32, #tpu.memory_space<vmem>>, %arg3: memref<1x8x2048xf32, #tpu.memory_space<vmem>>, %arg4: memref<8x216xf32, #tpu.memory_space<vmem>>, %arg5: memref<1x2048xf32, #tpu.memory_space<vmem>>, %arg6: memref<1x8x2048xf32, #tpu.memory_space<vmem>>, %arg7: memref<1x8x128xf32, #tpu.memory_space<vmem>>, %arg8: memref<1x8x128xf32, #tpu.memory_space<vmem>>) attributes {dimension_semantics = [#tpu.dimension_semantics<parallel>, #tpu.dimension_semantics<arbitrary>], iteration_bounds = array<i64: 2, 3>, scalar_prefetch = 0 : i64, scratch_operands = 0 : i64, tpu.core_type = #tpu.core_type<tc>, window_params = [{transform_indices = @transform_0, window_bounds = array<i64: 1, 8, 2048>}, {transform_indices = @transform_1, window_bounds = array<i64: 1, 8, 2048>}, {pipeline_mode = #tpu.pipeline_mode<synchronous>, transform_indices = @transform_2, window_bounds = array<i64: 8, 216>}, {transform_indices = @transform_3, window_bounds = array<i64: 1, 2048>}, {transform_indices = @transform_4, window_bounds = array<i64: 1, 8, 2048>}, {transform_indices = @transform_5, window_bounds = array<i64: 1, 8, 128>}, {transform_indices = @transform_6, window_bounds = array<i64: 1, 8, 128>}]} {
    %c0_i32 = arith.constant 0 : i32
    %0 = arith.cmpi eq, %arg1, %c0_i32 : i32
    %1 = arith.extui %0 : i1 to i32
    %c0_i32_0 = arith.constant 0 : i32
    %2 = arith.cmpi ne, %1, %c0_i32_0 : i32
    scf.if %2 {
      %cst_27 = arith.constant 0.000000e+00 : f32
      %61 = vector.broadcast %cst_27 : f32 to vector<1x8x128xf32>
      %c0_28 = arith.constant 0 : index
      %c0_29 = arith.constant 0 : index
      %c0_30 = arith.constant 0 : index
      %62 = vector.load %arg7[%c0_28, %c0_29, %c0_30] : memref<1x8x128xf32, #tpu.memory_space<vmem>>, vector<1x8x128xf32>
      tpu.vector_store %arg7[%c0_28, %c0_29, %c0_30], %61 {strides = array<i32>} : memref<1x8x128xf32, #tpu.memory_space<vmem>>, vector<1x8x128xf32>,
      %cst_31 = arith.constant 0.000000e+00 : f32
      %63 = vector.broadcast %cst_31 : f32 to vector<1x8x128xf32>
      %c0_32 = arith.constant 0 : index
      %c0_33 = arith.constant 0 : index
      %c0_34 = arith.constant 0 : index
      %64 = vector.load %arg8[%c0_32, %c0_33, %c0_34] : memref<1x8x128xf32, #tpu.memory_space<vmem>>, vector<1x8x128xf32>
      tpu.vector_store %arg8[%c0_32, %c0_33, %c0_34], %63 {strides = array<i32>} : memref<1x8x128xf32, #tpu.memory_space<vmem>>, vector<1x8x128xf32>,
    } else {
    }
    %c0 = arith.constant 0 : index
    %c0_1 = arith.constant 0 : index
    %c0_2 = arith.constant 0 : index
    %3 = vector.load %arg2[%c0, %c0_1, %c0_2] : memref<1x8x2048xf32, #tpu.memory_space<vmem>>, vector<1x8x2048xf32>
    %4 = vector.shape_cast %3 : vector<1x8x2048xf32> to vector<8x2048xf32>
    %c0_3 = arith.constant 0 : index
    %c0_4 = arith.constant 0 : index
    %c0_5 = arith.constant 0 : index
    %5 = vector.load %arg3[%c0_3, %c0_4, %c0_5] : memref<1x8x2048xf32, #tpu.memory_space<vmem>>, vector<1x8x2048xf32>
    %6 = vector.shape_cast %5 : vector<1x8x2048xf32> to vector<8x2048xf32>
    %7 = tpu.concatenate %4, %6 in 1 : vector<8x2048xf32>, vector<8x2048xf32> -> vector<8x4096xf32>
    %8 = vector.extract_strided_slice %7 {offsets = [0, 0], sizes = [8, 2048], strides = [1, 1]} : vector<8x4096xf32> to vector<8x2048xf32>
    %9 = vector.extract_strided_slice %7 {offsets = [0, 1], sizes = [8, 2048], strides = [1, 1]} : vector<8x4096xf32> to vector<8x2048xf32>
    %10 = vector.extract_strided_slice %7 {offsets = [0, 2], sizes = [8, 2048], strides = [1, 1]} : vector<8x4096xf32> to vector<8x2048xf32>
    %11 = vector.extract_strided_slice %7 {offsets = [0, 18], sizes = [8, 2048], strides = [1, 1]} : vector<8x4096xf32> to vector<8x2048xf32>
    %12 = vector.extract_strided_slice %7 {offsets = [0, 19], sizes = [8, 2048], strides = [1, 1]} : vector<8x4096xf32> to vector<8x2048xf32>
    %13 = vector.extract_strided_slice %7 {offsets = [0, 20], sizes = [8, 2048], strides = [1, 1]} : vector<8x4096xf32> to vector<8x2048xf32>
    %14 = vector.extract_strided_slice %7 {offsets = [0, 36], sizes = [8, 2048], strides = [1, 1]} : vector<8x4096xf32> to vector<8x2048xf32>
    %15 = vector.extract_strided_slice %7 {offsets = [0, 37], sizes = [8, 2048], strides = [1, 1]} : vector<8x4096xf32> to vector<8x2048xf32>
    %16 = vector.extract_strided_slice %7 {offsets = [0, 38], sizes = [8, 2048], strides = [1, 1]} : vector<8x4096xf32> to vector<8x2048xf32>
    %17 = vector.extract_strided_slice %7 {offsets = [0, 324], sizes = [8, 2048], strides = [1, 1]} : vector<8x4096xf32> to vector<8x2048xf32>
    %18 = vector.extract_strided_slice %7 {offsets = [0, 325], sizes = [8, 2048], strides = [1, 1]} : vector<8x4096xf32> to vector<8x2048xf32>
    %19 = vector.extract_strided_slice %7 {offsets = [0, 326], sizes = [8, 2048], strides = [1, 1]} : vector<8x4096xf32> to vector<8x2048xf32>
    %20 = vector.extract_strided_slice %7 {offsets = [0, 342], sizes = [8, 2048], strides = [1, 1]} : vector<8x4096xf32> to vector<8x2048xf32>
    %21 = vector.extract_strided_slice %7 {offsets = [0, 343], sizes = [8, 2048], strides = [1, 1]} : vector<8x4096xf32> to vector<8x2048xf32>
    %22 = vector.extract_strided_slice %7 {offsets = [0, 344], sizes = [8, 2048], strides = [1, 1]} : vector<8x4096xf32> to vector<8x2048xf32>
    %23 = vector.extract_strided_slice %7 {offsets = [0, 360], sizes = [8, 2048], strides = [1, 1]} : vector<8x4096xf32> to vector<8x2048xf32>
    %24 = vector.extract_strided_slice %7 {offsets = [0, 361], sizes = [8, 2048], strides = [1, 1]} : vector<8x4096xf32> to vector<8x2048xf32>
    %25 = vector.extract_strided_slice %7 {offsets = [0, 362], sizes = [8, 2048], strides = [1, 1]} : vector<8x4096xf32> to vector<8x2048xf32>
    %26 = vector.extract_strided_slice %7 {offsets = [0, 648], sizes = [8, 2048], strides = [1, 1]} : vector<8x4096xf32> to vector<8x2048xf32>
    %27 = vector.extract_strided_slice %7 {offsets = [0, 649], sizes = [8, 2048], strides = [1, 1]} : vector<8x4096xf32> to vector<8x2048xf32>
    %28 = vector.extract_strided_slice %7 {offsets = [0, 650], sizes = [8, 2048], strides = [1, 1]} : vector<8x4096xf32> to vector<8x2048xf32>
    %29 = vector.extract_strided_slice %7 {offsets = [0, 666], sizes = [8, 2048], strides = [1, 1]} : vector<8x4096xf32> to vector<8x2048xf32>
    %30 = vector.extract_strided_slice %7 {offsets = [0, 667], sizes = [8, 2048], strides = [1, 1]} : vector<8x4096xf32> to vector<8x2048xf32>
    %31 = vector.extract_strided_slice %7 {offsets = [0, 668], sizes = [8, 2048], strides = [1, 1]} : vector<8x4096xf32> to vector<8x2048xf32>
    %32 = vector.extract_strided_slice %7 {offsets = [0, 684], sizes = [8, 2048], strides = [1, 1]} : vector<8x4096xf32> to vector<8x2048xf32>
    %33 = vector.extract_strided_slice %7 {offsets = [0, 685], sizes = [8, 2048], strides = [1, 1]} : vector<8x4096xf32> to vector<8x2048xf32>
    %34 = vector.extract_strided_slice %7 {offsets = [0, 686], sizes = [8, 2048], strides = [1, 1]} : vector<8x4096xf32> to vector<8x2048xf32>
    %35 = tpu.concatenate %8, %9, %10, %11, %12, %13, %14, %15, %16, %17, %18, %19, %20, %21, %22, %23 in 0 : vector<8x2048xf32>, vector<8x2048xf32>, vector<8x2048xf32>, vector<8x2048xf32>, vector<8x2048xf32>, vector<8x2048xf32>, vector<8x2048xf32>, vector<8x2048xf32>, vector<8x2048xf32>, vector<8x2048xf32>, vector<8x2048xf32>, vector<8x2048xf32>, vector<8x2048xf32>, vector<8x2048xf32>, vector<8x2048xf32>, vector<8x2048xf32> -> vector<128x2048xf32>
    %36 = tpu.concatenate %24, %25, %26, %27, %28, %29, %30, %31, %32, %33, %34 in 0 : vector<8x2048xf32>, vector<8x2048xf32>, vector<8x2048xf32>, vector<8x2048xf32>, vector<8x2048xf32>, vector<8x2048xf32>, vector<8x2048xf32>, vector<8x2048xf32>, vector<8x2048xf32>, vector<8x2048xf32>, vector<8x2048xf32> -> vector<88x2048xf32>
    %37 = tpu.concatenate %35, %36 in 0 : vector<128x2048xf32>, vector<88x2048xf32> -> vector<216x2048xf32>
    %c0_6 = arith.constant 0 : index
    %c0_7 = arith.constant 0 : index
    %38 = vector.load %arg4[%c0_6, %c0_7] : memref<8x216xf32, #tpu.memory_space<vmem>>, vector<8x216xf32>
    %cst = arith.constant dense<0.000000e+00> : vector<8x2048xf32>
    %39 = tpu.matmul %38, %37, %cst {dimension_numbers = #tpu.dot_dimension_numbers<[1], [0], [0], [1], [0, 0, 1, 1], [], []>} : vector<8x216xf32>, vector<216x2048xf32>, vector<8x2048xf32> -> vector<8x2048xf32>
    %c0_8 = arith.constant 0 : index
    %c0_9 = arith.constant 0 : index
    %c0_10 = arith.constant 0 : index
    %40 = vector.load %arg6[%c0_8, %c0_9, %c0_10] : memref<1x8x2048xf32, #tpu.memory_space<vmem>>, vector<1x8x2048xf32>
    %41 = vector.shape_cast %40 : vector<1x8x2048xf32> to vector<8x2048xf32>
    %42 = vector.shape_cast %39 : vector<8x2048xf32> to vector<1x8x2048xf32>
    tpu.vector_store %arg6[%c0_8, %c0_9, %c0_10], %42 {strides = array<i32>} : memref<1x8x2048xf32, #tpu.memory_space<vmem>>, vector<1x8x2048xf32>,
    %c0_11 = arith.constant 0 : index
    %c0_12 = arith.constant 0 : index
    %43 = vector.load %arg5[%c0_11, %c0_12] : memref<1x2048xf32, #tpu.memory_space<vmem>>, vector<1x2048xf32>
    %44 = vector.broadcast %43 : vector<1x2048xf32> to vector<8x2048xf32>
    %45 = arith.mulf %39, %44 : vector<8x2048xf32>
    %c0_13 = arith.constant 0 : index
    %c0_14 = arith.constant 0 : index
    %c0_15 = arith.constant 0 : index
    %46 = vector.load %arg7[%c0_13, %c0_14, %c0_15] : memref<1x8x128xf32, #tpu.memory_space<vmem>>, vector<1x8x128xf32>
    %cst_16 = arith.constant dense<0.000000e+00> : vector<8xf32>
    %47 = vector.multi_reduction <add>, %45, %cst_16 [1] : vector<8x2048xf32> to vector<8xf32>
    %48 = vector.shape_cast %47 : vector<8xf32> to vector<8x1xf32>
    %49 = vector.shape_cast %48 : vector<8x1xf32> to vector<1x8x1xf32>
    %50 = vector.broadcast %49 : vector<1x8x1xf32> to vector<1x8x128xf32>
    %51 = arith.addf %46, %50 : vector<1x8x128xf32>
    %c0_17 = arith.constant 0 : index
    %c0_18 = arith.constant 0 : index
    %c0_19 = arith.constant 0 : index
    %52 = vector.load %arg7[%c0_17, %c0_18, %c0_19] : memref<1x8x128xf32, #tpu.memory_space<vmem>>, vector<1x8x128xf32>
    tpu.vector_store %arg7[%c0_17, %c0_18, %c0_19], %51 {strides = array<i32>} : memref<1x8x128xf32, #tpu.memory_space<vmem>>, vector<1x8x128xf32>,
    %c0_20 = arith.constant 0 : index
    %c0_21 = arith.constant 0 : index
    %c0_22 = arith.constant 0 : index
    %53 = vector.load %arg8[%c0_20, %c0_21, %c0_22] : memref<1x8x128xf32, #tpu.memory_space<vmem>>, vector<1x8x128xf32>
    %54 = arith.mulf %45, %45 : vector<8x2048xf32>
    %cst_23 = arith.constant dense<0.000000e+00> : vector<8xf32>
    %55 = vector.multi_reduction <add>, %54, %cst_23 [1] : vector<8x2048xf32> to vector<8xf32>
    %56 = vector.shape_cast %55 : vector<8xf32> to vector<8x1xf32>
    %57 = vector.shape_cast %56 : vector<8x1xf32> to vector<1x8x1xf32>
    %58 = vector.broadcast %57 : vector<1x8x1xf32> to vector<1x8x128xf32>
    %59 = arith.addf %53, %58 : vector<1x8x128xf32>
    %c0_24 = arith.constant 0 : index
    %c0_25 = arith.constant 0 : index
    %c0_26 = arith.constant 0 : index
    %60 = vector.load %arg8[%c0_24, %c0_25, %c0_26] : memref<1x8x128xf32, #tpu.memory_space<vmem>>, vector<1x8x128xf32>
    tpu.vector_store %arg8[%c0_24, %c0_25, %c0_26], %59 {strides = array<i32>} : memref<1x8x128xf32, #tpu.memory_space<vmem>>, vector<1x8x128xf32>,
    return
  }
  func.func @transform_0(%arg0: i32, %arg1: i32) -> (i32, i32, i32) {
    %c0_i32 = arith.constant 0 : i32
    %c0_i32_0 = arith.constant 0 : i32
    return %arg0, %c0_i32, %arg1 : i32, i32, i32
  }
  func.func @transform_1(%arg0: i32, %arg1: i32) -> (i32, i32, i32) {
    %c1_i32 = arith.constant 1 : i32
    %0 = arith.addi %arg1, %c1_i32 : i32
    %c0_i32 = arith.constant 0 : i32
    %c0_i32_0 = arith.constant 0 : i32
    return %arg0, %c0_i32, %0 : i32, i32, i32
  }
  func.func @transform_2(%arg0: i32, %arg1: i32) -> (i32, i32) {
    %c0_i32 = arith.constant 0 : i32
    %c0_i32_0 = arith.constant 0 : i32
    %c0_i32_1 = arith.constant 0 : i32
    return %c0_i32, %c0_i32_0 : i32, i32
  }
  func.func @transform_3(%arg0: i32, %arg1: i32) -> (i32, i32) {
    %c0_i32 = arith.constant 0 : i32
    %c0_i32_0 = arith.constant 0 : i32
    return %c0_i32, %arg1 : i32, i32
  }
  func.func @transform_4(%arg0: i32, %arg1: i32) -> (i32, i32, i32) {
    %c0_i32 = arith.constant 0 : i32
    %c0_i32_0 = arith.constant 0 : i32
    return %arg0, %c0_i32, %arg1 : i32, i32, i32
  }
  func.func @transform_5(%arg0: i32, %arg1: i32) -> (i32, i32, i32) {
    %c0_i32 = arith.constant 0 : i32
    %c0_i32_0 = arith.constant 0 : i32
    %c0_i32_1 = arith.constant 0 : i32
    return %arg0, %c0_i32, %c0_i32_0 : i32, i32, i32
  }
  func.func @transform_6(%arg0: i32, %arg1: i32) -> (i32, i32, i32) {
    %c0_i32 = arith.constant 0 : i32
    %c0_i32_0 = arith.constant 0 : i32
    %c0_i32_1 = arith.constant 0 : i32
    return %arg0, %c0_i32, %c0_i32_0 : i32, i32, i32
  }
}

module attributes {stable_mosaic.version = 11 : i64} {
  func.func @bn_relu_kernel(%arg0: i32, %arg1: memref<16x2048xf32, #tpu.memory_space<vmem>>, %arg2: memref<16x1xf32, #tpu.memory_space<vmem>>, %arg3: memref<16x1xf32, #tpu.memory_space<vmem>>, %arg4: memref<16x2048xf32, #tpu.memory_space<vmem>>) attributes {dimension_semantics = [#tpu.dimension_semantics<arbitrary>], iteration_bounds = array<i64: 3>, scalar_prefetch = 0 : i64, scratch_operands = 0 : i64, tpu.core_type = #tpu.core_type<tc>, window_params = [{transform_indices = @transform_0, window_bounds = array<i64: 16, 2048>}, {pipeline_mode = #tpu.pipeline_mode<synchronous>, transform_indices = @transform_1, window_bounds = array<i64: 16, 1>}, {pipeline_mode = #tpu.pipeline_mode<synchronous>, transform_indices = @transform_2, window_bounds = array<i64: 16, 1>}, {transform_indices = @transform_3, window_bounds = array<i64: 16, 2048>}]} {
    %c0 = arith.constant 0 : index
    %c0_0 = arith.constant 0 : index
    %0 = vector.load %arg1[%c0, %c0_0] : memref<16x2048xf32, #tpu.memory_space<vmem>>, vector<16x2048xf32>
    %c0_1 = arith.constant 0 : index
    %c0_2 = arith.constant 0 : index
    %1 = vector.load %arg2[%c0_1, %c0_2] : memref<16x1xf32, #tpu.memory_space<vmem>>, vector<16x1xf32>
    %2 = vector.broadcast %1 : vector<16x1xf32> to vector<16x2048xf32>
    %3 = arith.mulf %0, %2 : vector<16x2048xf32>
    %c0_3 = arith.constant 0 : index
    %c0_4 = arith.constant 0 : index
    %4 = vector.load %arg3[%c0_3, %c0_4] : memref<16x1xf32, #tpu.memory_space<vmem>>, vector<16x1xf32>
    %5 = vector.broadcast %4 : vector<16x1xf32> to vector<16x2048xf32>
    %6 = arith.addf %3, %5 : vector<16x2048xf32>
    %cst = arith.constant 0.000000e+00 : f32
    %7 = vector.broadcast %cst : f32 to vector<16x2048xf32>
    %8 = arith.maximumf %6, %7 : vector<16x2048xf32>
    %c0_5 = arith.constant 0 : index
    %c0_6 = arith.constant 0 : index
    %9 = vector.load %arg4[%c0_5, %c0_6] : memref<16x2048xf32, #tpu.memory_space<vmem>>, vector<16x2048xf32>
    tpu.vector_store %arg4[%c0_5, %c0_6], %8 {strides = array<i32>} : memref<16x2048xf32, #tpu.memory_space<vmem>>, vector<16x2048xf32>,
    return
  }
  func.func @transform_0(%arg0: i32) -> (i32, i32) {
    %c0_i32 = arith.constant 0 : i32
    %c0_i32_0 = arith.constant 0 : i32
    return %c0_i32, %arg0 : i32, i32
  }
  func.func @transform_1(%arg0: i32) -> (i32, i32) {
    %c0_i32 = arith.constant 0 : i32
    %c0_i32_0 = arith.constant 0 : i32
    %c0_i32_1 = arith.constant 0 : i32
    return %c0_i32, %c0_i32_0 : i32, i32
  }
  func.func @transform_2(%arg0: i32) -> (i32, i32) {
    %c0_i32 = arith.constant 0 : i32
    %c0_i32_0 = arith.constant 0 : i32
    %c0_i32_1 = arith.constant 0 : i32
    return %c0_i32, %c0_i32_0 : i32, i32
  }
  func.func @transform_3(%arg0: i32) -> (i32, i32) {
    %c0_i32 = arith.constant 0 : i32
    %c0_i32_0 = arith.constant 0 : i32
    return %c0_i32, %arg0 : i32, i32
  }
}

</mosaic_0001>

<llo_original>
// kernel: conv_block_3d.3
$region0: #{conv_block_3d.3}
  #allocation0 [shape = 'u32[]', space=smem, size = 0x4, offset = 0x4, fixed_abs, tag = 'smem constant byte address 0x4 - core index']
  #allocation1 [shape = 'u32[144,128]{1,0:T(1,128)}', space=vmem, size = 0x12000, scoped, tag = 'internal scratch']
  %s0 = inlined_call_operand.vmem [shape: f32[16,6144], index: 0, kind: input, shape index: {}, may-alias: {0,3}]
  %s1 = inlined_call_operand.vmem [shape: f32[16,1], index: 1, kind: input, shape index: {}]
  %s2 = inlined_call_operand.vmem [shape: f32[16,1], index: 2, kind: input, shape index: {}]
  %s3 = inlined_call_operand.vmem [shape: f32[16,6144], index: 3, kind: output, shape index: {}, may-alias: {0,3}]
  %s4 = sld [smem:[#allocation0]]
  $region87: #{conv_block_3d.3} parent=0
    _
  %s6 = ssub.s32 1, %s4
  %s7 = scalar_select 0, %s6, %s4
  $region1: #{conv_block_3d.3} parent=0
    #allocation2 [shape = 'u8[262144]{0}', space=vmem, size = 0x40000, scoped, tag = 'input window, operand 0']
    #allocation3 [shape = 'u8[262144]{0}', space=vmem, size = 0x40000, scoped, tag = 'output window, operand 0']
    loop: start=0, step=1, limit=5
    $region2: #{conv_block_3d.3} parent=1 // loop_pre_header
      _
    $region3: #{conv_block_3d.3} parent=1 // loop_header
      %s9 = sphi 0, %s13
      %p10 = scmp.ge.s32.totalorder %s9, 5
      %s19 = sphi 0, %s21
      %s22 = sphi 0, %s19
      %s23 = sphi 0, %s22
      %s39 = sphi 0, %s23
      %s43 = sphi 0, %s43
      %s45 = sphi 0, %s43
      %s46 = sphi 0, %s45
      %s60 = sphi 0, %s46
      %s64 = sphi 0, %s64
      %s66 = sphi 0, %s64
      %s67 = sphi 0, %s66
      %s81 = sphi 0, %s67
      %s87 = sphi 0, %s89
      %s90 = sphi 0, %s87
      %s91 = sphi 0, %s90
      %s107 = sphi 0, %s91
    $region4: #{conv_block_3d.3} parent=1 // loop_header_branch
      %12 = sbr.rel (%p10) target = $region8
    $region5: #{conv_block_3d.3} parent=1 // loop_body
      %s14 = ssub.s32 %s9, 1
      %s15 = ssub.s32 %s9, 2
      %s16 = sadd.s32 %s9, 1
      %s17 = ssub.s32 %s9, %s16
      %p18 = scmp.eq.s32.totalorder %s17, 0
      %s20 = sadd.s32 %s19, 1
      %s21 = scalar_select %p18, %s19, %s20
      %p24 = pneg %p18
      %p25 = scmp.eq.s32.totalorder %s9, 2
      %p26 = por %p24, %p25
      %p27 = scmp.ne.s32.totalorder %s19, %s22
      %p28 = scmp.eq.s32.totalorder %s9, 0
      %p29 = por %p27, %p28
      %p30 = scmp.ne.s32.totalorder %s19, %s22
      %p31 = scmp.eq.s32.totalorder %s14, 2
      %p32 = por %p30, %p31
      %p33 = scmp.ne.s32.totalorder %s22, %s23
      %p34 = scmp.eq.s32.totalorder %s14, 0
      %p35 = por %p33, %p34
      %p36 = scmp.ne.s32.totalorder %s22, %s23
      %p37 = scmp.eq.s32.totalorder %s15, 2
      %p38 = por %p36, %p37
      %p40 = scmp.ne.s32.totalorder %s23, %s39
      %p41 = scmp.eq.s32.totalorder %s15, 0
      %p42 = por %p40, %p41
      %s44 = sadd.s32 %s43, 1
      %p47 = scmp.eq.s32.totalorder %s9, 2
      %p48 = scmp.ne.s32.totalorder %s43, %s45
      %p49 = scmp.eq.s32.totalorder %s9, 0
      %p50 = por %p48, %p49
      %p51 = scmp.ne.s32.totalorder %s43, %s45
      %p52 = scmp.eq.s32.totalorder %s14, 2
      %p53 = por %p51, %p52
      %p54 = scmp.ne.s32.totalorder %s45, %s46
      %p55 = scmp.eq.s32.totalorder %s14, 0
      %p56 = por %p54, %p55
      %p57 = scmp.ne.s32.totalorder %s45, %s46
      %p58 = scmp.eq.s32.totalorder %s15, 2
      %p59 = por %p57, %p58
      %p61 = scmp.ne.s32.totalorder %s46, %s60
      %p62 = scmp.eq.s32.totalorder %s15, 0
      %p63 = por %p61, %p62
      %s65 = sadd.s32 %s64, 1
      %p68 = scmp.eq.s32.totalorder %s9, 2
      %p69 = scmp.ne.s32.totalorder %s64, %s66
      %p70 = scmp.eq.s32.totalorder %s9, 0
      %p71 = por %p69, %p70
      %p72 = scmp.ne.s32.totalorder %s64, %s66
      %p73 = scmp.eq.s32.totalorder %s14, 2
      %p74 = por %p72, %p73
      %p75 = scmp.ne.s32.totalorder %s66, %s67
      %p76 = scmp.eq.s32.totalorder %s14, 0
      %p77 = por %p75, %p76
      %p78 = scmp.ne.s32.totalorder %s66, %s67
      %p79 = scmp.eq.s32.totalorder %s15, 2
      %p80 = por %p78, %p79
      %p82 = scmp.ne.s32.totalorder %s67, %s81
      %p83 = scmp.eq.s32.totalorder %s15, 0
      %p84 = por %p82, %p83
      %s85 = ssub.s32 %s9, %s16
      %p86 = scmp.eq.s32.totalorder %s85, 0
      %s88 = sadd.s32 %s87, 1
      %s89 = scalar_select %p86, %s87, %s88
      %p92 = pneg %p86
      %p93 = scmp.eq.s32.totalorder %s9, 2
      %p94 = por %p92, %p93
      %p95 = scmp.ne.s32.totalorder %s87, %s90
      %p96 = scmp.eq.s32.totalorder %s9, 0
      %p97 = por %p95, %p96
      %p98 = scmp.ne.s32.totalorder %s87, %s90
      %p99 = scmp.eq.s32.totalorder %s14, 2
      %p100 = por %p98, %p99
      %p101 = scmp.ne.s32.totalorder %s90, %s91
      %p102 = scmp.eq.s32.totalorder %s14, 0
      %p103 = por %p101, %p102
      %p104 = scmp.ne.s32.totalorder %s90, %s91
      %p105 = scmp.eq.s32.totalorder %s15, 2
      %p106 = por %p104, %p105
      %p108 = scmp.ne.s32.totalorder %s91, %s107
      %p109 = scmp.eq.s32.totalorder %s15, 0
      %p110 = por %p108, %p109
      %p111 = scmp.le.s32.totalorder 1, %s9
      %p112 = scmp.lt.s32.totalorder %s9, 4
      %p113 = pnand %p111, %p112
      %p114 = pneg %p113
      // Predicated region
      $region9: #{conv_block_3d.3} parent=5 // pred_check
        _
      $region10: #{conv_block_3d.3} parent=5 // pred_check_branch
        %116 = sbr.rel (%p113) target = $region12
      $region11: #{conv_block_3d.3} parent=5 // pred_region
        %s117 = ssub.s32 %s9, 1
        // Predicated region
        $region13: #{conv_block_3d.3} parent=11 // pred_check
          %p118 = pneg %p56
        $region14: #{conv_block_3d.3} parent=11 // pred_check_branch
          %120 = sbr.rel (%p118) target = $region16
        $region15: #{conv_block_3d.3} parent=11 // pred_region
          _
        $region16: #{conv_block_3d.3} parent=11 // pred_fallthru
          _
        // Predicated region
        $region17: #{conv_block_3d.3} parent=11 // pred_check
          %p121 = pneg %p77
        $region18: #{conv_block_3d.3} parent=11 // pred_check_branch
          %123 = sbr.rel (%p121) target = $region20
        $region19: #{conv_block_3d.3} parent=11 // pred_region
          _
        $region20: #{conv_block_3d.3} parent=11 // pred_fallthru
          _
      $region12: #{conv_block_3d.3} parent=5 // pred_fallthru
        _
      %p124 = scmp.lt.s32.totalorder %s9, 3
      // Predicated region
      $region21: #{conv_block_3d.3} parent=5 // pred_check
        %p125 = pneg %p124
      $region22: #{conv_block_3d.3} parent=5 // pred_check_branch
        %127 = sbr.rel (%p125) target = $region24
      $region23: #{conv_block_3d.3} parent=5 // pred_region
        // Predicated region
        $region25: #{conv_block_3d.3} parent=23 // pred_check
          %p128 = pneg %p29
        $region26: #{conv_block_3d.3} parent=23 // pred_check_branch
          %130 = sbr.rel (%p128) target = $region28
        $region27: #{conv_block_3d.3} parent=23 // pred_region
          %s131 = sand.u32 %s19, 1
          %s132 = sand.u32 %s19, 1
          %s133 = smul.addr %s132, 256
          %s134 = scalar_lea.vmem [#allocation2], %s133
          %s135 = smul.u32 16, %s9
          %s136 = smul.addr %s135, 8
          %s137 = scalar_lea.vmem %s0, %s136
          // Predicated region
          $region29: #{conv_block_3d.3} parent=27 // pred_check
            _
          $region30: #{conv_block_3d.3} parent=27 // pred_check_branch
            %139 = sbr.rel (0) target = $region32
          $region31: #{conv_block_3d.3} parent=27 // pred_region
            // Predicated region
            $region33: #{conv_block_3d.3} parent=31 // pred_check
              _
            $region34: #{conv_block_3d.3} parent=31 // pred_check_branch
              %141 = sbr.rel (0) target = $region36
            $region35: #{conv_block_3d.3} parent=31 // pred_region
              loop: start=0, step=1, limit=1
              $region37: #{conv_block_3d.3} parent=35 // loop_pre_header
                _
              $region38: #{conv_block_3d.3} parent=35 // loop_header
                %s143 = sphi 0, %s147
                %p144 = scmp.ge.s32.totalorder %s143, 1
                %s148 = sphi %s137, %s137
                %s149 = sphi %s134, %s134
              $region39: #{conv_block_3d.3} parent=35 // loop_header_branch
                %146 = sbr.rel (%p144) target = $region43
              $region40: #{conv_block_3d.3} parent=35 // loop_body
                %v150 = vld [vmem:[%s148] sm:$0xff]
                %151 = vst [vmem:[%s149] sm:$0xff] %v150
                %v152 = vld [vmem:[%s148 + $0x8] sm:$0xff]
                %153 = vst [vmem:[%s149 + $0x8] sm:$0xff] %v152
                %v154 = vld [vmem:[%s148 + $0x10] sm:$0xff]
                %155 = vst [vmem:[%s149 + $0x10] sm:$0xff] %v154
                %v156 = vld [vmem:[%s148 + $0x18] sm:$0xff]
                %157 = vst [vmem:[%s149 + $0x18] sm:$0xff] %v156
                %v158 = vld [vmem:[%s148 + $0x20] sm:$0xff]
                %159 = vst [vmem:[%s149 + $0x20] sm:$0xff] %v158
                %v160 = vld [vmem:[%s148 + $0x28] sm:$0xff]
                %161 = vst [vmem:[%s149 + $0x28] sm:$0xff] %v160
                %v162 = vld [vmem:[%s148 + $0x30] sm:$0xff]
                %163 = vst [vmem:[%s149 + $0x30] sm:$0xff] %v162
                %v164 = vld [vmem:[%s148 + $0x38] sm:$0xff]
                %165 = vst [vmem:[%s149 + $0x38] sm:$0xff] %v164
                %v166 = vld [vmem:[%s148 + $0x40] sm:$0xff]
                %167 = vst [vmem:[%s149 + $0x40] sm:$0xff] %v166
                %v168 = vld [vmem:[%s148 + $0x48] sm:$0xff]
                %169 = vst [vmem:[%s149 + $0x48] sm:$0xff] %v168
                %v170 = vld [vmem:[%s148 + $0x50] sm:$0xff]
                %171 = vst [vmem:[%s149 + $0x50] sm:$0xff] %v170
                %v172 = vld [vmem:[%s148 + $0x58] sm:$0xff]
                %173 = vst [vmem:[%s149 + $0x58] sm:$0xff] %v172
                %v174 = vld [vmem:[%s148 + $0x60] sm:$0xff]
                %175 = vst [vmem:[%s149 + $0x60] sm:$0xff] %v174
                %v176 = vld [vmem:[%s148 + $0x68] sm:$0xff]
                %177 = vst [vmem:[%s149 + $0x68] sm:$0xff] %v176
                %v178 = vld [vmem:[%s148 + $0x70] sm:$0xff]
                %179 = vst [vmem:[%s149 + $0x70] sm:$0xff] %v178
                %v180 = vld [vmem:[%s148 + $0x78] sm:$0xff]
                %181 = vst [vmem:[%s149 + $0x78] sm:$0xff] %v180
                %v182 = vld [vmem:[%s148 + $0x180] sm:$0xff]
                %183 = vst [vmem:[%s149 + $0x80] sm:$0xff] %v182
                %v184 = vld [vmem:[%s148 + $0x188] sm:$0xff]
                %185 = vst [vmem:[%s149 + $0x88] sm:$0xff] %v184
                %v186 = vld [vmem:[%s148 + $0x190] sm:$0xff]
                %187 = vst [vmem:[%s149 + $0x90] sm:$0xff] %v186
                %v188 = vld [vmem:[%s148 + $0x198] sm:$0xff]
                %189 = vst [vmem:[%s149 + $0x98] sm:$0xff] %v188
                %v190 = vld [vmem:[%s148 + $0x1a0] sm:$0xff]
                %191 = vst [vmem:[%s149 + $0xa0] sm:$0xff] %v190
                %v192 = vld [vmem:[%s148 + $0x1a8] sm:$0xff]
                %193 = vst [vmem:[%s149 + $0xa8] sm:$0xff] %v192
                %v194 = vld [vmem:[%s148 + $0x1b0] sm:$0xff]
                %195 = vst [vmem:[%s149 + $0xb0] sm:$0xff] %v194
                %v196 = vld [vmem:[%s148 + $0x1b8] sm:$0xff]
                %197 = vst [vmem:[%s149 + $0xb8] sm:$0xff] %v196
                %v198 = vld [vmem:[%s148 + $0x1c0] sm:$0xff]
                %199 = vst [vmem:[%s149 + $0xc0] sm:$0xff] %v198
                %v200 = vld [vmem:[%s148 + $0x1c8] sm:$0xff]
                %201 = vst [vmem:[%s149 + $0xc8] sm:$0xff] %v200
                %v202 = vld [vmem:[%s148 + $0x1d0] sm:$0xff]
                %203 = vst [vmem:[%s149 + $0xd0] sm:$0xff] %v202
                %v204 = vld [vmem:[%s148 + $0x1d8] sm:$0xff]
                %205 = vst [vmem:[%s149 + $0xd8] sm:$0xff] %v204
                %v206 = vld [vmem:[%s148 + $0x1e0] sm:$0xff]
                %207 = vst [vmem:[%s149 + $0xe0] sm:$0xff] %v206
                %v208 = vld [vmem:[%s148 + $0x1e8] sm:$0xff]
                %209 = vst [vmem:[%s149 + $0xe8] sm:$0xff] %v208
                %v210 = vld [vmem:[%s148 + $0x1f0] sm:$0xff]
                %211 = vst [vmem:[%s149 + $0xf0] sm:$0xff] %v210
                %v212 = vld [vmem:[%s148 + $0x1f8] sm:$0xff]
                %213 = vst [vmem:[%s149 + $0xf8] sm:$0xff] %v212
              $region41: #{conv_block_3d.3} parent=35 // loop_footer
                %s147 = sadd.s32 1, %s143
              $region42: #{conv_block_3d.3} parent=35 // loop_footer_branch
                %142 = sbr.rel target = $region38
              $region43: #{conv_block_3d.3} parent=35 // loop_exit
                _
            $region36: #{conv_block_3d.3} parent=31 // pred_fallthru
              _
            // Predicated region
            $region44: #{conv_block_3d.3} parent=31 // pred_check
              _
            $region45: #{conv_block_3d.3} parent=31 // pred_check_branch
              %215 = sbr.rel target = $region47
            $region46: #{conv_block_3d.3} parent=31 // pred_region
              _
            $region47: #{conv_block_3d.3} parent=31 // pred_fallthru
              _
          $region32: #{conv_block_3d.3} parent=27 // pred_fallthru
            _
          %216 = vnop
        $region28: #{conv_block_3d.3} parent=23 // pred_fallthru
          _
      $region24: #{conv_block_3d.3} parent=5 // pred_fallthru
        _
      %p217 = scmp.le.s32.totalorder 1, %s9
      %p218 = scmp.lt.s32.totalorder %s9, 4
      %p219 = pnand %p217, %p218
      %p220 = pneg %p219
      // Predicated region
      $region48: #{conv_block_3d.3} parent=5 // pred_check
        _
      $region49: #{conv_block_3d.3} parent=5 // pred_check_branch
        %222 = sbr.rel (%p219) target = $region51
      $region50: #{conv_block_3d.3} parent=5 // pred_region
        %s223 = ssub.s32 %s9, 1
        %s224 = sand.u32 %s22, 1
        %s225 = sand.u32 %s22, 1
        %s226 = smul.addr %s225, 256
        %s227 = scalar_lea.vmem [#allocation2], %s226
        // Predicated region
        $region52: #{conv_block_3d.3} parent=50 // pred_check
          %p228 = pneg %p35
        $region53: #{conv_block_3d.3} parent=50 // pred_check_branch
          %230 = sbr.rel (%p228) target = $region55
        $region54: #{conv_block_3d.3} parent=50 // pred_region
          _
        $region55: #{conv_block_3d.3} parent=50 // pred_fallthru
          _
        %s231 = sand.u32 %s22, 1
        %s232 = sand.u32 %s22, 1
        %s233 = smul.addr %s232, 256
        %s234 = scalar_lea.vmem [#allocation2], %s233
        %p235 = pneg %p35
        %p236 = pneg %p32
        %p237 = pneg %p56
        %p238 = pneg %p53
        %p239 = pneg %p77
        %p240 = pneg %p74
        %p241 = pneg %p103
        %p242 = pneg %p100
        %s243 = sand.u32 %s90, 1
        %s244 = sand.u32 %s90, 1
        %s245 = smul.addr %s244, 256
        %s246 = scalar_lea.vmem [#allocation3], %s245
        %s247 = smul.u32 16, %s14
        %s248 = smul.u32 16, %s14
        %v249 = vld [vmem:[%s227] sm:$0xff]
        %v250 = vld [vmem:[%s227 + $0x8] sm:$0xff]
        %v251 = vld [vmem:[%s227 + $0x10] sm:$0xff]
        %v252 = vld [vmem:[%s227 + $0x18] sm:$0xff]
        %v253 = vld [vmem:[%s227 + $0x20] sm:$0xff]
        %v254 = vld [vmem:[%s227 + $0x28] sm:$0xff]
        %v255 = vld [vmem:[%s227 + $0x30] sm:$0xff]
        %v256 = vld [vmem:[%s227 + $0x38] sm:$0xff]
        %v257 = vld [vmem:[%s227 + $0x40] sm:$0xff]
        %v258 = vld [vmem:[%s227 + $0x48] sm:$0xff]
        %v259 = vld [vmem:[%s227 + $0x50] sm:$0xff]
        %v260 = vld [vmem:[%s227 + $0x58] sm:$0xff]
        %v261 = vld [vmem:[%s227 + $0x60] sm:$0xff]
        %v262 = vld [vmem:[%s227 + $0x68] sm:$0xff]
        %v263 = vld [vmem:[%s227 + $0x70] sm:$0xff]
        %v264 = vld [vmem:[%s227 + $0x78] sm:$0xff]
        %v265 = vld [vmem:[%s227 + $0x80] sm:$0xff]
        %v266 = vld [vmem:[%s227 + $0x88] sm:$0xff]
        %v267 = vld [vmem:[%s227 + $0x90] sm:$0xff]
        %v268 = vld [vmem:[%s227 + $0x98] sm:$0xff]
        %v269 = vld [vmem:[%s227 + $0xa0] sm:$0xff]
        %v270 = vld [vmem:[%s227 + $0xa8] sm:$0xff]
        %v271 = vld [vmem:[%s227 + $0xb0] sm:$0xff]
        %v272 = vld [vmem:[%s227 + $0xb8] sm:$0xff]
        %v273 = vld [vmem:[%s227 + $0xc0] sm:$0xff]
        %v274 = vld [vmem:[%s227 + $0xc8] sm:$0xff]
        %v275 = vld [vmem:[%s227 + $0xd0] sm:$0xff]
        %v276 = vld [vmem:[%s227 + $0xd8] sm:$0xff]
        %v277 = vld [vmem:[%s227 + $0xe0] sm:$0xff]
        %v278 = vld [vmem:[%s227 + $0xe8] sm:$0xff]
        %v279 = vld [vmem:[%s227 + $0xf0] sm:$0xff]
        %v280 = vld [vmem:[%s227 + $0xf8] sm:$0xff]
        %v281 = vld [vmem:[%s1] sm:$0xff]
        %v282 = vld [vmem:[%s1 + $0x8] sm:$0xff]
        %284 = vset.pattern.permute.xlu0 0
        %285 = vperm.xlu0 %284, %v281
        %v286 = vpop.permute.xlu0 %285
        %289 = vset.pattern.permute.xlu0 0
        %290 = vperm.xlu0 %289, %v282
        %v291 = vpop.permute.xlu0 %290
        %v293 = vmul.f32 %v249, %v286
        %v294 = vmul.f32 %v250, %v286
        %v295 = vmul.f32 %v251, %v286
        %v296 = vmul.f32 %v252, %v286
        %v297 = vmul.f32 %v253, %v286
        %v298 = vmul.f32 %v254, %v286
        %v299 = vmul.f32 %v255, %v286
        %v300 = vmul.f32 %v256, %v286
        %v301 = vmul.f32 %v257, %v286
        %v302 = vmul.f32 %v258, %v286
        %v303 = vmul.f32 %v259, %v286
        %v304 = vmul.f32 %v260, %v286
        %v305 = vmul.f32 %v261, %v286
        %v306 = vmul.f32 %v262, %v286
        %v307 = vmul.f32 %v263, %v286
        %v308 = vmul.f32 %v264, %v286
        %v309 = vmul.f32 %v265, %v291
        %v310 = vmul.f32 %v266, %v291
        %v311 = vmul.f32 %v267, %v291
        %v312 = vmul.f32 %v268, %v291
        %v313 = vmul.f32 %v269, %v291
        %v314 = vmul.f32 %v270, %v291
        %v315 = vmul.f32 %v271, %v291
        %v316 = vmul.f32 %v272, %v291
        %v317 = vmul.f32 %v273, %v291
        %v318 = vmul.f32 %v274, %v291
        %v319 = vmul.f32 %v275, %v291
        %v320 = vmul.f32 %v276, %v291
        %v321 = vmul.f32 %v277, %v291
        %v322 = vmul.f32 %v278, %v291
        %v323 = vmul.f32 %v279, %v291
        %v324 = vmul.f32 %v280, %v291
        %v325 = vld [vmem:[%s2] sm:$0xff]
        %v326 = vld [vmem:[%s2 + $0x8] sm:$0xff]
        %328 = vset.pattern.permute.xlu0 0
        %329 = vperm.xlu0 %328, %v325
        %v330 = vpop.permute.xlu0 %329
        %333 = vset.pattern.permute.xlu0 0
        %334 = vperm.xlu0 %333, %v326
        %v335 = vpop.permute.xlu0 %334
        %v337 = vadd.f32 %v293, %v330
        %v338 = vadd.f32 %v294, %v330
        %v339 = vadd.f32 %v295, %v330
        %v340 = vadd.f32 %v296, %v330
        %v341 = vadd.f32 %v297, %v330
        %v342 = vadd.f32 %v298, %v330
        %v343 = vadd.f32 %v299, %v330
        %v344 = vadd.f32 %v300, %v330
        %v345 = vadd.f32 %v301, %v330
        %v346 = vadd.f32 %v302, %v330
        %v347 = vadd.f32 %v303, %v330
        %v348 = vadd.f32 %v304, %v330
        %v349 = vadd.f32 %v305, %v330
        %v350 = vadd.f32 %v306, %v330
        %v351 = vadd.f32 %v307, %v330
        %v352 = vadd.f32 %v308, %v330
        %v353 = vadd.f32 %v309, %v335
        %v354 = vadd.f32 %v310, %v335
        %v355 = vadd.f32 %v311, %v335
        %v356 = vadd.f32 %v312, %v335
        %v357 = vadd.f32 %v313, %v335
        %v358 = vadd.f32 %v314, %v335
        %v359 = vadd.f32 %v315, %v335
        %v360 = vadd.f32 %v316, %v335
        %v361 = vadd.f32 %v317, %v335
        %v362 = vadd.f32 %v318, %v335
        %v363 = vadd.f32 %v319, %v335
        %v364 = vadd.f32 %v320, %v335
        %v365 = vadd.f32 %v321, %v335
        %v366 = vadd.f32 %v322, %v335
        %v367 = vadd.f32 %v323, %v335
        %v368 = vadd.f32 %v324, %v335
        %v369 = vmax.f32 %v337, 0.0
        %v370 = vmax.f32 %v338, 0.0
        %v371 = vmax.f32 %v339, 0.0
        %v372 = vmax.f32 %v340, 0.0
        %v373 = vmax.f32 %v341, 0.0
        %v374 = vmax.f32 %v342, 0.0
        %v375 = vmax.f32 %v343, 0.0
        %v376 = vmax.f32 %v344, 0.0
        %v377 = vmax.f32 %v345, 0.0
        %v378 = vmax.f32 %v346, 0.0
        %v379 = vmax.f32 %v347, 0.0
        %v380 = vmax.f32 %v348, 0.0
        %v381 = vmax.f32 %v349, 0.0
        %v382 = vmax.f32 %v350, 0.0
        %v383 = vmax.f32 %v351, 0.0
        %v384 = vmax.f32 %v352, 0.0
        %v385 = vmax.f32 %v353, 0.0
        %v386 = vmax.f32 %v354, 0.0
        %v387 = vmax.f32 %v355, 0.0
        %v388 = vmax.f32 %v356, 0.0
        %v389 = vmax.f32 %v357, 0.0
        %v390 = vmax.f32 %v358, 0.0
        %v391 = vmax.f32 %v359, 0.0
        %v392 = vmax.f32 %v360, 0.0
        %v393 = vmax.f32 %v361, 0.0
        %v394 = vmax.f32 %v362, 0.0
        %v395 = vmax.f32 %v363, 0.0
        %v396 = vmax.f32 %v364, 0.0
        %v397 = vmax.f32 %v365, 0.0
        %v398 = vmax.f32 %v366, 0.0
        %v399 = vmax.f32 %v367, 0.0
        %v400 = vmax.f32 %v368, 0.0
        %401 = vst [vmem:[%s246] sm:$0xff] %v369
        %402 = vst [vmem:[%s246 + $0x8] sm:$0xff] %v370
        %403 = vst [vmem:[%s246 + $0x10] sm:$0xff] %v371
        %404 = vst [vmem:[%s246 + $0x18] sm:$0xff] %v372
        %405 = vst [vmem:[%s246 + $0x20] sm:$0xff] %v373
        %406 = vst [vmem:[%s246 + $0x28] sm:$0xff] %v374
        %407 = vst [vmem:[%s246 + $0x30] sm:$0xff] %v375
        %408 = vst [vmem:[%s246 + $0x38] sm:$0xff] %v376
        %409 = vst [vmem:[%s246 + $0x40] sm:$0xff] %v377
        %410 = vst [vmem:[%s246 + $0x48] sm:$0xff] %v378
        %411 = vst [vmem:[%s246 + $0x50] sm:$0xff] %v379
        %412 = vst [vmem:[%s246 + $0x58] sm:$0xff] %v380
        %413 = vst [vmem:[%s246 + $0x60] sm:$0xff] %v381
        %414 = vst [vmem:[%s246 + $0x68] sm:$0xff] %v382
        %415 = vst [vmem:[%s246 + $0x70] sm:$0xff] %v383
        %416 = vst [vmem:[%s246 + $0x78] sm:$0xff] %v384
        %417 = vst [vmem:[%s246 + $0x80] sm:$0xff] %v385
        %418 = vst [vmem:[%s246 + $0x88] sm:$0xff] %v386
        %419 = vst [vmem:[%s246 + $0x90] sm:$0xff] %v387
        %420 = vst [vmem:[%s246 + $0x98] sm:$0xff] %v388
        %421 = vst [vmem:[%s246 + $0xa0] sm:$0xff] %v389
        %422 = vst [vmem:[%s246 + $0xa8] sm:$0xff] %v390
        %423 = vst [vmem:[%s246 + $0xb0] sm:$0xff] %v391
        %424 = vst [vmem:[%s246 + $0xb8] sm:$0xff] %v392
        %425 = vst [vmem:[%s246 + $0xc0] sm:$0xff] %v393
        %426 = vst [vmem:[%s246 + $0xc8] sm:$0xff] %v394
        %427 = vst [vmem:[%s246 + $0xd0] sm:$0xff] %v395
        %428 = vst [vmem:[%s246 + $0xd8] sm:$0xff] %v396
        %429 = vst [vmem:[%s246 + $0xe0] sm:$0xff] %v397
        %430 = vst [vmem:[%s246 + $0xe8] sm:$0xff] %v398
        %431 = vst [vmem:[%s246 + $0xf0] sm:$0xff] %v399
        %432 = vst [vmem:[%s246 + $0xf8] sm:$0xff] %v400
        %s433 = sand.u32 %s90, 1
        %s434 = sand.u32 %s90, 1
        %s435 = smul.addr %s434, 256
        %s436 = scalar_lea.vmem [#allocation3], %s435
        // Predicated region
        $region56: #{conv_block_3d.3} parent=50 // pred_check
          %p437 = pneg %p100
        $region57: #{conv_block_3d.3} parent=50 // pred_check_branch
          %439 = sbr.rel (%p437) target = $region59
        $region58: #{conv_block_3d.3} parent=50 // pred_region
          %s440 = smul.u32 16, %s14
          %s441 = smul.addr %s440, 8
          %s442 = scalar_lea.vmem %s3, %s441
          // Predicated region
          $region60: #{conv_block_3d.3} parent=58 // pred_check
            _
          $region61: #{conv_block_3d.3} parent=58 // pred_check_branch
            %444 = sbr.rel (0) target = $region63
          $region62: #{conv_block_3d.3} parent=58 // pred_region
            // Predicated region
            $region64: #{conv_block_3d.3} parent=62 // pred_check
              _
            $region65: #{conv_block_3d.3} parent=62 // pred_check_branch
              %446 = sbr.rel (0) target = $region67
            $region66: #{conv_block_3d.3} parent=62 // pred_region
              loop: start=0, step=1, limit=1
              $region68: #{conv_block_3d.3} parent=66 // loop_pre_header
                _
              $region69: #{conv_block_3d.3} parent=66 // loop_header
                %s448 = sphi 0, %s452
                %p449 = scmp.ge.s32.totalorder %s448, 1
                %s453 = sphi %s436, %s436
                %s454 = sphi %s442, %s442
              $region70: #{conv_block_3d.3} parent=66 // loop_header_branch
                %451 = sbr.rel (%p449) target = $region74
              $region71: #{conv_block_3d.3} parent=66 // loop_body
                %v455 = vld [vmem:[%s453] sm:$0xff]
                %456 = vst [vmem:[%s454] sm:$0xff] %v455
                %v457 = vld [vmem:[%s453 + $0x8] sm:$0xff]
                %458 = vst [vmem:[%s454 + $0x8] sm:$0xff] %v457
                %v459 = vld [vmem:[%s453 + $0x10] sm:$0xff]
                %460 = vst [vmem:[%s454 + $0x10] sm:$0xff] %v459
                %v461 = vld [vmem:[%s453 + $0x18] sm:$0xff]
                %462 = vst [vmem:[%s454 + $0x18] sm:$0xff] %v461
                %v463 = vld [vmem:[%s453 + $0x20] sm:$0xff]
                %464 = vst [vmem:[%s454 + $0x20] sm:$0xff] %v463
                %v465 = vld [vmem:[%s453 + $0x28] sm:$0xff]
                %466 = vst [vmem:[%s454 + $0x28] sm:$0xff] %v465
                %v467 = vld [vmem:[%s453 + $0x30] sm:$0xff]
                %468 = vst [vmem:[%s454 + $0x30] sm:$0xff] %v467
                %v469 = vld [vmem:[%s453 + $0x38] sm:$0xff]
                %470 = vst [vmem:[%s454 + $0x38] sm:$0xff] %v469
                %v471 = vld [vmem:[%s453 + $0x40] sm:$0xff]
                %472 = vst [vmem:[%s454 + $0x40] sm:$0xff] %v471
                %v473 = vld [vmem:[%s453 + $0x48] sm:$0xff]
                %474 = vst [vmem:[%s454 + $0x48] sm:$0xff] %v473
                %v475 = vld [vmem:[%s453 + $0x50] sm:$0xff]
                %476 = vst [vmem:[%s454 + $0x50] sm:$0xff] %v475
                %v477 = vld [vmem:[%s453 + $0x58] sm:$0xff]
                %478 = vst [vmem:[%s454 + $0x58] sm:$0xff] %v477
                %v479 = vld [vmem:[%s453 + $0x60] sm:$0xff]
                %480 = vst [vmem:[%s454 + $0x60] sm:$0xff] %v479
                %v481 = vld [vmem:[%s453 + $0x68] sm:$0xff]
                %482 = vst [vmem:[%s454 + $0x68] sm:$0xff] %v481
                %v483 = vld [vmem:[%s453 + $0x70] sm:$0xff]
                %484 = vst [vmem:[%s454 + $0x70] sm:$0xff] %v483
                %v485 = vld [vmem:[%s453 + $0x78] sm:$0xff]
                %486 = vst [vmem:[%s454 + $0x78] sm:$0xff] %v485
                %v487 = vld [vmem:[%s453 + $0x80] sm:$0xff]
                %488 = vst [vmem:[%s454 + $0x180] sm:$0xff] %v487
                %v489 = vld [vmem:[%s453 + $0x88] sm:$0xff]
                %490 = vst [vmem:[%s454 + $0x188] sm:$0xff] %v489
                %v491 = vld [vmem:[%s453 + $0x90] sm:$0xff]
                %492 = vst [vmem:[%s454 + $0x190] sm:$0xff] %v491
                %v493 = vld [vmem:[%s453 + $0x98] sm:$0xff]
                %494 = vst [vmem:[%s454 + $0x198] sm:$0xff] %v493
                %v495 = vld [vmem:[%s453 + $0xa0] sm:$0xff]
                %496 = vst [vmem:[%s454 + $0x1a0] sm:$0xff] %v495
                %v497 = vld [vmem:[%s453 + $0xa8] sm:$0xff]
                %498 = vst [vmem:[%s454 + $0x1a8] sm:$0xff] %v497
                %v499 = vld [vmem:[%s453 + $0xb0] sm:$0xff]
                %500 = vst [vmem:[%s454 + $0x1b0] sm:$0xff] %v499
                %v501 = vld [vmem:[%s453 + $0xb8] sm:$0xff]
                %502 = vst [vmem:[%s454 + $0x1b8] sm:$0xff] %v501
                %v503 = vld [vmem:[%s453 + $0xc0] sm:$0xff]
                %504 = vst [vmem:[%s454 + $0x1c0] sm:$0xff] %v503
                %v505 = vld [vmem:[%s453 + $0xc8] sm:$0xff]
                %506 = vst [vmem:[%s454 + $0x1c8] sm:$0xff] %v505
                %v507 = vld [vmem:[%s453 + $0xd0] sm:$0xff]
                %508 = vst [vmem:[%s454 + $0x1d0] sm:$0xff] %v507
                %v509 = vld [vmem:[%s453 + $0xd8] sm:$0xff]
                %510 = vst [vmem:[%s454 + $0x1d8] sm:$0xff] %v509
                %v511 = vld [vmem:[%s453 + $0xe0] sm:$0xff]
                %512 = vst [vmem:[%s454 + $0x1e0] sm:$0xff] %v511
                %v513 = vld [vmem:[%s453 + $0xe8] sm:$0xff]
                %514 = vst [vmem:[%s454 + $0x1e8] sm:$0xff] %v513
                %v515 = vld [vmem:[%s453 + $0xf0] sm:$0xff]
                %516 = vst [vmem:[%s454 + $0x1f0] sm:$0xff] %v515
                %v517 = vld [vmem:[%s453 + $0xf8] sm:$0xff]
                %518 = vst [vmem:[%s454 + $0x1f8] sm:$0xff] %v517
              $region72: #{conv_block_3d.3} parent=66 // loop_footer
                %s452 = sadd.s32 1, %s448
              $region73: #{conv_block_3d.3} parent=66 // loop_footer_branch
                %447 = sbr.rel target = $region69
              $region74: #{conv_block_3d.3} parent=66 // loop_exit
                _
            $region67: #{conv_block_3d.3} parent=62 // pred_fallthru
              _
            // Predicated region
            $region75: #{conv_block_3d.3} parent=62 // pred_check
              _
            $region76: #{conv_block_3d.3} parent=62 // pred_check_branch
              %520 = sbr.rel target = $region78
            $region77: #{conv_block_3d.3} parent=62 // pred_region
              _
            $region78: #{conv_block_3d.3} parent=62 // pred_fallthru
              _
          $region63: #{conv_block_3d.3} parent=58 // pred_fallthru
            _
          %521 = vnop
        $region59: #{conv_block_3d.3} parent=50 // pred_fallthru
          _
      $region51: #{conv_block_3d.3} parent=5 // pred_fallthru
        _
      %p522 = scmp.le.s32.totalorder 2, %s9
      // Predicated region
      $region79: #{conv_block_3d.3} parent=5 // pred_check
        %p523 = pneg %p522
      $region80: #{conv_block_3d.3} parent=5 // pred_check_branch
        %525 = sbr.rel (%p523) target = $region82
      $region81: #{conv_block_3d.3} parent=5 // pred_region
        %s526 = ssub.s32 %s9, 2
        // Predicated region
        $region83: #{conv_block_3d.3} parent=81 // pred_check
          %p527 = pneg %p106
        $region84: #{conv_block_3d.3} parent=81 // pred_check_branch
          %529 = sbr.rel (%p527) target = $region86
        $region85: #{conv_block_3d.3} parent=81 // pred_region
          %s530 = sand.u32 %s91, 1
          %s531 = sand.u32 %s91, 1
          %s532 = smul.addr %s531, 256
          %s533 = scalar_lea.vmem [#allocation3], %s532
        $region86: #{conv_block_3d.3} parent=81 // pred_fallthru
          _
      $region82: #{conv_block_3d.3} parent=5 // pred_fallthru
        _
    $region6: #{conv_block_3d.3} parent=1 // loop_footer
      %s13 = sadd.s32 1, %s9
    $region7: #{conv_block_3d.3} parent=1 // loop_footer_branch
      %8 = sbr.rel target = $region3
    $region8: #{conv_block_3d.3} parent=1 // loop_exit
      _

// kernel: conv_block_3d.2
$region0: #{conv_block_3d.2}
  #allocation0 [shape = 'u32[]', space=smem, size = 0x4, offset = 0x4, fixed_abs, tag = 'smem constant byte address 0x4 - core index']
  #allocation1 [shape = 'u32[144,128]{1,0:T(1,128)}', space=vmem, size = 0x12000, scoped, tag = 'internal scratch']
  %s0 = inlined_call_operand.vmem [shape: f32[2,8,8192], index: 0, kind: input, shape index: {}, may-alias: {0,1}]
  %s1 = inlined_call_operand.vmem [shape: f32[2,8,8192], index: 1, kind: input, shape index: {}, may-alias: {0,1}]
  %s2 = inlined_call_operand.vmem [shape: f32[8,216], index: 2, kind: input, shape index: {}]
  %s3 = inlined_call_operand.vmem [shape: f32[1,6144], index: 3, kind: input, shape index: {}]
  %s4 = inlined_call_operand.vmem [shape: f32[2,8,6144], index: 4, kind: output, shape index: {0}]
  %s5 = inlined_call_operand.vmem [shape: f32[2,8,128], index: 5, kind: output, shape index: {1}]
  %s6 = inlined_call_operand.vmem [shape: f32[2,8,128], index: 6, kind: output, shape index: {2}]
  %7 = xla_tuple %s4, %s5, %s6
  %s8 = sld [smem:[#allocation0]]
  $region69: #{conv_block_3d.2} parent=0
    _
  %s10 = ssub.s32 1, %s8
  %s11 = scalar_select 0, %s10, %s8
  loop: start=0, step=1, limit=8
  $region2: #{conv_block_3d.2} parent=0 // loop_pre_header
    _
  $region3: #{conv_block_3d.2} parent=0 // loop_header
    %s13 = sphi 0, %s17
    %p14 = scmp.ge.s32.totalorder %s13, 8
    %s20 = sphi 0, %s32
    %s21 = sphi 0, %s28
    %s22 = sphi 0, %s20
    %s23 = sphi 0, %s21
    %s24 = sphi 0, %s22
    %s25 = sphi 0, %s23
    %s37 = sphi 0, %s39
    %s40 = sphi 0, %s37
    %s41 = sphi 0, %s40
    %s57 = sphi 0, %s41
    %s67 = sphi 0, %s69
    %s70 = sphi 0, %s67
    %s71 = sphi 0, %s70
    %s87 = sphi 0, %s71
    %s91 = sphi 0, %s91
    %s93 = sphi 0, %s91
    %s94 = sphi 0, %s93
    %s108 = sphi 0, %s94
    %s114 = sphi 0, %s116
    %s117 = sphi 0, %s114
    %s118 = sphi 0, %s117
    %s134 = sphi 0, %s118
    %s142 = sphi 0, %s144
    %s145 = sphi 0, %s142
    %s146 = sphi 0, %s145
    %s162 = sphi 0, %s146
    %s168 = sphi 0, %s170
    %s171 = sphi 0, %s168
    %s172 = sphi 0, %s171
    %s188 = sphi 0, %s172
    %s194 = sphi 0, %s196
    %s197 = sphi 0, %s194
    %s198 = sphi 0, %s197
    %s214 = sphi 0, %s198
  $region4: #{conv_block_3d.2} parent=0 // loop_header_branch
    %16 = sbr.rel (%p14) target = $region8
  $region5: #{conv_block_3d.2} parent=0 // loop_body
    %s18 = ssub.s32 %s13, 1
    %s19 = ssub.s32 %s13, 2
    %s26 = sadd.s32 1, %s21
    %p27 = scmp.ge.s32.totalorder %s26, 3
    %s28 = scalar_select %p27, 0, %s26
    %s29 = sadd.s32 1, %s20
    %s30 = scalar_select %p27, %s29, %s20
    %p31 = scmp.ge.s32.totalorder %s30, 2
    %s32 = scalar_select %p31, 0, %s30
    %s33 = ssub.s32 %s20, %s32
    %s34 = ssub.s32 %s21, %s28
    %s35 = sor.u32 %s33, %s34
    %p36 = scmp.eq.s32.totalorder %s35, 0
    %s38 = sadd.s32 %s37, 1
    %s39 = scalar_select %p36, %s37, %s38
    %p42 = pneg %p36
    %p43 = scmp.eq.s32.totalorder %s13, 5
    %p44 = por %p42, %p43
    %p45 = scmp.ne.s32.totalorder %s37, %s40
    %p46 = scmp.eq.s32.totalorder %s13, 0
    %p47 = por %p45, %p46
    %p48 = scmp.ne.s32.totalorder %s37, %s40
    %p49 = scmp.eq.s32.totalorder %s18, 5
    %p50 = por %p48, %p49
    %p51 = scmp.ne.s32.totalorder %s40, %s41
    %p52 = scmp.eq.s32.totalorder %s18, 0
    %p53 = por %p51, %p52
    %p54 = scmp.ne.s32.totalorder %s40, %s41
    %p55 = scmp.eq.s32.totalorder %s19, 5
    %p56 = por %p54, %p55
    %p58 = scmp.ne.s32.totalorder %s41, %s57
    %p59 = scmp.eq.s32.totalorder %s19, 0
    %p60 = por %p58, %p59
    %s61 = sadd.s32 %s21, 1
    %s62 = sadd.s32 %s28, 1
    %s63 = ssub.s32 %s20, %s32
    %s64 = ssub.s32 %s61, %s62
    %s65 = sor.u32 %s63, %s64
    %p66 = scmp.eq.s32.totalorder %s65, 0
    %s68 = sadd.s32 %s67, 1
    %s69 = scalar_select %p66, %s67, %s68
    %p72 = pneg %p66
    %p73 = scmp.eq.s32.totalorder %s13, 5
    %p74 = por %p72, %p73
    %p75 = scmp.ne.s32.totalorder %s67, %s70
    %p76 = scmp.eq.s32.totalorder %s13, 0
    %p77 = por %p75, %p76
    %p78 = scmp.ne.s32.totalorder %s67, %s70
    %p79 = scmp.eq.s32.totalorder %s18, 5
    %p80 = por %p78, %p79
    %p81 = scmp.ne.s32.totalorder %s70, %s71
    %p82 = scmp.eq.s32.totalorder %s18, 0
    %p83 = por %p81, %p82
    %p84 = scmp.ne.s32.totalorder %s70, %s71
    %p85 = scmp.eq.s32.totalorder %s19, 5
    %p86 = por %p84, %p85
    %p88 = scmp.ne.s32.totalorder %s71, %s87
    %p89 = scmp.eq.s32.totalorder %s19, 0
    %p90 = por %p88, %p89
    %s92 = sadd.s32 %s91, 1
    %p95 = scmp.eq.s32.totalorder %s13, 5
    %p96 = scmp.ne.s32.totalorder %s91, %s93
    %p97 = scmp.eq.s32.totalorder %s13, 0
    %p98 = por %p96, %p97
    %p99 = scmp.ne.s32.totalorder %s91, %s93
    %p100 = scmp.eq.s32.totalorder %s18, 5
    %p101 = por %p99, %p100
    %p102 = scmp.ne.s32.totalorder %s93, %s94
    %p103 = scmp.eq.s32.totalorder %s18, 0
    %p104 = por %p102, %p103
    %p105 = scmp.ne.s32.totalorder %s93, %s94
    %p106 = scmp.eq.s32.totalorder %s19, 5
    %p107 = por %p105, %p106
    %p109 = scmp.ne.s32.totalorder %s94, %s108
    %p110 = scmp.eq.s32.totalorder %s19, 0
    %p111 = por %p109, %p110
    %s112 = ssub.s32 %s21, %s28
    %p113 = scmp.eq.s32.totalorder %s112, 0
    %s115 = sadd.s32 %s114, 1
    %s116 = scalar_select %p113, %s114, %s115
    %p119 = pneg %p113
    %p120 = scmp.eq.s32.totalorder %s13, 5
    %p121 = por %p119, %p120
    %p122 = scmp.ne.s32.totalorder %s114, %s117
    %p123 = scmp.eq.s32.totalorder %s13, 0
    %p124 = por %p122, %p123
    %p125 = scmp.ne.s32.totalorder %s114, %s117
    %p126 = scmp.eq.s32.totalorder %s18, 5
    %p127 = por %p125, %p126
    %p128 = scmp.ne.s32.totalorder %s117, %s118
    %p129 = scmp.eq.s32.totalorder %s18, 0
    %p130 = por %p128, %p129
    %p131 = scmp.ne.s32.totalorder %s117, %s118
    %p132 = scmp.eq.s32.totalorder %s19, 5
    %p133 = por %p131, %p132
    %p135 = scmp.ne.s32.totalorder %s118, %s134
    %p136 = scmp.eq.s32.totalorder %s19, 0
    %p137 = por %p135, %p136
    %s138 = ssub.s32 %s20, %s32
    %s139 = ssub.s32 %s21, %s28
    %s140 = sor.u32 %s138, %s139
    %p141 = scmp.eq.s32.totalorder %s140, 0
    %s143 = sadd.s32 %s142, 1
    %s144 = scalar_select %p141, %s142, %s143
    %p147 = pneg %p141
    %p148 = scmp.eq.s32.totalorder %s13, 5
    %p149 = por %p147, %p148
    %p150 = scmp.ne.s32.totalorder %s142, %s145
    %p151 = scmp.eq.s32.totalorder %s13, 0
    %p152 = por %p150, %p151
    %p153 = scmp.ne.s32.totalorder %s142, %s145
    %p154 = scmp.eq.s32.totalorder %s18, 5
    %p155 = por %p153, %p154
    %p156 = scmp.ne.s32.totalorder %s145, %s146
    %p157 = scmp.eq.s32.totalorder %s18, 0
    %p158 = por %p156, %p157
    %p159 = scmp.ne.s32.totalorder %s145, %s146
    %p160 = scmp.eq.s32.totalorder %s19, 5
    %p161 = por %p159, %p160
    %p163 = scmp.ne.s32.totalorder %s146, %s162
    %p164 = scmp.eq.s32.totalorder %s19, 0
    %p165 = por %p163, %p164
    %s166 = ssub.s32 %s20, %s32
    %p167 = scmp.eq.s32.totalorder %s166, 0
    %s169 = sadd.s32 %s168, 1
    %s170 = scalar_select %p167, %s168, %s169
    %p173 = pneg %p167
    %p174 = scmp.eq.s32.totalorder %s13, 5
    %p175 = por %p173, %p174
    %p176 = scmp.ne.s32.totalorder %s168, %s171
    %p177 = scmp.eq.s32.totalorder %s13, 0
    %p178 = por %p176, %p177
    %p179 = scmp.ne.s32.totalorder %s168, %s171
    %p180 = scmp.eq.s32.totalorder %s18, 5
    %p181 = por %p179, %p180
    %p182 = scmp.ne.s32.totalorder %s171, %s172
    %p183 = scmp.eq.s32.totalorder %s18, 0
    %p184 = por %p182, %p183
    %p185 = scmp.ne.s32.totalorder %s171, %s172
    %p186 = scmp.eq.s32.totalorder %s19, 5
    %p187 = por %p185, %p186
    %p189 = scmp.ne.s32.totalorder %s172, %s188
    %p190 = scmp.eq.s32.totalorder %s19, 0
    %p191 = por %p189, %p190
    %s192 = ssub.s32 %s20, %s32
    %p193 = scmp.eq.s32.totalorder %s192, 0
    %s195 = sadd.s32 %s194, 1
    %s196 = scalar_select %p193, %s194, %s195
    %p199 = pneg %p193
    %p200 = scmp.eq.s32.totalorder %s13, 5
    %p201 = por %p199, %p200
    %p202 = scmp.ne.s32.totalorder %s194, %s197
    %p203 = scmp.eq.s32.totalorder %s13, 0
    %p204 = por %p202, %p203
    %p205 = scmp.ne.s32.totalorder %s194, %s197
    %p206 = scmp.eq.s32.totalorder %s18, 5
    %p207 = por %p205, %p206
    %p208 = scmp.ne.s32.totalorder %s197, %s198
    %p209 = scmp.eq.s32.totalorder %s18, 0
    %p210 = por %p208, %p209
    %p211 = scmp.ne.s32.totalorder %s197, %s198
    %p212 = scmp.eq.s32.totalorder %s19, 5
    %p213 = por %p211, %p212
    %p215 = scmp.ne.s32.totalorder %s198, %s214
    %p216 = scmp.eq.s32.totalorder %s19, 0
    %p217 = por %p215, %p216
    %p218 = scmp.le.s32.totalorder 1, %s13
    %p219 = scmp.lt.s32.totalorder %s13, 7
    %p220 = pnand %p218, %p219
    %p221 = pneg %p220
    // Predicated region
    $region9: #{conv_block_3d.2} parent=5 // pred_check
      _
    $region10: #{conv_block_3d.2} parent=5 // pred_check_branch
      %223 = sbr.rel (%p220) target = $region12
    $region11: #{conv_block_3d.2} parent=5 // pred_region
      %s224 = ssub.s32 %s13, 1
      // Predicated region
      $region13: #{conv_block_3d.2} parent=11 // pred_check
        %p225 = pneg %p104
      $region14: #{conv_block_3d.2} parent=11 // pred_check_branch
        %227 = sbr.rel (%p225) target = $region16
      $region15: #{conv_block_3d.2} parent=11 // pred_region
        _
      $region16: #{conv_block_3d.2} parent=11 // pred_fallthru
        _
    $region12: #{conv_block_3d.2} parent=5 // pred_fallthru
      _
    %p228 = scmp.lt.s32.totalorder %s13, 6
    // Predicated region
    $region17: #{conv_block_3d.2} parent=5 // pred_check
      %p229 = pneg %p228
    $region18: #{conv_block_3d.2} parent=5 // pred_check_branch
      %231 = sbr.rel (%p229) target = $region20
    $region19: #{conv_block_3d.2} parent=5 // pred_region
      // Predicated region
      $region21: #{conv_block_3d.2} parent=19 // pred_check
        %p232 = pneg %p47
      $region22: #{conv_block_3d.2} parent=19 // pred_check_branch
        %234 = sbr.rel (%p232) target = $region24
      $region23: #{conv_block_3d.2} parent=19 // pred_region
        %s235 = smul.u32 16, %s21
        %p236 = scmp.lt.s32.totalorder %s20, 1
        %s237 = scalar_select %p236, %s20, 1
        %p238 = scmp.lt.s32.totalorder %s235, 63
        %s239 = scalar_select %p238, %s235, 63
        %s240 = smul.addr %s237, 64
        %s241 = sadd.s32 %s239, %s240
        %s242 = smul.addr %s241, 8
        %s243 = scalar_lea.vmem %s0, %s242
        %s244 = smul.u32 16, %s21
      $region24: #{conv_block_3d.2} parent=19 // pred_fallthru
        _
      // Predicated region
      $region25: #{conv_block_3d.2} parent=19 // pred_check
        %p245 = pneg %p77
      $region26: #{conv_block_3d.2} parent=19 // pred_check_branch
        %247 = sbr.rel (%p245) target = $region28
      $region27: #{conv_block_3d.2} parent=19 // pred_region
        %s248 = sadd.s32 %s21, 1
        %s249 = smul.u32 16, %s248
        %p250 = scmp.lt.s32.totalorder %s20, 1
        %s251 = scalar_select %p250, %s20, 1
        %p252 = scmp.lt.s32.totalorder %s249, 63
        %s253 = scalar_select %p252, %s249, 63
        %s254 = smul.addr %s251, 64
        %s255 = sadd.s32 %s253, %s254
        %s256 = smul.addr %s255, 8
        %s257 = scalar_lea.vmem %s1, %s256
        %s258 = sadd.s32 %s21, 1
        %s259 = smul.u32 16, %s258
      $region28: #{conv_block_3d.2} parent=19 // pred_fallthru
        _
      // Predicated region
      $region29: #{conv_block_3d.2} parent=19 // pred_check
        %p260 = pneg %p124
      $region30: #{conv_block_3d.2} parent=19 // pred_check_branch
        %262 = sbr.rel (%p260) target = $region32
      $region31: #{conv_block_3d.2} parent=19 // pred_region
        %s263 = smul.u32 16, %s21
        %p264 = scmp.lt.s32.totalorder %s263, 47
        %s265 = scalar_select %p264, %s263, 47
        %s266 = scalar_lea.vmem %s3, %s265
        %s267 = smul.u32 16, %s21
      $region32: #{conv_block_3d.2} parent=19 // pred_fallthru
        _
    $region20: #{conv_block_3d.2} parent=5 // pred_fallthru
      _
    %p268 = scmp.le.s32.totalorder 1, %s13
    %p269 = scmp.lt.s32.totalorder %s13, 7
    %p270 = pnand %p268, %p269
    %p271 = pneg %p270
    // Predicated region
    $region33: #{conv_block_3d.2} parent=5 // pred_check
      _
    $region34: #{conv_block_3d.2} parent=5 // pred_check_branch
      %273 = sbr.rel (%p270) target = $region36
    $region35: #{conv_block_3d.2} parent=5 // pred_region
      %s274 = ssub.s32 %s13, 1
      %s275 = smul.u32 16, %s23
      %p276 = scmp.lt.s32.totalorder %s22, 1
      %s277 = scalar_select %p276, %s22, 1
      %p278 = scmp.lt.s32.totalorder %s275, 63
      %s279 = scalar_select %p278, %s275, 63
      %s280 = smul.addr %s277, 64
      %s281 = sadd.s32 %s279, %s280
      %s282 = smul.addr %s281, 8
      %s283 = scalar_lea.vmem %s0, %s282
      %p284 = pneg %p53
      %p285 = pneg %p50
      %s286 = sadd.s32 %s23, 1
      %s287 = smul.u32 16, %s286
      %p288 = scmp.lt.s32.totalorder %s22, 1
      %s289 = scalar_select %p288, %s22, 1
      %p290 = scmp.lt.s32.totalorder %s287, 63
      %s291 = scalar_select %p290, %s287, 63
      %s292 = smul.addr %s289, 64
      %s293 = sadd.s32 %s291, %s292
      %s294 = smul.addr %s293, 8
      %s295 = scalar_lea.vmem %s1, %s294
      %p296 = pneg %p83
      %p297 = pneg %p80
      %p298 = pneg %p104
      %p299 = pneg %p101
      %s300 = smul.u32 16, %s23
      %p301 = scmp.lt.s32.totalorder %s300, 47
      %s302 = scalar_select %p301, %s300, 47
      %s303 = scalar_lea.vmem %s3, %s302
      %p304 = pneg %p130
      %p305 = pneg %p127
      %p306 = pneg %p158
      %p307 = pneg %p155
      %s308 = smul.u32 16, %s23
      %p309 = scmp.lt.s32.totalorder %s22, 1
      %s310 = scalar_select %p309, %s22, 1
      %p311 = scmp.lt.s32.totalorder %s308, 47
      %s312 = scalar_select %p311, %s308, 47
      %s313 = smul.addr %s310, 48
      %s314 = sadd.s32 %s312, %s313
      %s315 = smul.addr %s314, 8
      %s316 = scalar_lea.vmem %s4, %s315
      %p317 = pneg %p184
      %p318 = pneg %p181
      %p319 = scmp.lt.s32.totalorder %s22, 1
      %s320 = scalar_select %p319, %s22, 1
      %s321 = smul.addr %s320, 8
      %s322 = scalar_lea.vmem %s5, %s321
      %p323 = pneg %p210
      %p324 = pneg %p207
      %p325 = scmp.lt.s32.totalorder %s22, 1
      %s326 = scalar_select %p325, %s22, 1
      %s327 = smul.addr %s326, 8
      %s328 = scalar_lea.vmem %s6, %s327
      %s329 = smul.u32 16, %s23
      %p330 = scmp.lt.s32.totalorder %s22, 1
      %s331 = scalar_select %p330, %s22, 1
      %p332 = scmp.lt.s32.totalorder %s329, 63
      %s333 = scalar_select %p332, %s329, 63
      %s334 = smul.addr %s331, 64
      %s335 = sadd.s32 %s333, %s334
      %s336 = smul.addr %s335, 8
      %s337 = scalar_lea.vmem %s0, %s336
      %s338 = smul.u32 16, %s23
      %s339 = sadd.s32 %s23, 1
      %s340 = smul.u32 16, %s339
      %p341 = scmp.lt.s32.totalorder %s22, 1
      %s342 = scalar_select %p341, %s22, 1
      %p343 = scmp.lt.s32.totalorder %s340, 63
      %s344 = scalar_select %p343, %s340, 63
      %s345 = smul.addr %s342, 64
      %s346 = sadd.s32 %s344, %s345
      %s347 = smul.addr %s346, 8
      %s348 = scalar_lea.vmem %s1, %s347
      %s349 = sadd.s32 %s23, 1
      %s350 = smul.u32 16, %s349
      %s351 = smul.u32 16, %s23
      %p352 = scmp.lt.s32.totalorder %s351, 47
      %s353 = scalar_select %p352, %s351, 47
      %s354 = scalar_lea.vmem %s3, %s353
      %s355 = smul.u32 16, %s23
      %s356 = smul.u32 16, %s23
      %p357 = scmp.lt.s32.totalorder %s22, 1
      %s358 = scalar_select %p357, %s22, 1
      %p359 = scmp.lt.s32.totalorder %s356, 47
      %s360 = scalar_select %p359, %s356, 47
      %s361 = smul.addr %s358, 48
      %s362 = sadd.s32 %s360, %s361
      %s363 = smul.addr %s362, 8
      %s364 = scalar_lea.vmem %s4, %s363
      %s365 = smul.u32 16, %s23
      %p366 = scmp.lt.s32.totalorder %s22, 1
      %s367 = scalar_select %p366, %s22, 1
      %s368 = smul.addr %s367, 8
      %s369 = scalar_lea.vmem %s5, %s368
      %p370 = scmp.lt.s32.totalorder %s22, 1
      %s371 = scalar_select %p370, %s22, 1
      %s372 = smul.addr %s371, 8
      %s373 = scalar_lea.vmem %s6, %s372
      %p374 = scmp.eq.s32.totalorder %s23, 0
      // Predicated region
      $region37: #{conv_block_3d.2} parent=35 // pred_check
        %p375 = pneg %p374
      $region38: #{conv_block_3d.2} parent=35 // pred_check_branch
        %377 = sbr.rel (%p375) target = $region40
      $region39: #{conv_block_3d.2} parent=35 // pred_region
        %378 = vst [vmem:[%s369] sm:$0xff] 0.0
        %379 = vst [vmem:[%s373] sm:$0xff] 0.0
      $region40: #{conv_block_3d.2} parent=35 // pred_fallthru
        _
      %v380 = vld [vmem:[%s337] sm:$0xff]
      %v381 = vld [vmem:[%s337 + $0x8] sm:$0xff]
      %v382 = vld [vmem:[%s337 + $0x10] sm:$0xff]
      %v383 = vld [vmem:[%s337 + $0x18] sm:$0xff]
      %v384 = vld [vmem:[%s337 + $0x20] sm:$0xff]
      %v385 = vld [vmem:[%s337 + $0x28] sm:$0xff]
      %v386 = vld [vmem:[%s337 + $0x30] sm:$0xff]
      %v387 = vld [vmem:[%s337 + $0x38] sm:$0xff]
      %v388 = vld [vmem:[%s337 + $0x40] sm:$0xff]
      %v389 = vld [vmem:[%s337 + $0x48] sm:$0xff]
      %v390 = vld [vmem:[%s337 + $0x50] sm:$0xff]
      %v391 = vld [vmem:[%s337 + $0x58] sm:$0xff]
      %v392 = vld [vmem:[%s337 + $0x60] sm:$0xff]
      %v393 = vld [vmem:[%s337 + $0x68] sm:$0xff]
      %v394 = vld [vmem:[%s337 + $0x70] sm:$0xff]
      %v395 = vld [vmem:[%s337 + $0x78] sm:$0xff]
      %v396 = vld [vmem:[%s348] sm:$0xff]
      %v397 = vld [vmem:[%s348 + $0x8] sm:$0xff]
      %v398 = vld [vmem:[%s348 + $0x10] sm:$0xff]
      %v399 = vld [vmem:[%s348 + $0x18] sm:$0xff]
      %v400 = vld [vmem:[%s348 + $0x20] sm:$0xff]
      %v401 = vld [vmem:[%s348 + $0x28] sm:$0xff]
      %419 = vrot.lane.b32.xlu0 %v380, 127
      %v420 = vpop.permute.xlu0 %419
      %421 = vrot.lane.b32.xlu0 %v381, 127
      %v422 = vpop.permute.xlu0 %421
      %423 = vrot.lane.b32.xlu0 %v382, 127
      %v424 = vpop.permute.xlu0 %423
      %425 = vrot.lane.b32.xlu0 %v383, 127
      %v426 = vpop.permute.xlu0 %425
      %427 = vrot.lane.b32.xlu0 %v384, 127
      %v428 = vpop.permute.xlu0 %427
      %429 = vrot.lane.b32.xlu0 %v385, 127
      %v430 = vpop.permute.xlu0 %429
      %431 = vrot.lane.b32.xlu0 %v386, 127
      %v432 = vpop.permute.xlu0 %431
      %433 = vrot.lane.b32.xlu0 %v387, 127
      %v434 = vpop.permute.xlu0 %433
      %435 = vrot.lane.b32.xlu0 %v388, 127
      %v436 = vpop.permute.xlu0 %435
      %437 = vrot.lane.b32.xlu0 %v389, 127
      %v438 = vpop.permute.xlu0 %437
      %439 = vrot.lane.b32.xlu0 %v390, 127
      %v440 = vpop.permute.xlu0 %439
      %441 = vrot.lane.b32.xlu0 %v391, 127
      %v442 = vpop.permute.xlu0 %441
      %443 = vrot.lane.b32.xlu0 %v392, 127
      %v444 = vpop.permute.xlu0 %443
      %445 = vrot.lane.b32.xlu0 %v393, 127
      %v446 = vpop.permute.xlu0 %445
      %447 = vrot.lane.b32.xlu0 %v394, 127
      %v448 = vpop.permute.xlu0 %447
      %449 = vrot.lane.b32.xlu0 %v395, 127
      %v450 = vpop.permute.xlu0 %449
      %451 = vrot.lane.b32.xlu0 %v396, 127
      %v452 = vpop.permute.xlu0 %451
      %vm453 = vcmask 1039360
      %v454 = vsel %vm453, %v420, %v422
      %v455 = vsel %vm453, %v422, %v424
      %v456 = vsel %vm453, %v424, %v426
      %v457 = vsel %vm453, %v426, %v428
      %v458 = vsel %vm453, %v428, %v430
      %v459 = vsel %vm453, %v430, %v432
      %v460 = vsel %vm453, %v432, %v434
      %v461 = vsel %vm453, %v434, %v436
      %v462 = vsel %vm453, %v436, %v438
      %v463 = vsel %vm453, %v438, %v440
      %v464 = vsel %vm453, %v440, %v442
      %v465 = vsel %vm453, %v442, %v444
      %v466 = vsel %vm453, %v444, %v446
      %v467 = vsel %vm453, %v446, %v448
      %v468 = vsel %vm453, %v448, %v450
      %v469 = vsel %vm453, %v450, %v452
      %486 = vrot.lane.b32.xlu0 %v380, 126
      %v487 = vpop.permute.xlu0 %486
      %488 = vrot.lane.b32.xlu0 %v381, 126
      %v489 = vpop.permute.xlu0 %488
      %490 = vrot.lane.b32.xlu0 %v382, 126
      %v491 = vpop.permute.xlu0 %490
      %492 = vrot.lane.b32.xlu0 %v383, 126
      %v493 = vpop.permute.xlu0 %492
      %494 = vrot.lane.b32.xlu0 %v384, 126
      %v495 = vpop.permute.xlu0 %494
      %496 = vrot.lane.b32.xlu0 %v385, 126
      %v497 = vpop.permute.xlu0 %496
      %498 = vrot.lane.b32.xlu0 %v386, 126
      %v499 = vpop.permute.xlu0 %498
      %500 = vrot.lane.b32.xlu0 %v387, 126
      %v501 = vpop.permute.xlu0 %500
      %502 = vrot.lane.b32.xlu0 %v388, 126
      %v503 = vpop.permute.xlu0 %502
      %504 = vrot.lane.b32.xlu0 %v389, 126
      %v505 = vpop.permute.xlu0 %504
      %506 = vrot.lane.b32.xlu0 %v390, 126
      %v507 = vpop.permute.xlu0 %506
      %508 = vrot.lane.b32.xlu0 %v391, 126
      %v509 = vpop.permute.xlu0 %508
      %510 = vrot.lane.b32.xlu0 %v392, 126
      %v511 = vpop.permute.xlu0 %510
      %512 = vrot.lane.b32.xlu0 %v393, 126
      %v513 = vpop.permute.xlu0 %512
      %514 = vrot.lane.b32.xlu0 %v394, 126
      %v515 = vpop.permute.xlu0 %514
      %516 = vrot.lane.b32.xlu0 %v395, 126
      %v517 = vpop.permute.xlu0 %516
      %518 = vrot.lane.b32.xlu0 %v396, 126
      %v519 = vpop.permute.xlu0 %518
      %vm520 = vcmask 1031168
      %v521 = vsel %vm520, %v487, %v489
      %v522 = vsel %vm520, %v489, %v491
      %v523 = vsel %vm520, %v491, %v493
      %v524 = vsel %vm520, %v493, %v495
      %v525 = vsel %vm520, %v495, %v497
      %v526 = vsel %vm520, %v497, %v499
      %v527 = vsel %vm520, %v499, %v501
      %v528 = vsel %vm520, %v501, %v503
      %v529 = vsel %vm520, %v503, %v505
      %v530 = vsel %vm520, %v505, %v507
      %v531 = vsel %vm520, %v507, %v509
      %v532 = vsel %vm520, %v509, %v511
      %v533 = vsel %vm520, %v511, %v513
      %v534 = vsel %vm520, %v513, %v515
      %v535 = vsel %vm520, %v515, %v517
      %v536 = vsel %vm520, %v517, %v519
      %553 = vrot.lane.b32.xlu0 %v380, 110
      %v554 = vpop.permute.xlu0 %553
      %555 = vrot.lane.b32.xlu0 %v381, 110
      %v556 = vpop.permute.xlu0 %555
      %557 = vrot.lane.b32.xlu0 %v382, 110
      %v558 = vpop.permute.xlu0 %557
      %559 = vrot.lane.b32.xlu0 %v383, 110
      %v560 = vpop.permute.xlu0 %559
      %561 = vrot.lane.b32.xlu0 %v384, 110
      %v562 = vpop.permute.xlu0 %561
      %563 = vrot.lane.b32.xlu0 %v385, 110
      %v564 = vpop.permute.xlu0 %563
      %565 = vrot.lane.b32.xlu0 %v386, 110
      %v566 = vpop.permute.xlu0 %565
      %567 = vrot.lane.b32.xlu0 %v387, 110
      %v568 = vpop.permute.xlu0 %567
      %569 = vrot.lane.b32.xlu0 %v388, 110
      %v570 = vpop.permute.xlu0 %569
      %571 = vrot.lane.b32.xlu0 %v389, 110
      %v572 = vpop.permute.xlu0 %571
      %573 = vrot.lane.b32.xlu0 %v390, 110
      %v574 = vpop.permute.xlu0 %573
      %575 = vrot.lane.b32.xlu0 %v391, 110
      %v576 = vpop.permute.xlu0 %575
      %577 = vrot.lane.b32.xlu0 %v392, 110
      %v578 = vpop.permute.xlu0 %577
      %579 = vrot.lane.b32.xlu0 %v393, 110
      %v580 = vpop.permute.xlu0 %579
      %581 = vrot.lane.b32.xlu0 %v394, 110
      %v582 = vpop.permute.xlu0 %581
      %583 = vrot.lane.b32.xlu0 %v395, 110
      %v584 = vpop.permute.xlu0 %583
      %585 = vrot.lane.b32.xlu0 %v396, 110
      %v586 = vpop.permute.xlu0 %585
      %vm587 = vcmask 900096
      %v588 = vsel %vm587, %v554, %v556
      %v589 = vsel %vm587, %v556, %v558
      %v590 = vsel %vm587, %v558, %v560
      %v591 = vsel %vm587, %v560, %v562
      %v592 = vsel %vm587, %v562, %v564
      %v593 = vsel %vm587, %v564, %v566
      %v594 = vsel %vm587, %v566, %v568
      %v595 = vsel %vm587, %v568, %v570
      %v596 = vsel %vm587, %v570, %v572
      %v597 = vsel %vm587, %v572, %v574
      %v598 = vsel %vm587, %v574, %v576
      %v599 = vsel %vm587, %v576, %v578
      %v600 = vsel %vm587, %v578, %v580
      %v601 = vsel %vm587, %v580, %v582
      %v602 = vsel %vm587, %v582, %v584
      %v603 = vsel %vm587, %v584, %v586
      %620 = vrot.lane.b32.xlu0 %v380, 109
      %v621 = vpop.permute.xlu0 %620
      %622 = vrot.lane.b32.xlu0 %v381, 109
      %v623 = vpop.permute.xlu0 %622
      %624 = vrot.lane.b32.xlu0 %v382, 109
      %v625 = vpop.permute.xlu0 %624
      %626 = vrot.lane.b32.xlu0 %v383, 109
      %v627 = vpop.permute.xlu0 %626
      %628 = vrot.lane.b32.xlu0 %v384, 109
      %v629 = vpop.permute.xlu0 %628
      %630 = vrot.lane.b32.xlu0 %v385, 109
      %v631 = vpop.permute.xlu0 %630
      %632 = vrot.lane.b32.xlu0 %v386, 109
      %v633 = vpop.permute.xlu0 %632
      %634 = vrot.lane.b32.xlu0 %v387, 109
      %v635 = vpop.permute.xlu0 %634
      %636 = vrot.lane.b32.xlu0 %v388, 109
      %v637 = vpop.permute.xlu0 %636
      %638 = vrot.lane.b32.xlu0 %v389, 109
      %v639 = vpop.permute.xlu0 %638
      %640 = vrot.lane.b32.xlu0 %v390, 109
      %v641 = vpop.permute.xlu0 %640
      %642 = vrot.lane.b32.xlu0 %v391, 109
      %v643 = vpop.permute.xlu0 %642
      %644 = vrot.lane.b32.xlu0 %v392, 109
      %v645 = vpop.permute.xlu0 %644
      %646 = vrot.lane.b32.xlu0 %v393, 109
      %v647 = vpop.permute.xlu0 %646
      %648 = vrot.lane.b32.xlu0 %v394, 109
      %v649 = vpop.permute.xlu0 %648
      %650 = vrot.lane.b32.xlu0 %v395, 109
      %v651 = vpop.permute.xlu0 %650
      %652 = vrot.lane.b32.xlu0 %v396, 109
      %v653 = vpop.permute.xlu0 %652
      %vm654 = vcmask 891904
      %v655 = vsel %vm654, %v621, %v623
      %v656 = vsel %vm654, %v623, %v625
      %v657 = vsel %vm654, %v625, %v627
      %v658 = vsel %vm654, %v627, %v629
      %v659 = vsel %vm654, %v629, %v631
      %v660 = vsel %vm654, %v631, %v633
      %v661 = vsel %vm654, %v633, %v635
      %v662 = vsel %vm654, %v635, %v637
      %v663 = vsel %vm654, %v637, %v639
      %v664 = vsel %vm654, %v639, %v641
      %v665 = vsel %vm654, %v641, %v643
      %v666 = vsel %vm654, %v643, %v645
      %v667 = vsel %vm654, %v645, %v647
      %v668 = vsel %vm654, %v647, %v649
      %v669 = vsel %vm654, %v649, %v651
      %v670 = vsel %vm654, %v651, %v653
      %687 = vrot.lane.b32.xlu0 %v380, 108
      %v688 = vpop.permute.xlu0 %687
      %689 = vrot.lane.b32.xlu0 %v381, 108
      %v690 = vpop.permute.xlu0 %689
      %691 = vrot.lane.b32.xlu0 %v382, 108
      %v692 = vpop.permute.xlu0 %691
      %693 = vrot.lane.b32.xlu0 %v383, 108
      %v694 = vpop.permute.xlu0 %693
      %695 = vrot.lane.b32.xlu0 %v384, 108
      %v696 = vpop.permute.xlu0 %695
      %697 = vrot.lane.b32.xlu0 %v385, 108
      %v698 = vpop.permute.xlu0 %697
      %699 = vrot.lane.b32.xlu0 %v386, 108
      %v700 = vpop.permute.xlu0 %699
      %701 = vrot.lane.b32.xlu0 %v387, 108
      %v702 = vpop.permute.xlu0 %701
      %703 = vrot.lane.b32.xlu0 %v388, 108
      %v704 = vpop.permute.xlu0 %703
      %705 = vrot.lane.b32.xlu0 %v389, 108
      %v706 = vpop.permute.xlu0 %705
      %707 = vrot.lane.b32.xlu0 %v390, 108
      %v708 = vpop.permute.xlu0 %707
      %709 = vrot.lane.b32.xlu0 %v391, 108
      %v710 = vpop.permute.xlu0 %709
      %711 = vrot.lane.b32.xlu0 %v392, 108
      %v712 = vpop.permute.xlu0 %711
      %713 = vrot.lane.b32.xlu0 %v393, 108
      %v714 = vpop.permute.xlu0 %713
      %715 = vrot.lane.b32.xlu0 %v394, 108
      %v716 = vpop.permute.xlu0 %715
      %717 = vrot.lane.b32.xlu0 %v395, 108
      %v718 = vpop.permute.xlu0 %717
      %719 = vrot.lane.b32.xlu0 %v396, 108
      %v720 = vpop.permute.xlu0 %719
      %vm721 = vcmask 883712
      %v722 = vsel %vm721, %v688, %v690
      %v723 = vsel %vm721, %v690, %v692
      %v724 = vsel %vm721, %v692, %v694
      %v725 = vsel %vm721, %v694, %v696
      %v726 = vsel %vm721, %v696, %v698
      %v727 = vsel %vm721, %v698, %v700
      %v728 = vsel %vm721, %v700, %v702
      %v729 = vsel %vm721, %v702, %v704
      %v730 = vsel %vm721, %v704, %v706
      %v731 = vsel %vm721, %v706, %v708
      %v732 = vsel %vm721, %v708, %v710
      %v733 = vsel %vm721, %v710, %v712
      %v734 = vsel %vm721, %v712, %v714
      %v735 = vsel %vm721, %v714, %v716
      %v736 = vsel %vm721, %v716, %v718
      %v737 = vsel %vm721, %v718, %v720
      %754 = vrot.lane.b32.xlu0 %v380, 92
      %v755 = vpop.permute.xlu0 %754
      %756 = vrot.lane.b32.xlu0 %v381, 92
      %v757 = vpop.permute.xlu0 %756
      %758 = vrot.lane.b32.xlu0 %v382, 92
      %v759 = vpop.permute.xlu0 %758
      %760 = vrot.lane.b32.xlu0 %v383, 92
      %v761 = vpop.permute.xlu0 %760
      %762 = vrot.lane.b32.xlu0 %v384, 92
      %v763 = vpop.permute.xlu0 %762
      %764 = vrot.lane.b32.xlu0 %v385, 92
      %v765 = vpop.permute.xlu0 %764
      %766 = vrot.lane.b32.xlu0 %v386, 92
      %v767 = vpop.permute.xlu0 %766
      %768 = vrot.lane.b32.xlu0 %v387, 92
      %v769 = vpop.permute.xlu0 %768
      %770 = vrot.lane.b32.xlu0 %v388, 92
      %v771 = vpop.permute.xlu0 %770
      %772 = vrot.lane.b32.xlu0 %v389, 92
      %v773 = vpop.permute.xlu0 %772
      %774 = vrot.lane.b32.xlu0 %v390, 92
      %v775 = vpop.permute.xlu0 %774
      %776 = vrot.lane.b32.xlu0 %v391, 92
      %v777 = vpop.permute.xlu0 %776
      %778 = vrot.lane.b32.xlu0 %v392, 92
      %v779 = vpop.permute.xlu0 %778
      %780 = vrot.lane.b32.xlu0 %v393, 92
      %v781 = vpop.permute.xlu0 %780
      %782 = vrot.lane.b32.xlu0 %v394, 92
      %v783 = vpop.permute.xlu0 %782
      %784 = vrot.lane.b32.xlu0 %v395, 92
      %v785 = vpop.permute.xlu0 %784
      %786 = vrot.lane.b32.xlu0 %v396, 92
      %v787 = vpop.permute.xlu0 %786
      %vm788 = vcmask 752640
      %v789 = vsel %vm788, %v755, %v757
      %v790 = vsel %vm788, %v757, %v759
      %v791 = vsel %vm788, %v759, %v761
      %v792 = vsel %vm788, %v761, %v763
      %v793 = vsel %vm788, %v763, %v765
      %v794 = vsel %vm788, %v765, %v767
      %v795 = vsel %vm788, %v767, %v769
      %v796 = vsel %vm788, %v769, %v771
      %v797 = vsel %vm788, %v771, %v773
      %v798 = vsel %vm788, %v773, %v775
      %v799 = vsel %vm788, %v775, %v777
      %v800 = vsel %vm788, %v777, %v779
      %v801 = vsel %vm788, %v779, %v781
      %v802 = vsel %vm788, %v781, %v783
      %v803 = vsel %vm788, %v783, %v785
      %v804 = vsel %vm788, %v785, %v787
      %821 = vrot.lane.b32.xlu0 %v380, 91
      %v822 = vpop.permute.xlu0 %821
      %823 = vrot.lane.b32.xlu0 %v381, 91
      %v824 = vpop.permute.xlu0 %823
      %825 = vrot.lane.b32.xlu0 %v382, 91
      %v826 = vpop.permute.xlu0 %825
      %827 = vrot.lane.b32.xlu0 %v383, 91
      %v828 = vpop.permute.xlu0 %827
      %829 = vrot.lane.b32.xlu0 %v384, 91
      %v830 = vpop.permute.xlu0 %829
      %831 = vrot.lane.b32.xlu0 %v385, 91
      %v832 = vpop.permute.xlu0 %831
      %833 = vrot.lane.b32.xlu0 %v386, 91
      %v834 = vpop.permute.xlu0 %833
      %835 = vrot.lane.b32.xlu0 %v387, 91
      %v836 = vpop.permute.xlu0 %835
      %837 = vrot.lane.b32.xlu0 %v388, 91
      %v838 = vpop.permute.xlu0 %837
      %839 = vrot.lane.b32.xlu0 %v389, 91
      %v840 = vpop.permute.xlu0 %839
      %841 = vrot.lane.b32.xlu0 %v390, 91
      %v842 = vpop.permute.xlu0 %841
      %843 = vrot.lane.b32.xlu0 %v391, 91
      %v844 = vpop.permute.xlu0 %843
      %845 = vrot.lane.b32.xlu0 %v392, 91
      %v846 = vpop.permute.xlu0 %845
      %847 = vrot.lane.b32.xlu0 %v393, 91
      %v848 = vpop.permute.xlu0 %847
      %849 = vrot.lane.b32.xlu0 %v394, 91
      %v850 = vpop.permute.xlu0 %849
      %851 = vrot.lane.b32.xlu0 %v395, 91
      %v852 = vpop.permute.xlu0 %851
      %853 = vrot.lane.b32.xlu0 %v396, 91
      %v854 = vpop.permute.xlu0 %853
      %vm855 = vcmask 744448
      %v856 = vsel %vm855, %v822, %v824
      %v857 = vsel %vm855, %v824, %v826
      %v858 = vsel %vm855, %v826, %v828
      %v859 = vsel %vm855, %v828, %v830
      %v860 = vsel %vm855, %v830, %v832
      %v861 = vsel %vm855, %v832, %v834
      %v862 = vsel %vm855, %v834, %v836
      %v863 = vsel %vm855, %v836, %v838
      %v864 = vsel %vm855, %v838, %v840
      %v865 = vsel %vm855, %v840, %v842
      %v866 = vsel %vm855, %v842, %v844
      %v867 = vsel %vm855, %v844, %v846
      %v868 = vsel %vm855, %v846, %v848
      %v869 = vsel %vm855, %v848, %v850
      %v870 = vsel %vm855, %v850, %v852
      %v871 = vsel %vm855, %v852, %v854
      %888 = vrot.lane.b32.xlu0 %v380, 90
      %v889 = vpop.permute.xlu0 %888
      %890 = vrot.lane.b32.xlu0 %v381, 90
      %v891 = vpop.permute.xlu0 %890
      %892 = vrot.lane.b32.xlu0 %v382, 90
      %v893 = vpop.permute.xlu0 %892
      %894 = vrot.lane.b32.xlu0 %v383, 90
      %v895 = vpop.permute.xlu0 %894
      %896 = vrot.lane.b32.xlu0 %v384, 90
      %v897 = vpop.permute.xlu0 %896
      %898 = vrot.lane.b32.xlu0 %v385, 90
      %v899 = vpop.permute.xlu0 %898
      %900 = vrot.lane.b32.xlu0 %v386, 90
      %v901 = vpop.permute.xlu0 %900
      %902 = vrot.lane.b32.xlu0 %v387, 90
      %v903 = vpop.permute.xlu0 %902
      %904 = vrot.lane.b32.xlu0 %v388, 90
      %v905 = vpop.permute.xlu0 %904
      %906 = vrot.lane.b32.xlu0 %v389, 90
      %v907 = vpop.permute.xlu0 %906
      %908 = vrot.lane.b32.xlu0 %v390, 90
      %v909 = vpop.permute.xlu0 %908
      %910 = vrot.lane.b32.xlu0 %v391, 90
      %v911 = vpop.permute.xlu0 %910
      %912 = vrot.lane.b32.xlu0 %v392, 90
      %v913 = vpop.permute.xlu0 %912
      %914 = vrot.lane.b32.xlu0 %v393, 90
      %v915 = vpop.permute.xlu0 %914
      %916 = vrot.lane.b32.xlu0 %v394, 90
      %v917 = vpop.permute.xlu0 %916
      %918 = vrot.lane.b32.xlu0 %v395, 90
      %v919 = vpop.permute.xlu0 %918
      %920 = vrot.lane.b32.xlu0 %v396, 90
      %v921 = vpop.permute.xlu0 %920
      %vm922 = vcmask 736256
      %v923 = vsel %vm922, %v889, %v891
      %v924 = vsel %vm922, %v891, %v893
      %v925 = vsel %vm922, %v893, %v895
      %v926 = vsel %vm922, %v895, %v897
      %v927 = vsel %vm922, %v897, %v899
      %v928 = vsel %vm922, %v899, %v901
      %v929 = vsel %vm922, %v901, %v903
      %v930 = vsel %vm922, %v903, %v905
      %v931 = vsel %vm922, %v905, %v907
      %v932 = vsel %vm922, %v907, %v909
      %v933 = vsel %vm922, %v909, %v911
      %v934 = vsel %vm922, %v911, %v913
      %v935 = vsel %vm922, %v913, %v915
      %v936 = vsel %vm922, %v915, %v917
      %v937 = vsel %vm922, %v917, %v919
      %v938 = vsel %vm922, %v919, %v921
      %957 = vrot.lane.b32.xlu0 %v382, 60
      %v958 = vpop.permute.xlu0 %957
      %959 = vrot.lane.b32.xlu0 %v383, 60
      %v960 = vpop.permute.xlu0 %959
      %961 = vrot.lane.b32.xlu0 %v384, 60
      %v962 = vpop.permute.xlu0 %961
      %963 = vrot.lane.b32.xlu0 %v385, 60
      %v964 = vpop.permute.xlu0 %963
      %965 = vrot.lane.b32.xlu0 %v386, 60
      %v966 = vpop.permute.xlu0 %965
      %967 = vrot.lane.b32.xlu0 %v387, 60
      %v968 = vpop.permute.xlu0 %967
      %969 = vrot.lane.b32.xlu0 %v388, 60
      %v970 = vpop.permute.xlu0 %969
      %971 = vrot.lane.b32.xlu0 %v389, 60
      %v972 = vpop.permute.xlu0 %971
      %973 = vrot.lane.b32.xlu0 %v390, 60
      %v974 = vpop.permute.xlu0 %973
      %975 = vrot.lane.b32.xlu0 %v391, 60
      %v976 = vpop.permute.xlu0 %975
      %977 = vrot.lane.b32.xlu0 %v392, 60
      %v978 = vpop.permute.xlu0 %977
      %979 = vrot.lane.b32.xlu0 %v393, 60
      %v980 = vpop.permute.xlu0 %979
      %981 = vrot.lane.b32.xlu0 %v394, 60
      %v982 = vpop.permute.xlu0 %981
      %983 = vrot.lane.b32.xlu0 %v395, 60
      %v984 = vpop.permute.xlu0 %983
      %985 = vrot.lane.b32.xlu0 %v396, 60
      %v986 = vpop.permute.xlu0 %985
      %987 = vrot.lane.b32.xlu0 %v397, 60
      %v988 = vpop.permute.xlu0 %987
      %989 = vrot.lane.b32.xlu0 %v398, 60
      %v990 = vpop.permute.xlu0 %989
      %vm991 = vcmask 490496
      %v992 = vsel %vm991, %v958, %v960
      %v993 = vsel %vm991, %v960, %v962
      %v994 = vsel %vm991, %v962, %v964
      %v995 = vsel %vm991, %v964, %v966
      %v996 = vsel %vm991, %v966, %v968
      %v997 = vsel %vm991, %v968, %v970
      %v998 = vsel %vm991, %v970, %v972
      %v999 = vsel %vm991, %v972, %v974
      %v1000 = vsel %vm991, %v974, %v976
      %v1001 = vsel %vm991, %v976, %v978
      %v1002 = vsel %vm991, %v978, %v980
      %v1003 = vsel %vm991, %v980, %v982
      %v1004 = vsel %vm991, %v982, %v984
      %v1005 = vsel %vm991, %v984, %v986
      %v1006 = vsel %vm991, %v986, %v988
      %v1007 = vsel %vm991, %v988, %v990
      %1024 = vrot.lane.b32.xlu0 %v382, 59
      %v1025 = vpop.permute.xlu0 %1024
      %1026 = vrot.lane.b32.xlu0 %v383, 59
      %v1027 = vpop.permute.xlu0 %1026
      %1028 = vrot.lane.b32.xlu0 %v384, 59
      %v1029 = vpop.permute.xlu0 %1028
      %1030 = vrot.lane.b32.xlu0 %v385, 59
      %v1031 = vpop.permute.xlu0 %1030
      %1032 = vrot.lane.b32.xlu0 %v386, 59
      %v1033 = vpop.permute.xlu0 %1032
      %1034 = vrot.lane.b32.xlu0 %v387, 59
      %v1035 = vpop.permute.xlu0 %1034
      %1036 = vrot.lane.b32.xlu0 %v388, 59
      %v1037 = vpop.permute.xlu0 %1036
      %1038 = vrot.lane.b32.xlu0 %v389, 59
      %v1039 = vpop.permute.xlu0 %1038
      %1040 = vrot.lane.b32.xlu0 %v390, 59
      %v1041 = vpop.permute.xlu0 %1040
      %1042 = vrot.lane.b32.xlu0 %v391, 59
      %v1043 = vpop.permute.xlu0 %1042
      %1044 = vrot.lane.b32.xlu0 %v392, 59
      %v1045 = vpop.permute.xlu0 %1044
      %1046 = vrot.lane.b32.xlu0 %v393, 59
      %v1047 = vpop.permute.xlu0 %1046
      %1048 = vrot.lane.b32.xlu0 %v394, 59
      %v1049 = vpop.permute.xlu0 %1048
      %1050 = vrot.lane.b32.xlu0 %v395, 59
      %v1051 = vpop.permute.xlu0 %1050
      %1052 = vrot.lane.b32.xlu0 %v396, 59
      %v1053 = vpop.permute.xlu0 %1052
      %1054 = vrot.lane.b32.xlu0 %v397, 59
      %v1055 = vpop.permute.xlu0 %1054
      %1056 = vrot.lane.b32.xlu0 %v398, 59
      %v1057 = vpop.permute.xlu0 %1056
      %vm1058 = vcmask 482304
      %v1059 = vsel %vm1058, %v1025, %v1027
      %v1060 = vsel %vm1058, %v1027, %v1029
      %v1061 = vsel %vm1058, %v1029, %v1031
      %v1062 = vsel %vm1058, %v1031, %v1033
      %v1063 = vsel %vm1058, %v1033, %v1035
      %v1064 = vsel %vm1058, %v1035, %v1037
      %v1065 = vsel %vm1058, %v1037, %v1039
      %v1066 = vsel %vm1058, %v1039, %v1041
      %v1067 = vsel %vm1058, %v1041, %v1043
      %v1068 = vsel %vm1058, %v1043, %v1045
      %v1069 = vsel %vm1058, %v1045, %v1047
      %v1070 = vsel %vm1058, %v1047, %v1049
      %v1071 = vsel %vm1058, %v1049, %v1051
      %v1072 = vsel %vm1058, %v1051, %v1053
      %v1073 = vsel %vm1058, %v1053, %v1055
      %v1074 = vsel %vm1058, %v1055, %v1057
      %1091 = vrot.lane.b32.xlu0 %v382, 58
      %v1092 = vpop.permute.xlu0 %1091
      %1093 = vrot.lane.b32.xlu0 %v383, 58
      %v1094 = vpop.permute.xlu0 %1093
      %1095 = vrot.lane.b32.xlu0 %v384, 58
      %v1096 = vpop.permute.xlu0 %1095
      %1097 = vrot.lane.b32.xlu0 %v385, 58
      %v1098 = vpop.permute.xlu0 %1097
      %1099 = vrot.lane.b32.xlu0 %v386, 58
      %v1100 = vpop.permute.xlu0 %1099
      %1101 = vrot.lane.b32.xlu0 %v387, 58
      %v1102 = vpop.permute.xlu0 %1101
      %1103 = vrot.lane.b32.xlu0 %v388, 58
      %v1104 = vpop.permute.xlu0 %1103
      %1105 = vrot.lane.b32.xlu0 %v389, 58
      %v1106 = vpop.permute.xlu0 %1105
      %1107 = vrot.lane.b32.xlu0 %v390, 58
      %v1108 = vpop.permute.xlu0 %1107
      %1109 = vrot.lane.b32.xlu0 %v391, 58
      %v1110 = vpop.permute.xlu0 %1109
      %1111 = vrot.lane.b32.xlu0 %v392, 58
      %v1112 = vpop.permute.xlu0 %1111
      %1113 = vrot.lane.b32.xlu0 %v393, 58
      %v1114 = vpop.permute.xlu0 %1113
      %1115 = vrot.lane.b32.xlu0 %v394, 58
      %v1116 = vpop.permute.xlu0 %1115
      %1117 = vrot.lane.b32.xlu0 %v395, 58
      %v1118 = vpop.permute.xlu0 %1117
      %1119 = vrot.lane.b32.xlu0 %v396, 58
      %v1120 = vpop.permute.xlu0 %1119
      %1121 = vrot.lane.b32.xlu0 %v397, 58
      %v1122 = vpop.permute.xlu0 %1121
      %1123 = vrot.lane.b32.xlu0 %v398, 58
      %v1124 = vpop.permute.xlu0 %1123
      %vm1125 = vcmask 474112
      %v1126 = vsel %vm1125, %v1092, %v1094
      %v1127 = vsel %vm1125, %v1094, %v1096
      %v1128 = vsel %vm1125, %v1096, %v1098
      %v1129 = vsel %vm1125, %v1098, %v1100
      %v1130 = vsel %vm1125, %v1100, %v1102
      %v1131 = vsel %vm1125, %v1102, %v1104
      %v1132 = vsel %vm1125, %v1104, %v1106
      %v1133 = vsel %vm1125, %v1106, %v1108
      %v1134 = vsel %vm1125, %v1108, %v1110
      %v1135 = vsel %vm1125, %v1110, %v1112
      %v1136 = vsel %vm1125, %v1112, %v1114
      %v1137 = vsel %vm1125, %v1114, %v1116
      %v1138 = vsel %vm1125, %v1116, %v1118
      %v1139 = vsel %vm1125, %v1118, %v1120
      %v1140 = vsel %vm1125, %v1120, %v1122
      %v1141 = vsel %vm1125, %v1122, %v1124
      %1158 = vrot.lane.b32.xlu0 %v382, 42
      %v1159 = vpop.permute.xlu0 %1158
      %1160 = vrot.lane.b32.xlu0 %v383, 42
      %v1161 = vpop.permute.xlu0 %1160
      %1162 = vrot.lane.b32.xlu0 %v384, 42
      %v1163 = vpop.permute.xlu0 %1162
      %1164 = vrot.lane.b32.xlu0 %v385, 42
      %v1165 = vpop.permute.xlu0 %1164
      %1166 = vrot.lane.b32.xlu0 %v386, 42
      %v1167 = vpop.permute.xlu0 %1166
      %1168 = vrot.lane.b32.xlu0 %v387, 42
      %v1169 = vpop.permute.xlu0 %1168
      %1170 = vrot.lane.b32.xlu0 %v388, 42
      %v1171 = vpop.permute.xlu0 %1170
      %1172 = vrot.lane.b32.xlu0 %v389, 42
      %v1173 = vpop.permute.xlu0 %1172
      %1174 = vrot.lane.b32.xlu0 %v390, 42
      %v1175 = vpop.permute.xlu0 %1174
      %1176 = vrot.lane.b32.xlu0 %v391, 42
      %v1177 = vpop.permute.xlu0 %1176
      %1178 = vrot.lane.b32.xlu0 %v392, 42
      %v1179 = vpop.permute.xlu0 %1178
      %1180 = vrot.lane.b32.xlu0 %v393, 42
      %v1181 = vpop.permute.xlu0 %1180
      %1182 = vrot.lane.b32.xlu0 %v394, 42
      %v1183 = vpop.permute.xlu0 %1182
      %1184 = vrot.lane.b32.xlu0 %v395, 42
      %v1185 = vpop.permute.xlu0 %1184
      %1186 = vrot.lane.b32.xlu0 %v396, 42
      %v1187 = vpop.permute.xlu0 %1186
      %1188 = vrot.lane.b32.xlu0 %v397, 42
      %v1189 = vpop.permute.xlu0 %1188
      %1190 = vrot.lane.b32.xlu0 %v398, 42
      %v1191 = vpop.permute.xlu0 %1190
      %vm1192 = vcmask 343040
      %v1193 = vsel %vm1192, %v1159, %v1161
      %v1194 = vsel %vm1192, %v1161, %v1163
      %v1195 = vsel %vm1192, %v1163, %v1165
      %v1196 = vsel %vm1192, %v1165, %v1167
      %v1197 = vsel %vm1192, %v1167, %v1169
      %v1198 = vsel %vm1192, %v1169, %v1171
      %v1199 = vsel %vm1192, %v1171, %v1173
      %v1200 = vsel %vm1192, %v1173, %v1175
      %v1201 = vsel %vm1192, %v1175, %v1177
      %v1202 = vsel %vm1192, %v1177, %v1179
      %v1203 = vsel %vm1192, %v1179, %v1181
      %v1204 = vsel %vm1192, %v1181, %v1183
      %v1205 = vsel %vm1192, %v1183, %v1185
      %v1206 = vsel %vm1192, %v1185, %v1187
      %v1207 = vsel %vm1192, %v1187, %v1189
      %v1208 = vsel %vm1192, %v1189, %v1191
      %1225 = vrot.lane.b32.xlu0 %v382, 41
      %v1226 = vpop.permute.xlu0 %1225
      %1227 = vrot.lane.b32.xlu0 %v383, 41
      %v1228 = vpop.permute.xlu0 %1227
      %1229 = vrot.lane.b32.xlu0 %v384, 41
      %v1230 = vpop.permute.xlu0 %1229
      %1231 = vrot.lane.b32.xlu0 %v385, 41
      %v1232 = vpop.permute.xlu0 %1231
      %1233 = vrot.lane.b32.xlu0 %v386, 41
      %v1234 = vpop.permute.xlu0 %1233
      %1235 = vrot.lane.b32.xlu0 %v387, 41
      %v1236 = vpop.permute.xlu0 %1235
      %1237 = vrot.lane.b32.xlu0 %v388, 41
      %v1238 = vpop.permute.xlu0 %1237
      %1239 = vrot.lane.b32.xlu0 %v389, 41
      %v1240 = vpop.permute.xlu0 %1239
      %1241 = vrot.lane.b32.xlu0 %v390, 41
      %v1242 = vpop.permute.xlu0 %1241
      %1243 = vrot.lane.b32.xlu0 %v391, 41
      %v1244 = vpop.permute.xlu0 %1243
      %1245 = vrot.lane.b32.xlu0 %v392, 41
      %v1246 = vpop.permute.xlu0 %1245
      %1247 = vrot.lane.b32.xlu0 %v393, 41
      %v1248 = vpop.permute.xlu0 %1247
      %1249 = vrot.lane.b32.xlu0 %v394, 41
      %v1250 = vpop.permute.xlu0 %1249
      %1251 = vrot.lane.b32.xlu0 %v395, 41
      %v1252 = vpop.permute.xlu0 %1251
      %1253 = vrot.lane.b32.xlu0 %v396, 41
      %v1254 = vpop.permute.xlu0 %1253
      %1255 = vrot.lane.b32.xlu0 %v397, 41
      %v1256 = vpop.permute.xlu0 %1255
      %1257 = vrot.lane.b32.xlu0 %v398, 41
      %v1258 = vpop.permute.xlu0 %1257
      %vm1259 = vcmask 334848
      %v1260 = vsel %vm1259, %v1226, %v1228
      %v1261 = vsel %vm1259, %v1228, %v1230
      %v1262 = vsel %vm1259, %v1230, %v1232
      %v1263 = vsel %vm1259, %v1232, %v1234
      %v1264 = vsel %vm1259, %v1234, %v1236
      %v1265 = vsel %vm1259, %v1236, %v1238
      %v1266 = vsel %vm1259, %v1238, %v1240
      %v1267 = vsel %vm1259, %v1240, %v1242
      %v1268 = vsel %vm1259, %v1242, %v1244
      %v1269 = vsel %vm1259, %v1244, %v1246
      %v1270 = vsel %vm1259, %v1246, %v1248
      %v1271 = vsel %vm1259, %v1248, %v1250
      %v1272 = vsel %vm1259, %v1250, %v1252
      %v1273 = vsel %vm1259, %v1252, %v1254
      %v1274 = vsel %vm1259, %v1254, %v1256
      %v1275 = vsel %vm1259, %v1256, %v1258
      %1292 = vrot.lane.b32.xlu0 %v382, 40
      %v1293 = vpop.permute.xlu0 %1292
      %1294 = vrot.lane.b32.xlu0 %v383, 40
      %v1295 = vpop.permute.xlu0 %1294
      %1296 = vrot.lane.b32.xlu0 %v384, 40
      %v1297 = vpop.permute.xlu0 %1296
      %1298 = vrot.lane.b32.xlu0 %v385, 40
      %v1299 = vpop.permute.xlu0 %1298
      %1300 = vrot.lane.b32.xlu0 %v386, 40
      %v1301 = vpop.permute.xlu0 %1300
      %1302 = vrot.lane.b32.xlu0 %v387, 40
      %v1303 = vpop.permute.xlu0 %1302
      %1304 = vrot.lane.b32.xlu0 %v388, 40
      %v1305 = vpop.permute.xlu0 %1304
      %1306 = vrot.lane.b32.xlu0 %v389, 40
      %v1307 = vpop.permute.xlu0 %1306
      %1308 = vrot.lane.b32.xlu0 %v390, 40
      %v1309 = vpop.permute.xlu0 %1308
      %1310 = vrot.lane.b32.xlu0 %v391, 40
      %v1311 = vpop.permute.xlu0 %1310
      %1312 = vrot.lane.b32.xlu0 %v392, 40
      %v1313 = vpop.permute.xlu0 %1312
      %1314 = vrot.lane.b32.xlu0 %v393, 40
      %v1315 = vpop.permute.xlu0 %1314
      %1316 = vrot.lane.b32.xlu0 %v394, 40
      %v1317 = vpop.permute.xlu0 %1316
      %1318 = vrot.lane.b32.xlu0 %v395, 40
      %v1319 = vpop.permute.xlu0 %1318
      %1320 = vrot.lane.b32.xlu0 %v396, 40
      %v1321 = vpop.permute.xlu0 %1320
      %1322 = vrot.lane.b32.xlu0 %v397, 40
      %v1323 = vpop.permute.xlu0 %1322
      %1324 = vrot.lane.b32.xlu0 %v398, 40
      %v1325 = vpop.permute.xlu0 %1324
      %vm1326 = vcmask 326656
      %v1327 = vsel %vm1326, %v1293, %v1295
      %v1328 = vsel %vm1326, %v1295, %v1297
      %v1329 = vsel %vm1326, %v1297, %v1299
      %v1330 = vsel %vm1326, %v1299, %v1301
      %v1331 = vsel %vm1326, %v1301, %v1303
      %v1332 = vsel %vm1326, %v1303, %v1305
      %v1333 = vsel %vm1326, %v1305, %v1307
      %v1334 = vsel %vm1326, %v1307, %v1309
      %v1335 = vsel %vm1326, %v1309, %v1311
      %v1336 = vsel %vm1326, %v1311, %v1313
      %v1337 = vsel %vm1326, %v1313, %v1315
      %v1338 = vsel %vm1326, %v1315, %v1317
      %v1339 = vsel %vm1326, %v1317, %v1319
      %v1340 = vsel %vm1326, %v1319, %v1321
      %v1341 = vsel %vm1326, %v1321, %v1323
      %v1342 = vsel %vm1326, %v1323, %v1325
      %1359 = vrot.lane.b32.xlu0 %v382, 24
      %v1360 = vpop.permute.xlu0 %1359
      %1361 = vrot.lane.b32.xlu0 %v383, 24
      %v1362 = vpop.permute.xlu0 %1361
      %1363 = vrot.lane.b32.xlu0 %v384, 24
      %v1364 = vpop.permute.xlu0 %1363
      %1365 = vrot.lane.b32.xlu0 %v385, 24
      %v1366 = vpop.permute.xlu0 %1365
      %1367 = vrot.lane.b32.xlu0 %v386, 24
      %v1368 = vpop.permute.xlu0 %1367
      %1369 = vrot.lane.b32.xlu0 %v387, 24
      %v1370 = vpop.permute.xlu0 %1369
      %1371 = vrot.lane.b32.xlu0 %v388, 24
      %v1372 = vpop.permute.xlu0 %1371
      %1373 = vrot.lane.b32.xlu0 %v389, 24
      %v1374 = vpop.permute.xlu0 %1373
      %1375 = vrot.lane.b32.xlu0 %v390, 24
      %v1376 = vpop.permute.xlu0 %1375
      %1377 = vrot.lane.b32.xlu0 %v391, 24
      %v1378 = vpop.permute.xlu0 %1377
      %1379 = vrot.lane.b32.xlu0 %v392, 24
      %v1380 = vpop.permute.xlu0 %1379
      %1381 = vrot.lane.b32.xlu0 %v393, 24
      %v1382 = vpop.permute.xlu0 %1381
      %1383 = vrot.lane.b32.xlu0 %v394, 24
      %v1384 = vpop.permute.xlu0 %1383
      %1385 = vrot.lane.b32.xlu0 %v395, 24
      %v1386 = vpop.permute.xlu0 %1385
      %1387 = vrot.lane.b32.xlu0 %v396, 24
      %v1388 = vpop.permute.xlu0 %1387
      %1389 = vrot.lane.b32.xlu0 %v397, 24
      %v1390 = vpop.permute.xlu0 %1389
      %1391 = vrot.lane.b32.xlu0 %v398, 24
      %v1392 = vpop.permute.xlu0 %1391
      %vm1393 = vcmask 195584
      %v1394 = vsel %vm1393, %v1360, %v1362
      %v1395 = vsel %vm1393, %v1362, %v1364
      %v1396 = vsel %vm1393, %v1364, %v1366
      %v1397 = vsel %vm1393, %v1366, %v1368
      %v1398 = vsel %vm1393, %v1368, %v1370
      %v1399 = vsel %vm1393, %v1370, %v1372
      %v1400 = vsel %vm1393, %v1372, %v1374
      %v1401 = vsel %vm1393, %v1374, %v1376
      %v1402 = vsel %vm1393, %v1376, %v1378
      %v1403 = vsel %vm1393, %v1378, %v1380
      %v1404 = vsel %vm1393, %v1380, %v1382
      %v1405 = vsel %vm1393, %v1382, %v1384
      %v1406 = vsel %vm1393, %v1384, %v1386
      %v1407 = vsel %vm1393, %v1386, %v1388
      %v1408 = vsel %vm1393, %v1388, %v1390
      %v1409 = vsel %vm1393, %v1390, %v1392
      %1426 = vrot.lane.b32.xlu0 %v397, 127
      %v1427 = vpop.permute.xlu0 %1426
      %1428 = vrot.lane.b32.xlu0 %v398, 127
      %v1429 = vpop.permute.xlu0 %1428
      %v1430 = vsel %vm453, %v452, %v1427
      %v1431 = vsel %vm453, %v1427, %v1429
      %1435 = vrot.lane.b32.xlu0 %v385, 97
      %v1436 = vpop.permute.xlu0 %1435
      %1437 = vrot.lane.b32.xlu0 %v386, 97
      %v1438 = vpop.permute.xlu0 %1437
      %1439 = vrot.lane.b32.xlu0 %v387, 97
      %v1440 = vpop.permute.xlu0 %1439
      %1441 = vrot.lane.b32.xlu0 %v388, 97
      %v1442 = vpop.permute.xlu0 %1441
      %1443 = vrot.lane.b32.xlu0 %v389, 97
      %v1444 = vpop.permute.xlu0 %1443
      %1445 = vrot.lane.b32.xlu0 %v390, 97
      %v1446 = vpop.permute.xlu0 %1445
      %1447 = vrot.lane.b32.xlu0 %v391, 97
      %v1448 = vpop.permute.xlu0 %1447
      %1449 = vrot.lane.b32.xlu0 %v392, 97
      %v1450 = vpop.permute.xlu0 %1449
      %1451 = vrot.lane.b32.xlu0 %v393, 97
      %v1452 = vpop.permute.xlu0 %1451
      %1453 = vrot.lane.b32.xlu0 %v394, 97
      %v1454 = vpop.permute.xlu0 %1453
      %1455 = vrot.lane.b32.xlu0 %v395, 97
      %v1456 = vpop.permute.xlu0 %1455
      %1457 = vrot.lane.b32.xlu0 %v396, 97
      %v1458 = vpop.permute.xlu0 %1457
      %1459 = vrot.lane.b32.xlu0 %v397, 97
      %v1460 = vpop.permute.xlu0 %1459
      %1461 = vrot.lane.b32.xlu0 %v398, 97
      %v1462 = vpop.permute.xlu0 %1461
      %1463 = vrot.lane.b32.xlu0 %v399, 97
      %v1464 = vpop.permute.xlu0 %1463
      %1465 = vrot.lane.b32.xlu0 %v400, 97
      %v1466 = vpop.permute.xlu0 %1465
      %1467 = vrot.lane.b32.xlu0 %v401, 97
      %v1468 = vpop.permute.xlu0 %1467
      %vm1469 = vcmask 793600
      %v1470 = vsel %vm1469, %v1436, %v1438
      %v1471 = vsel %vm1469, %v1438, %v1440
      %v1472 = vsel %vm1469, %v1440, %v1442
      %v1473 = vsel %vm1469, %v1442, %v1444
      %v1474 = vsel %vm1469, %v1444, %v1446
      %v1475 = vsel %vm1469, %v1446, %v1448
      %v1476 = vsel %vm1469, %v1448, %v1450
      %v1477 = vsel %vm1469, %v1450, %v1452
      %v1478 = vsel %vm1469, %v1452, %v1454
      %v1479 = vsel %vm1469, %v1454, %v1456
      %v1480 = vsel %vm1469, %v1456, %v1458
      %v1481 = vsel %vm1469, %v1458, %v1460
      %v1482 = vsel %vm1469, %v1460, %v1462
      %v1483 = vsel %vm1469, %v1462, %v1464
      %v1484 = vsel %vm1469, %v1464, %v1466
      %v1485 = vsel %vm1469, %v1466, %v1468
      %1486 = vrot.lane.b32.xlu0 %v385, 96
      %v1487 = vpop.permute.xlu0 %1486
      %1488 = vrot.lane.b32.xlu0 %v386, 96
      %v1489 = vpop.permute.xlu0 %1488
      %1490 = vrot.lane.b32.xlu0 %v387, 96
      %v1491 = vpop.permute.xlu0 %1490
      %1492 = vrot.lane.b32.xlu0 %v388, 96
      %v1493 = vpop.permute.xlu0 %1492
      %1494 = vrot.lane.b32.xlu0 %v389, 96
      %v1495 = vpop.permute.xlu0 %1494
      %1496 = vrot.lane.b32.xlu0 %v390, 96
      %v1497 = vpop.permute.xlu0 %1496
      %1498 = vrot.lane.b32.xlu0 %v391, 96
      %v1499 = vpop.permute.xlu0 %1498
      %1500 = vrot.lane.b32.xlu0 %v392, 96
      %v1501 = vpop.permute.xlu0 %1500
      %1502 = vrot.lane.b32.xlu0 %v393, 96
      %v1503 = vpop.permute.xlu0 %1502
      %1504 = vrot.lane.b32.xlu0 %v394, 96
      %v1505 = vpop.permute.xlu0 %1504
      %1506 = vrot.lane.b32.xlu0 %v395, 96
      %v1507 = vpop.permute.xlu0 %1506
      %1508 = vrot.lane.b32.xlu0 %v396, 96
      %v1509 = vpop.permute.xlu0 %1508
      %1510 = vrot.lane.b32.xlu0 %v397, 96
      %v1511 = vpop.permute.xlu0 %1510
      %1512 = vrot.lane.b32.xlu0 %v398, 96
      %v1513 = vpop.permute.xlu0 %1512
      %1514 = vrot.lane.b32.xlu0 %v399, 96
      %v1515 = vpop.permute.xlu0 %1514
      %1516 = vrot.lane.b32.xlu0 %v400, 96
      %v1517 = vpop.permute.xlu0 %1516
      %1518 = vrot.lane.b32.xlu0 %v401, 96
      %v1519 = vpop.permute.xlu0 %1518
      %vm1520 = vcmask 785408
      %v1521 = vsel %vm1520, %v1487, %v1489
      %v1522 = vsel %vm1520, %v1489, %v1491
      %v1523 = vsel %vm1520, %v1491, %v1493
      %v1524 = vsel %vm1520, %v1493, %v1495
      %v1525 = vsel %vm1520, %v1495, %v1497
      %v1526 = vsel %vm1520, %v1497, %v1499
      %v1527 = vsel %vm1520, %v1499, %v1501
      %v1528 = vsel %vm1520, %v1501, %v1503
      %v1529 = vsel %vm1520, %v1503, %v1505
      %v1530 = vsel %vm1520, %v1505, %v1507
      %v1531 = vsel %vm1520, %v1507, %v1509
      %v1532 = vsel %vm1520, %v1509, %v1511
      %v1533 = vsel %vm1520, %v1511, %v1513
      %v1534 = vsel %vm1520, %v1513, %v1515
      %v1535 = vsel %vm1520, %v1515, %v1517
      %v1536 = vsel %vm1520, %v1517, %v1519
      %1537 = vrot.lane.b32.xlu0 %v385, 95
      %v1538 = vpop.permute.xlu0 %1537
      %1539 = vrot.lane.b32.xlu0 %v386, 95
      %v1540 = vpop.permute.xlu0 %1539
      %1541 = vrot.lane.b32.xlu0 %v387, 95
      %v1542 = vpop.permute.xlu0 %1541
      %1543 = vrot.lane.b32.xlu0 %v388, 95
      %v1544 = vpop.permute.xlu0 %1543
      %1545 = vrot.lane.b32.xlu0 %v389, 95
      %v1546 = vpop.permute.xlu0 %1545
      %1547 = vrot.lane.b32.xlu0 %v390, 95
      %v1548 = vpop.permute.xlu0 %1547
      %1549 = vrot.lane.b32.xlu0 %v391, 95
      %v1550 = vpop.permute.xlu0 %1549
      %1551 = vrot.lane.b32.xlu0 %v392, 95
      %v1552 = vpop.permute.xlu0 %1551
      %1553 = vrot.lane.b32.xlu0 %v393, 95
      %v1554 = vpop.permute.xlu0 %1553
      %1555 = vrot.lane.b32.xlu0 %v394, 95
      %v1556 = vpop.permute.xlu0 %1555
      %1557 = vrot.lane.b32.xlu0 %v395, 95
      %v1558 = vpop.permute.xlu0 %1557
      %1559 = vrot.lane.b32.xlu0 %v396, 95
      %v1560 = vpop.permute.xlu0 %1559
      %1561 = vrot.lane.b32.xlu0 %v397, 95
      %v1562 = vpop.permute.xlu0 %1561
      %1563 = vrot.lane.b32.xlu0 %v398, 95
      %v1564 = vpop.permute.xlu0 %1563
      %1565 = vrot.lane.b32.xlu0 %v399, 95
      %v1566 = vpop.permute.xlu0 %1565
      %1567 = vrot.lane.b32.xlu0 %v400, 95
      %v1568 = vpop.permute.xlu0 %1567
      %1569 = vrot.lane.b32.xlu0 %v401, 95
      %v1570 = vpop.permute.xlu0 %1569
      %vm1571 = vcmask 777216
      %v1572 = vsel %vm1571, %v1538, %v1540
      %v1573 = vsel %vm1571, %v1540, %v1542
      %v1574 = vsel %vm1571, %v1542, %v1544
      %v1575 = vsel %vm1571, %v1544, %v1546
      %v1576 = vsel %vm1571, %v1546, %v1548
      %v1577 = vsel %vm1571, %v1548, %v1550
      %v1578 = vsel %vm1571, %v1550, %v1552
      %v1579 = vsel %vm1571, %v1552, %v1554
      %v1580 = vsel %vm1571, %v1554, %v1556
      %v1581 = vsel %vm1571, %v1556, %v1558
      %v1582 = vsel %vm1571, %v1558, %v1560
      %v1583 = vsel %vm1571, %v1560, %v1562
      %v1584 = vsel %vm1571, %v1562, %v1564
      %v1585 = vsel %vm1571, %v1564, %v1566
      %v1586 = vsel %vm1571, %v1566, %v1568
      %v1587 = vsel %vm1571, %v1568, %v1570
      %1588 = vrot.lane.b32.xlu0 %v385, 79
      %v1589 = vpop.permute.xlu0 %1588
      %1590 = vrot.lane.b32.xlu0 %v386, 79
      %v1591 = vpop.permute.xlu0 %1590
      %1592 = vrot.lane.b32.xlu0 %v387, 79
      %v1593 = vpop.permute.xlu0 %1592
      %1594 = vrot.lane.b32.xlu0 %v388, 79
      %v1595 = vpop.permute.xlu0 %1594
      %1596 = vrot.lane.b32.xlu0 %v389, 79
      %v1597 = vpop.permute.xlu0 %1596
      %1598 = vrot.lane.b32.xlu0 %v390, 79
      %v1599 = vpop.permute.xlu0 %1598
      %1600 = vrot.lane.b32.xlu0 %v391, 79
      %v1601 = vpop.permute.xlu0 %1600
      %1602 = vrot.lane.b32.xlu0 %v392, 79
      %v1603 = vpop.permute.xlu0 %1602
      %1604 = vrot.lane.b32.xlu0 %v393, 79
      %v1605 = vpop.permute.xlu0 %1604
      %1606 = vrot.lane.b32.xlu0 %v394, 79
      %v1607 = vpop.permute.xlu0 %1606
      %1608 = vrot.lane.b32.xlu0 %v395, 79
      %v1609 = vpop.permute.xlu0 %1608
      %1610 = vrot.lane.b32.xlu0 %v396, 79
      %v1611 = vpop.permute.xlu0 %1610
      %1612 = vrot.lane.b32.xlu0 %v397, 79
      %v1613 = vpop.permute.xlu0 %1612
      %1614 = vrot.lane.b32.xlu0 %v398, 79
      %v1615 = vpop.permute.xlu0 %1614
      %1616 = vrot.lane.b32.xlu0 %v399, 79
      %v1617 = vpop.permute.xlu0 %1616
      %1618 = vrot.lane.b32.xlu0 %v400, 79
      %v1619 = vpop.permute.xlu0 %1618
      %1620 = vrot.lane.b32.xlu0 %v401, 79
      %v1621 = vpop.permute.xlu0 %1620
      %vm1622 = vcmask 646144
      %v1623 = vsel %vm1622, %v1589, %v1591
      %v1624 = vsel %vm1622, %v1591, %v1593
      %v1625 = vsel %vm1622, %v1593, %v1595
      %v1626 = vsel %vm1622, %v1595, %v1597
      %v1627 = vsel %vm1622, %v1597, %v1599
      %v1628 = vsel %vm1622, %v1599, %v1601
      %v1629 = vsel %vm1622, %v1601, %v1603
      %v1630 = vsel %vm1622, %v1603, %v1605
      %v1631 = vsel %vm1622, %v1605, %v1607
      %v1632 = vsel %vm1622, %v1607, %v1609
      %v1633 = vsel %vm1622, %v1609, %v1611
      %v1634 = vsel %vm1622, %v1611, %v1613
      %v1635 = vsel %vm1622, %v1613, %v1615
      %v1636 = vsel %vm1622, %v1615, %v1617
      %v1637 = vsel %vm1622, %v1617, %v1619
      %v1638 = vsel %vm1622, %v1619, %v1621
      %1639 = vrot.lane.b32.xlu0 %v385, 78
      %v1640 = vpop.permute.xlu0 %1639
      %1641 = vrot.lane.b32.xlu0 %v386, 78
      %v1642 = vpop.permute.xlu0 %1641
      %1643 = vrot.lane.b32.xlu0 %v387, 78
      %v1644 = vpop.permute.xlu0 %1643
      %1645 = vrot.lane.b32.xlu0 %v388, 78
      %v1646 = vpop.permute.xlu0 %1645
      %1647 = vrot.lane.b32.xlu0 %v389, 78
      %v1648 = vpop.permute.xlu0 %1647
      %1649 = vrot.lane.b32.xlu0 %v390, 78
      %v1650 = vpop.permute.xlu0 %1649
      %1651 = vrot.lane.b32.xlu0 %v391, 78
      %v1652 = vpop.permute.xlu0 %1651
      %1653 = vrot.lane.b32.xlu0 %v392, 78
      %v1654 = vpop.permute.xlu0 %1653
      %1655 = vrot.lane.b32.xlu0 %v393, 78
      %v1656 = vpop.permute.xlu0 %1655
      %1657 = vrot.lane.b32.xlu0 %v394, 78
      %v1658 = vpop.permute.xlu0 %1657
      %1659 = vrot.lane.b32.xlu0 %v395, 78
      %v1660 = vpop.permute.xlu0 %1659
      %1661 = vrot.lane.b32.xlu0 %v396, 78
      %v1662 = vpop.permute.xlu0 %1661
      %1663 = vrot.lane.b32.xlu0 %v397, 78
      %v1664 = vpop.permute.xlu0 %1663
      %1665 = vrot.lane.b32.xlu0 %v398, 78
      %v1666 = vpop.permute.xlu0 %1665
      %1667 = vrot.lane.b32.xlu0 %v399, 78
      %v1668 = vpop.permute.xlu0 %1667
      %1669 = vrot.lane.b32.xlu0 %v400, 78
      %v1670 = vpop.permute.xlu0 %1669
      %1671 = vrot.lane.b32.xlu0 %v401, 78
      %v1672 = vpop.permute.xlu0 %1671
      %vm1673 = vcmask 637952
      %v1674 = vsel %vm1673, %v1640, %v1642
      %v1675 = vsel %vm1673, %v1642, %v1644
      %v1676 = vsel %vm1673, %v1644, %v1646
      %v1677 = vsel %vm1673, %v1646, %v1648
      %v1678 = vsel %vm1673, %v1648, %v1650
      %v1679 = vsel %vm1673, %v1650, %v1652
      %v1680 = vsel %vm1673, %v1652, %v1654
      %v1681 = vsel %vm1673, %v1654, %v1656
      %v1682 = vsel %vm1673, %v1656, %v1658
      %v1683 = vsel %vm1673, %v1658, %v1660
      %v1684 = vsel %vm1673, %v1660, %v1662
      %v1685 = vsel %vm1673, %v1662, %v1664
      %v1686 = vsel %vm1673, %v1664, %v1666
      %v1687 = vsel %vm1673, %v1666, %v1668
      %v1688 = vsel %vm1673, %v1668, %v1670
      %v1689 = vsel %vm1673, %v1670, %v1672
      %1690 = vrot.lane.b32.xlu0 %v385, 77
      %v1691 = vpop.permute.xlu0 %1690
      %1692 = vrot.lane.b32.xlu0 %v386, 77
      %v1693 = vpop.permute.xlu0 %1692
      %1694 = vrot.lane.b32.xlu0 %v387, 77
      %v1695 = vpop.permute.xlu0 %1694
      %1696 = vrot.lane.b32.xlu0 %v388, 77
      %v1697 = vpop.permute.xlu0 %1696
      %1698 = vrot.lane.b32.xlu0 %v389, 77
      %v1699 = vpop.permute.xlu0 %1698
      %1700 = vrot.lane.b32.xlu0 %v390, 77
      %v1701 = vpop.permute.xlu0 %1700
      %1702 = vrot.lane.b32.xlu0 %v391, 77
      %v1703 = vpop.permute.xlu0 %1702
      %1704 = vrot.lane.b32.xlu0 %v392, 77
      %v1705 = vpop.permute.xlu0 %1704
      %1706 = vrot.lane.b32.xlu0 %v393, 77
      %v1707 = vpop.permute.xlu0 %1706
      %1708 = vrot.lane.b32.xlu0 %v394, 77
      %v1709 = vpop.permute.xlu0 %1708
      %1710 = vrot.lane.b32.xlu0 %v395, 77
      %v1711 = vpop.permute.xlu0 %1710
      %1712 = vrot.lane.b32.xlu0 %v396, 77
      %v1713 = vpop.permute.xlu0 %1712
      %1714 = vrot.lane.b32.xlu0 %v397, 77
      %v1715 = vpop.permute.xlu0 %1714
      %1716 = vrot.lane.b32.xlu0 %v398, 77
      %v1717 = vpop.permute.xlu0 %1716
      %1718 = vrot.lane.b32.xlu0 %v399, 77
      %v1719 = vpop.permute.xlu0 %1718
      %1720 = vrot.lane.b32.xlu0 %v400, 77
      %v1721 = vpop.permute.xlu0 %1720
      %1722 = vrot.lane.b32.xlu0 %v401, 77
      %v1723 = vpop.permute.xlu0 %1722
      %vm1724 = vcmask 629760
      %v1725 = vsel %vm1724, %v1691, %v1693
      %v1726 = vsel %vm1724, %v1693, %v1695
      %v1727 = vsel %vm1724, %v1695, %v1697
      %v1728 = vsel %vm1724, %v1697, %v1699
      %v1729 = vsel %vm1724, %v1699, %v1701
      %v1730 = vsel %vm1724, %v1701, %v1703
      %v1731 = vsel %vm1724, %v1703, %v1705
      %v1732 = vsel %vm1724, %v1705, %v1707
      %v1733 = vsel %vm1724, %v1707, %v1709
      %v1734 = vsel %vm1724, %v1709, %v1711
      %v1735 = vsel %vm1724, %v1711, %v1713
      %v1736 = vsel %vm1724, %v1713, %v1715
      %v1737 = vsel %vm1724, %v1715, %v1717
      %v1738 = vsel %vm1724, %v1717, %v1719
      %v1739 = vsel %vm1724, %v1719, %v1721
      %v1740 = vsel %vm1724, %v1721, %v1723
      %1741 = vrot.lane.b32.xlu0 %v385, 61
      %v1742 = vpop.permute.xlu0 %1741
      %1743 = vrot.lane.b32.xlu0 %v386, 61
      %v1744 = vpop.permute.xlu0 %1743
      %1745 = vrot.lane.b32.xlu0 %v387, 61
      %v1746 = vpop.permute.xlu0 %1745
      %1747 = vrot.lane.b32.xlu0 %v388, 61
      %v1748 = vpop.permute.xlu0 %1747
      %1749 = vrot.lane.b32.xlu0 %v389, 61
      %v1750 = vpop.permute.xlu0 %1749
      %1751 = vrot.lane.b32.xlu0 %v390, 61
      %v1752 = vpop.permute.xlu0 %1751
      %1753 = vrot.lane.b32.xlu0 %v391, 61
      %v1754 = vpop.permute.xlu0 %1753
      %1755 = vrot.lane.b32.xlu0 %v392, 61
      %v1756 = vpop.permute.xlu0 %1755
      %1757 = vrot.lane.b32.xlu0 %v393, 61
      %v1758 = vpop.permute.xlu0 %1757
      %1759 = vrot.lane.b32.xlu0 %v394, 61
      %v1760 = vpop.permute.xlu0 %1759
      %1761 = vrot.lane.b32.xlu0 %v395, 61
      %v1762 = vpop.permute.xlu0 %1761
      %1763 = vrot.lane.b32.xlu0 %v396, 61
      %v1764 = vpop.permute.xlu0 %1763
      %1765 = vrot.lane.b32.xlu0 %v397, 61
      %v1766 = vpop.permute.xlu0 %1765
      %1767 = vrot.lane.b32.xlu0 %v398, 61
      %v1768 = vpop.permute.xlu0 %1767
      %1769 = vrot.lane.b32.xlu0 %v399, 61
      %v1770 = vpop.permute.xlu0 %1769
      %1771 = vrot.lane.b32.xlu0 %v400, 61
      %v1772 = vpop.permute.xlu0 %1771
      %1773 = vrot.lane.b32.xlu0 %v401, 61
      %v1774 = vpop.permute.xlu0 %1773
      %vm1775 = vcmask 498688
      %v1776 = vsel %vm1775, %v1742, %v1744
      %v1777 = vsel %vm1775, %v1744, %v1746
      %v1778 = vsel %vm1775, %v1746, %v1748
      %v1779 = vsel %vm1775, %v1748, %v1750
      %v1780 = vsel %vm1775, %v1750, %v1752
      %v1781 = vsel %vm1775, %v1752, %v1754
      %v1782 = vsel %vm1775, %v1754, %v1756
      %v1783 = vsel %vm1775, %v1756, %v1758
      %v1784 = vsel %vm1775, %v1758, %v1760
      %v1785 = vsel %vm1775, %v1760, %v1762
      %v1786 = vsel %vm1775, %v1762, %v1764
      %v1787 = vsel %vm1775, %v1764, %v1766
      %v1788 = vsel %vm1775, %v1766, %v1768
      %v1789 = vsel %vm1775, %v1768, %v1770
      %v1790 = vsel %vm1775, %v1770, %v1772
      %v1791 = vsel %vm1775, %v1772, %v1774
      %1792 = vrot.lane.b32.xlu0 %v399, 60
      %v1793 = vpop.permute.xlu0 %1792
      %1794 = vrot.lane.b32.xlu0 %v400, 60
      %v1795 = vpop.permute.xlu0 %1794
      %1796 = vrot.lane.b32.xlu0 %v401, 60
      %v1797 = vpop.permute.xlu0 %1796
      %v1798 = vsel %vm991, %v990, %v1793
      %v1799 = vsel %vm991, %v1793, %v1795
      %v1800 = vsel %vm991, %v1795, %v1797
      %1801 = vrot.lane.b32.xlu0 %v399, 59
      %v1802 = vpop.permute.xlu0 %1801
      %1803 = vrot.lane.b32.xlu0 %v400, 59
      %v1804 = vpop.permute.xlu0 %1803
      %1805 = vrot.lane.b32.xlu0 %v401, 59
      %v1806 = vpop.permute.xlu0 %1805
      %v1807 = vsel %vm1058, %v1057, %v1802
      %v1808 = vsel %vm1058, %v1802, %v1804
      %v1809 = vsel %vm1058, %v1804, %v1806
      %1810 = vrot.lane.b32.xlu0 %v382, 23
      %v1811 = vpop.permute.xlu0 %1810
      %1812 = vrot.lane.b32.xlu0 %v383, 23
      %v1813 = vpop.permute.xlu0 %1812
      %1814 = vrot.lane.b32.xlu0 %v384, 23
      %v1815 = vpop.permute.xlu0 %1814
      %1816 = vrot.lane.b32.xlu0 %v385, 23
      %v1817 = vpop.permute.xlu0 %1816
      %1818 = vrot.lane.b32.xlu0 %v386, 23
      %v1819 = vpop.permute.xlu0 %1818
      %1820 = vrot.lane.b32.xlu0 %v387, 23
      %v1821 = vpop.permute.xlu0 %1820
      %1822 = vrot.lane.b32.xlu0 %v388, 23
      %v1823 = vpop.permute.xlu0 %1822
      %1824 = vrot.lane.b32.xlu0 %v389, 23
      %v1825 = vpop.permute.xlu0 %1824
      %1826 = vrot.lane.b32.xlu0 %v390, 23
      %v1827 = vpop.permute.xlu0 %1826
      %1828 = vrot.lane.b32.xlu0 %v391, 23
      %v1829 = vpop.permute.xlu0 %1828
      %1830 = vrot.lane.b32.xlu0 %v392, 23
      %v1831 = vpop.permute.xlu0 %1830
      %1832 = vrot.lane.b32.xlu0 %v393, 23
      %v1833 = vpop.permute.xlu0 %1832
      %1834 = vrot.lane.b32.xlu0 %v394, 23
      %v1835 = vpop.permute.xlu0 %1834
      %1836 = vrot.lane.b32.xlu0 %v395, 23
      %v1837 = vpop.permute.xlu0 %1836
      %1838 = vrot.lane.b32.xlu0 %v396, 23
      %v1839 = vpop.permute.xlu0 %1838
      %1840 = vrot.lane.b32.xlu0 %v397, 23
      %v1841 = vpop.permute.xlu0 %1840
      %1842 = vrot.lane.b32.xlu0 %v398, 23
      %v1843 = vpop.permute.xlu0 %1842
      %1844 = vrot.lane.b32.xlu0 %v456, 23
      %v1845 = vpop.permute.xlu0 %1844
      %1846 = vrot.lane.b32.xlu0 %v457, 23
      %v1847 = vpop.permute.xlu0 %1846
      %1848 = vrot.lane.b32.xlu0 %v458, 23
      %v1849 = vpop.permute.xlu0 %1848
      %1850 = vrot.lane.b32.xlu0 %v459, 23
      %v1851 = vpop.permute.xlu0 %1850
      %1852 = vrot.lane.b32.xlu0 %v460, 23
      %v1853 = vpop.permute.xlu0 %1852
      %1854 = vrot.lane.b32.xlu0 %v461, 23
      %v1855 = vpop.permute.xlu0 %1854
      %1856 = vrot.lane.b32.xlu0 %v462, 23
      %v1857 = vpop.permute.xlu0 %1856
      %1858 = vrot.lane.b32.xlu0 %v463, 23
      %v1859 = vpop.permute.xlu0 %1858
      %1860 = vrot.lane.b32.xlu0 %v464, 23
      %v1861 = vpop.permute.xlu0 %1860
      %1862 = vrot.lane.b32.xlu0 %v465, 23
      %v1863 = vpop.permute.xlu0 %1862
      %1864 = vrot.lane.b32.xlu0 %v466, 23
      %v1865 = vpop.permute.xlu0 %1864
      %1866 = vrot.lane.b32.xlu0 %v467, 23
      %v1867 = vpop.permute.xlu0 %1866
      %1868 = vrot.lane.b32.xlu0 %v468, 23
      %v1869 = vpop.permute.xlu0 %1868
      %1870 = vrot.lane.b32.xlu0 %v469, 23
      %v1871 = vpop.permute.xlu0 %1870
      %1872 = vrot.lane.b32.xlu0 %v1430, 23
      %v1873 = vpop.permute.xlu0 %1872
      %1874 = vrot.lane.b32.xlu0 %v1431, 23
      %v1875 = vpop.permute.xlu0 %1874
      %1876 = vrot.lane.b32.xlu0 %v1429, 23
      %v1877 = vpop.permute.xlu0 %1876
      %1878 = vrot.lane.b32.xlu0 %v1436, 23
      %v1879 = vpop.permute.xlu0 %1878
      %1880 = vrot.lane.b32.xlu0 %v1470, 23
      %v1881 = vpop.permute.xlu0 %1880
      %1882 = vrot.lane.b32.xlu0 %v1471, 23
      %v1883 = vpop.permute.xlu0 %1882
      %1884 = vrot.lane.b32.xlu0 %v1472, 23
      %v1885 = vpop.permute.xlu0 %1884
      %1886 = vrot.lane.b32.xlu0 %v1473, 23
      %v1887 = vpop.permute.xlu0 %1886
      %1888 = vrot.lane.b32.xlu0 %v1474, 23
      %v1889 = vpop.permute.xlu0 %1888
      %1890 = vrot.lane.b32.xlu0 %v1475, 23
      %v1891 = vpop.permute.xlu0 %1890
      %1892 = vrot.lane.b32.xlu0 %v1476, 23
      %v1893 = vpop.permute.xlu0 %1892
      %1894 = vrot.lane.b32.xlu0 %v1477, 23
      %v1895 = vpop.permute.xlu0 %1894
      %1896 = vrot.lane.b32.xlu0 %v1478, 23
      %v1897 = vpop.permute.xlu0 %1896
      %1898 = vrot.lane.b32.xlu0 %v1479, 23
      %v1899 = vpop.permute.xlu0 %1898
      %1900 = vrot.lane.b32.xlu0 %v1480, 23
      %v1901 = vpop.permute.xlu0 %1900
      %1902 = vrot.lane.b32.xlu0 %v1481, 23
      %v1903 = vpop.permute.xlu0 %1902
      %1904 = vrot.lane.b32.xlu0 %v1482, 23
      %v1905 = vpop.permute.xlu0 %1904
      %1906 = vrot.lane.b32.xlu0 %v1483, 23
      %v1907 = vpop.permute.xlu0 %1906
      %1908 = vrot.lane.b32.xlu0 %v1484, 23
      %v1909 = vpop.permute.xlu0 %1908
      %1910 = vrot.lane.b32.xlu0 %v1485, 23
      %v1911 = vpop.permute.xlu0 %1910
      %1912 = vrot.lane.b32.xlu0 %v1487, 23
      %v1913 = vpop.permute.xlu0 %1912
      %1914 = vrot.lane.b32.xlu0 %v1521, 23
      %v1915 = vpop.permute.xlu0 %1914
      %1916 = vrot.lane.b32.xlu0 %v1522, 23
      %v1917 = vpop.permute.xlu0 %1916
      %1918 = vrot.lane.b32.xlu0 %v1523, 23
      %v1919 = vpop.permute.xlu0 %1918
      %1920 = vrot.lane.b32.xlu0 %v1524, 23
      %v1921 = vpop.permute.xlu0 %1920
      %1922 = vrot.lane.b32.xlu0 %v1525, 23
      %v1923 = vpop.permute.xlu0 %1922
      %1924 = vrot.lane.b32.xlu0 %v1526, 23
      %v1925 = vpop.permute.xlu0 %1924
      %1926 = vrot.lane.b32.xlu0 %v1527, 23
      %v1927 = vpop.permute.xlu0 %1926
      %1928 = vrot.lane.b32.xlu0 %v1528, 23
      %v1929 = vpop.permute.xlu0 %1928
      %1930 = vrot.lane.b32.xlu0 %v1529, 23
      %v1931 = vpop.permute.xlu0 %1930
      %1932 = vrot.lane.b32.xlu0 %v1530, 23
      %v1933 = vpop.permute.xlu0 %1932
      %1934 = vrot.lane.b32.xlu0 %v1531, 23
      %v1935 = vpop.permute.xlu0 %1934
      %1936 = vrot.lane.b32.xlu0 %v1532, 23
      %v1937 = vpop.permute.xlu0 %1936
      %1938 = vrot.lane.b32.xlu0 %v1533, 23
      %v1939 = vpop.permute.xlu0 %1938
      %1940 = vrot.lane.b32.xlu0 %v1534, 23
      %v1941 = vpop.permute.xlu0 %1940
      %1942 = vrot.lane.b32.xlu0 %v1535, 23
      %v1943 = vpop.permute.xlu0 %1942
      %1944 = vrot.lane.b32.xlu0 %v1536, 23
      %v1945 = vpop.permute.xlu0 %1944
      %1946 = vrot.lane.b32.xlu0 %v1538, 23
      %v1947 = vpop.permute.xlu0 %1946
      %1948 = vrot.lane.b32.xlu0 %v1572, 23
      %v1949 = vpop.permute.xlu0 %1948
      %1950 = vrot.lane.b32.xlu0 %v1573, 23
      %v1951 = vpop.permute.xlu0 %1950
      %1952 = vrot.lane.b32.xlu0 %v1574, 23
      %v1953 = vpop.permute.xlu0 %1952
      %1954 = vrot.lane.b32.xlu0 %v1575, 23
      %v1955 = vpop.permute.xlu0 %1954
      %1956 = vrot.lane.b32.xlu0 %v1576, 23
      %v1957 = vpop.permute.xlu0 %1956
      %1958 = vrot.lane.b32.xlu0 %v1577, 23
      %v1959 = vpop.permute.xlu0 %1958
      %1960 = vrot.lane.b32.xlu0 %v1578, 23
      %v1961 = vpop.permute.xlu0 %1960
      %1962 = vrot.lane.b32.xlu0 %v1579, 23
      %v1963 = vpop.permute.xlu0 %1962
      %1964 = vrot.lane.b32.xlu0 %v1580, 23
      %v1965 = vpop.permute.xlu0 %1964
      %1966 = vrot.lane.b32.xlu0 %v1581, 23
      %v1967 = vpop.permute.xlu0 %1966
      %1968 = vrot.lane.b32.xlu0 %v1582, 23
      %v1969 = vpop.permute.xlu0 %1968
      %1970 = vrot.lane.b32.xlu0 %v1583, 23
      %v1971 = vpop.permute.xlu0 %1970
      %1972 = vrot.lane.b32.xlu0 %v1584, 23
      %v1973 = vpop.permute.xlu0 %1972
      %1974 = vrot.lane.b32.xlu0 %v1585, 23
      %v1975 = vpop.permute.xlu0 %1974
      %1976 = vrot.lane.b32.xlu0 %v1586, 23
      %v1977 = vpop.permute.xlu0 %1976
      %1978 = vrot.lane.b32.xlu0 %v1587, 23
      %v1979 = vpop.permute.xlu0 %1978
      %1980 = vrot.lane.b32.xlu0 %v1589, 23
      %v1981 = vpop.permute.xlu0 %1980
      %1982 = vrot.lane.b32.xlu0 %v1623, 23
      %v1983 = vpop.permute.xlu0 %1982
      %1984 = vrot.lane.b32.xlu0 %v1624, 23
      %v1985 = vpop.permute.xlu0 %1984
      %1986 = vrot.lane.b32.xlu0 %v1625, 23
      %v1987 = vpop.permute.xlu0 %1986
      %1988 = vrot.lane.b32.xlu0 %v1626, 23
      %v1989 = vpop.permute.xlu0 %1988
      %1990 = vrot.lane.b32.xlu0 %v1627, 23
      %v1991 = vpop.permute.xlu0 %1990
      %1992 = vrot.lane.b32.xlu0 %v1628, 23
      %v1993 = vpop.permute.xlu0 %1992
      %1994 = vrot.lane.b32.xlu0 %v1629, 23
      %v1995 = vpop.permute.xlu0 %1994
      %1996 = vrot.lane.b32.xlu0 %v1630, 23
      %v1997 = vpop.permute.xlu0 %1996
      %1998 = vrot.lane.b32.xlu0 %v1631, 23
      %v1999 = vpop.permute.xlu0 %1998
      %2000 = vrot.lane.b32.xlu0 %v1632, 23
      %v2001 = vpop.permute.xlu0 %2000
      %2002 = vrot.lane.b32.xlu0 %v1633, 23
      %v2003 = vpop.permute.xlu0 %2002
      %2004 = vrot.lane.b32.xlu0 %v1634, 23
      %v2005 = vpop.permute.xlu0 %2004
      %2006 = vrot.lane.b32.xlu0 %v1635, 23
      %v2007 = vpop.permute.xlu0 %2006
      %2008 = vrot.lane.b32.xlu0 %v1636, 23
      %v2009 = vpop.permute.xlu0 %2008
      %2010 = vrot.lane.b32.xlu0 %v1637, 23
      %v2011 = vpop.permute.xlu0 %2010
      %2012 = vrot.lane.b32.xlu0 %v1638, 23
      %v2013 = vpop.permute.xlu0 %2012
      %2014 = vrot.lane.b32.xlu0 %v1640, 23
      %v2015 = vpop.permute.xlu0 %2014
      %2016 = vrot.lane.b32.xlu0 %v1674, 23
      %v2017 = vpop.permute.xlu0 %2016
      %2018 = vrot.lane.b32.xlu0 %v1675, 23
      %v2019 = vpop.permute.xlu0 %2018
      %2020 = vrot.lane.b32.xlu0 %v1676, 23
      %v2021 = vpop.permute.xlu0 %2020
      %2022 = vrot.lane.b32.xlu0 %v1677, 23
      %v2023 = vpop.permute.xlu0 %2022
      %2024 = vrot.lane.b32.xlu0 %v1678, 23
      %v2025 = vpop.permute.xlu0 %2024
      %2026 = vrot.lane.b32.xlu0 %v1679, 23
      %v2027 = vpop.permute.xlu0 %2026
      %2028 = vrot.lane.b32.xlu0 %v1680, 23
      %v2029 = vpop.permute.xlu0 %2028
      %2030 = vrot.lane.b32.xlu0 %v1681, 23
      %v2031 = vpop.permute.xlu0 %2030
      %2032 = vrot.lane.b32.xlu0 %v1682, 23
      %v2033 = vpop.permute.xlu0 %2032
      %2034 = vrot.lane.b32.xlu0 %v1683, 23
      %v2035 = vpop.permute.xlu0 %2034
      %2036 = vrot.lane.b32.xlu0 %v1684, 23
      %v2037 = vpop.permute.xlu0 %2036
      %2038 = vrot.lane.b32.xlu0 %v1685, 23
      %v2039 = vpop.permute.xlu0 %2038
      %2040 = vrot.lane.b32.xlu0 %v1686, 23
      %v2041 = vpop.permute.xlu0 %2040
      %2042 = vrot.lane.b32.xlu0 %v1687, 23
      %v2043 = vpop.permute.xlu0 %2042
      %2044 = vrot.lane.b32.xlu0 %v1688, 23
      %v2045 = vpop.permute.xlu0 %2044
      %2046 = vrot.lane.b32.xlu0 %v1689, 23
      %v2047 = vpop.permute.xlu0 %2046
      %2048 = vrot.lane.b32.xlu0 %v1691, 23
      %v2049 = vpop.permute.xlu0 %2048
      %2050 = vrot.lane.b32.xlu0 %v1725, 23
      %v2051 = vpop.permute.xlu0 %2050
      %2052 = vrot.lane.b32.xlu0 %v1726, 23
      %v2053 = vpop.permute.xlu0 %2052
      %2054 = vrot.lane.b32.xlu0 %v1727, 23
      %v2055 = vpop.permute.xlu0 %2054
      %2056 = vrot.lane.b32.xlu0 %v1728, 23
      %v2057 = vpop.permute.xlu0 %2056
      %2058 = vrot.lane.b32.xlu0 %v1729, 23
      %v2059 = vpop.permute.xlu0 %2058
      %2060 = vrot.lane.b32.xlu0 %v1730, 23
      %v2061 = vpop.permute.xlu0 %2060
      %2062 = vrot.lane.b32.xlu0 %v1731, 23
      %v2063 = vpop.permute.xlu0 %2062
      %2064 = vrot.lane.b32.xlu0 %v1732, 23
      %v2065 = vpop.permute.xlu0 %2064
      %2066 = vrot.lane.b32.xlu0 %v1733, 23
      %v2067 = vpop.permute.xlu0 %2066
      %2068 = vrot.lane.b32.xlu0 %v1734, 23
      %v2069 = vpop.permute.xlu0 %2068
      %2070 = vrot.lane.b32.xlu0 %v1735, 23
      %v2071 = vpop.permute.xlu0 %2070
      %2072 = vrot.lane.b32.xlu0 %v1736, 23
      %v2073 = vpop.permute.xlu0 %2072
      %2074 = vrot.lane.b32.xlu0 %v1737, 23
      %v2075 = vpop.permute.xlu0 %2074
      %2076 = vrot.lane.b32.xlu0 %v1738, 23
      %v2077 = vpop.permute.xlu0 %2076
      %2078 = vrot.lane.b32.xlu0 %v1739, 23
      %v2079 = vpop.permute.xlu0 %2078
      %2080 = vrot.lane.b32.xlu0 %v1740, 23
      %v2081 = vpop.permute.xlu0 %2080
      %2082 = vrot.lane.b32.xlu0 %v1742, 23
      %v2083 = vpop.permute.xlu0 %2082
      %2084 = vrot.lane.b32.xlu0 %v1776, 23
      %v2085 = vpop.permute.xlu0 %2084
      %2086 = vrot.lane.b32.xlu0 %v1777, 23
      %v2087 = vpop.permute.xlu0 %2086
      %2088 = vrot.lane.b32.xlu0 %v1778, 23
      %v2089 = vpop.permute.xlu0 %2088
      %2090 = vrot.lane.b32.xlu0 %v1779, 23
      %v2091 = vpop.permute.xlu0 %2090
      %2092 = vrot.lane.b32.xlu0 %v1780, 23
      %v2093 = vpop.permute.xlu0 %2092
      %2094 = vrot.lane.b32.xlu0 %v1781, 23
      %v2095 = vpop.permute.xlu0 %2094
      %2096 = vrot.lane.b32.xlu0 %v1782, 23
      %v2097 = vpop.permute.xlu0 %2096
      %2098 = vrot.lane.b32.xlu0 %v1783, 23
      %v2099 = vpop.permute.xlu0 %2098
      %2100 = vrot.lane.b32.xlu0 %v1784, 23
      %v2101 = vpop.permute.xlu0 %2100
      %2102 = vrot.lane.b32.xlu0 %v1785, 23
      %v2103 = vpop.permute.xlu0 %2102
      %2104 = vrot.lane.b32.xlu0 %v1786, 23
      %v2105 = vpop.permute.xlu0 %2104
      %2106 = vrot.lane.b32.xlu0 %v1787, 23
      %v2107 = vpop.permute.xlu0 %2106
      %2108 = vrot.lane.b32.xlu0 %v1788, 23
      %v2109 = vpop.permute.xlu0 %2108
      %2110 = vrot.lane.b32.xlu0 %v1789, 23
      %v2111 = vpop.permute.xlu0 %2110
      %2112 = vrot.lane.b32.xlu0 %v1790, 23
      %v2113 = vpop.permute.xlu0 %2112
      %2114 = vrot.lane.b32.xlu0 %v1791, 23
      %v2115 = vpop.permute.xlu0 %2114
      %2116 = vrot.lane.b32.xlu0 %v964, 23
      %v2117 = vpop.permute.xlu0 %2116
      %2118 = vrot.lane.b32.xlu0 %v995, 23
      %v2119 = vpop.permute.xlu0 %2118
      %2120 = vrot.lane.b32.xlu0 %v996, 23
      %v2121 = vpop.permute.xlu0 %2120
      %2122 = vrot.lane.b32.xlu0 %v997, 23
      %v2123 = vpop.permute.xlu0 %2122
      %2124 = vrot.lane.b32.xlu0 %v998, 23
      %v2125 = vpop.permute.xlu0 %2124
      %2126 = vrot.lane.b32.xlu0 %v999, 23
      %v2127 = vpop.permute.xlu0 %2126
      %2128 = vrot.lane.b32.xlu0 %v1000, 23
      %v2129 = vpop.permute.xlu0 %2128
      %2130 = vrot.lane.b32.xlu0 %v1001, 23
      %v2131 = vpop.permute.xlu0 %2130
      %2132 = vrot.lane.b32.xlu0 %v1002, 23
      %v2133 = vpop.permute.xlu0 %2132
      %2134 = vrot.lane.b32.xlu0 %v1003, 23
      %v2135 = vpop.permute.xlu0 %2134
      %2136 = vrot.lane.b32.xlu0 %v1004, 23
      %v2137 = vpop.permute.xlu0 %2136
      %2138 = vrot.lane.b32.xlu0 %v1005, 23
      %v2139 = vpop.permute.xlu0 %2138
      %2140 = vrot.lane.b32.xlu0 %v1006, 23
      %v2141 = vpop.permute.xlu0 %2140
      %2142 = vrot.lane.b32.xlu0 %v1007, 23
      %v2143 = vpop.permute.xlu0 %2142
      %2144 = vrot.lane.b32.xlu0 %v1798, 23
      %v2145 = vpop.permute.xlu0 %2144
      %2146 = vrot.lane.b32.xlu0 %v1799, 23
      %v2147 = vpop.permute.xlu0 %2146
      %2148 = vrot.lane.b32.xlu0 %v1800, 23
      %v2149 = vpop.permute.xlu0 %2148
      %2150 = vrot.lane.b32.xlu0 %v1031, 23
      %v2151 = vpop.permute.xlu0 %2150
      %2152 = vrot.lane.b32.xlu0 %v1062, 23
      %v2153 = vpop.permute.xlu0 %2152
      %2154 = vrot.lane.b32.xlu0 %v1063, 23
      %v2155 = vpop.permute.xlu0 %2154
      %2156 = vrot.lane.b32.xlu0 %v1064, 23
      %v2157 = vpop.permute.xlu0 %2156
      %2158 = vrot.lane.b32.xlu0 %v1065, 23
      %v2159 = vpop.permute.xlu0 %2158
      %2160 = vrot.lane.b32.xlu0 %v1066, 23
      %v2161 = vpop.permute.xlu0 %2160
      %2162 = vrot.lane.b32.xlu0 %v1067, 23
      %v2163 = vpop.permute.xlu0 %2162
      %2164 = vrot.lane.b32.xlu0 %v1068, 23
      %v2165 = vpop.permute.xlu0 %2164
      %2166 = vrot.lane.b32.xlu0 %v1069, 23
      %v2167 = vpop.permute.xlu0 %2166
      %2168 = vrot.lane.b32.xlu0 %v1070, 23
      %v2169 = vpop.permute.xlu0 %2168
      %2170 = vrot.lane.b32.xlu0 %v1071, 23
      %v2171 = vpop.permute.xlu0 %2170
      %2172 = vrot.lane.b32.xlu0 %v1072, 23
      %v2173 = vpop.permute.xlu0 %2172
      %2174 = vrot.lane.b32.xlu0 %v1073, 23
      %v2175 = vpop.permute.xlu0 %2174
      %2176 = vrot.lane.b32.xlu0 %v1074, 23
      %v2177 = vpop.permute.xlu0 %2176
      %2178 = vrot.lane.b32.xlu0 %v1807, 23
      %v2179 = vpop.permute.xlu0 %2178
      %2180 = vrot.lane.b32.xlu0 %v1808, 23
      %v2181 = vpop.permute.xlu0 %2180
      %2182 = vrot.lane.b32.xlu0 %v1809, 23
      %v2183 = vpop.permute.xlu0 %2182
      %vm2184 = vcmask 187392
      %v2185 = vsel %vm2184, %v1811, %v1813
      %v2186 = vsel %vm2184, %v1813, %v1815
      %v2187 = vsel %vm2184, %v1815, %v1817
      %v2188 = vsel %vm2184, %v1817, %v1819
      %v2189 = vsel %vm2184, %v1819, %v1821
      %v2190 = vsel %vm2184, %v1821, %v1823
      %v2191 = vsel %vm2184, %v1823, %v1825
      %v2192 = vsel %vm2184, %v1825, %v1827
      %v2193 = vsel %vm2184, %v1827, %v1829
      %v2194 = vsel %vm2184, %v1829, %v1831
      %v2195 = vsel %vm2184, %v1831, %v1833
      %v2196 = vsel %vm2184, %v1833, %v1835
      %v2197 = vsel %vm2184, %v1835, %v1837
      %v2198 = vsel %vm2184, %v1837, %v1839
      %v2199 = vsel %vm2184, %v1839, %v1841
      %v2200 = vsel %vm2184, %v1841, %v1843
      %v2201 = vsel %vm2184, %v1845, %v1847
      %v2202 = vsel %vm2184, %v1847, %v1849
      %v2203 = vsel %vm2184, %v1849, %v1851
      %v2204 = vsel %vm2184, %v1851, %v1853
      %v2205 = vsel %vm2184, %v1853, %v1855
      %v2206 = vsel %vm2184, %v1855, %v1857
      %v2207 = vsel %vm2184, %v1857, %v1859
      %v2208 = vsel %vm2184, %v1859, %v1861
      %v2209 = vsel %vm2184, %v1861, %v1863
      %v2210 = vsel %vm2184, %v1863, %v1865
      %v2211 = vsel %vm2184, %v1865, %v1867
      %v2212 = vsel %vm2184, %v1867, %v1869
      %v2213 = vsel %vm2184, %v1869, %v1871
      %v2214 = vsel %vm2184, %v1871, %v1873
      %v2215 = vsel %vm2184, %v1873, %v1875
      %v2216 = vsel %vm2184, %v1875, %v1877
      %v2217 = vsel %vm2184, %v1879, %v1881
      %v2218 = vsel %vm2184, %v1881, %v1883
      %v2219 = vsel %vm2184, %v1883, %v1885
      %v2220 = vsel %vm2184, %v1885, %v1887
      %v2221 = vsel %vm2184, %v1887, %v1889
      %v2222 = vsel %vm2184, %v1889, %v1891
      %v2223 = vsel %vm2184, %v1891, %v1893
      %v2224 = vsel %vm2184, %v1893, %v1895
      %v2225 = vsel %vm2184, %v1895, %v1897
      %v2226 = vsel %vm2184, %v1897, %v1899
      %v2227 = vsel %vm2184, %v1899, %v1901
      %v2228 = vsel %vm2184, %v1901, %v1903
      %v2229 = vsel %vm2184, %v1903, %v1905
      %v2230 = vsel %vm2184, %v1905, %v1907
      %v2231 = vsel %vm2184, %v1907, %v1909
      %v2232 = vsel %vm2184, %v1909, %v1911
      %v2233 = vsel %vm2184, %v1913, %v1915
      %v2234 = vsel %vm2184, %v1915, %v1917
      %v2235 = vsel %vm2184, %v1917, %v1919
      %v2236 = vsel %vm2184, %v1919, %v1921
      %v2237 = vsel %vm2184, %v1921, %v1923
      %v2238 = vsel %vm2184, %v1923, %v1925
      %v2239 = vsel %vm2184, %v1925, %v1927
      %v2240 = vsel %vm2184, %v1927, %v1929
      %v2241 = vsel %vm2184, %v1929, %v1931
      %v2242 = vsel %vm2184, %v1931, %v1933
      %v2243 = vsel %vm2184, %v1933, %v1935
      %v2244 = vsel %vm2184, %v1935, %v1937
      %v2245 = vsel %vm2184, %v1937, %v1939
      %v2246 = vsel %vm2184, %v1939, %v1941
      %v2247 = vsel %vm2184, %v1941, %v1943
      %v2248 = vsel %vm2184, %v1943, %v1945
      %v2249 = vsel %vm2184, %v1947, %v1949
      %v2250 = vsel %vm2184, %v1949, %v1951
      %v2251 = vsel %vm2184, %v1951, %v1953
      %v2252 = vsel %vm2184, %v1953, %v1955
      %v2253 = vsel %vm2184, %v1955, %v1957
      %v2254 = vsel %vm2184, %v1957, %v1959
      %v2255 = vsel %vm2184, %v1959, %v1961
      %v2256 = vsel %vm2184, %v1961, %v1963
      %v2257 = vsel %vm2184, %v1963, %v1965
      %v2258 = vsel %vm2184, %v1965, %v1967
      %v2259 = vsel %vm2184, %v1967, %v1969
      %v2260 = vsel %vm2184, %v1969, %v1971
      %v2261 = vsel %vm2184, %v1971, %v1973
      %v2262 = vsel %vm2184, %v1973, %v1975
      %v2263 = vsel %vm2184, %v1975, %v1977
      %v2264 = vsel %vm2184, %v1977, %v1979
      %v2265 = vsel %vm2184, %v1981, %v1983
      %v2266 = vsel %vm2184, %v1983, %v1985
      %v2267 = vsel %vm2184, %v1985, %v1987
      %v2268 = vsel %vm2184, %v1987, %v1989
      %v2269 = vsel %vm2184, %v1989, %v1991
      %v2270 = vsel %vm2184, %v1991, %v1993
      %v2271 = vsel %vm2184, %v1993, %v1995
      %v2272 = vsel %vm2184, %v1995, %v1997
      %v2273 = vsel %vm2184, %v1997, %v1999
      %v2274 = vsel %vm2184, %v1999, %v2001
      %v2275 = vsel %vm2184, %v2001, %v2003
      %v2276 = vsel %vm2184, %v2003, %v2005
      %v2277 = vsel %vm2184, %v2005, %v2007
      %v2278 = vsel %vm2184, %v2007, %v2009
      %v2279 = vsel %vm2184, %v2009, %v2011
      %v2280 = vsel %vm2184, %v2011, %v2013
      %v2281 = vsel %vm2184, %v2015, %v2017
      %v2282 = vsel %vm2184, %v2017, %v2019
      %v2283 = vsel %vm2184, %v2019, %v2021
      %v2284 = vsel %vm2184, %v2021, %v2023
      %v2285 = vsel %vm2184, %v2023, %v2025
      %v2286 = vsel %vm2184, %v2025, %v2027
      %v2287 = vsel %vm2184, %v2027, %v2029
      %v2288 = vsel %vm2184, %v2029, %v2031
      %v2289 = vsel %vm2184, %v2031, %v2033
      %v2290 = vsel %vm2184, %v2033, %v2035
      %v2291 = vsel %vm2184, %v2035, %v2037
      %v2292 = vsel %vm2184, %v2037, %v2039
      %v2293 = vsel %vm2184, %v2039, %v2041
      %v2294 = vsel %vm2184, %v2041, %v2043
      %v2295 = vsel %vm2184, %v2043, %v2045
      %v2296 = vsel %vm2184, %v2045, %v2047
      %v2297 = vsel %vm2184, %v2049, %v2051
      %v2298 = vsel %vm2184, %v2051, %v2053
      %v2299 = vsel %vm2184, %v2053, %v2055
      %v2300 = vsel %vm2184, %v2055, %v2057
      %v2301 = vsel %vm2184, %v2057, %v2059
      %v2302 = vsel %vm2184, %v2059, %v2061
      %v2303 = vsel %vm2184, %v2061, %v2063
      %v2304 = vsel %vm2184, %v2063, %v2065
      %v2305 = vsel %vm2184, %v2065, %v2067
      %v2306 = vsel %vm2184, %v2067, %v2069
      %v2307 = vsel %vm2184, %v2069, %v2071
      %v2308 = vsel %vm2184, %v2071, %v2073
      %v2309 = vsel %vm2184, %v2073, %v2075
      %v2310 = vsel %vm2184, %v2075, %v2077
      %v2311 = vsel %vm2184, %v2077, %v2079
      %v2312 = vsel %vm2184, %v2079, %v2081
      %v2313 = vsel %vm2184, %v2083, %v2085
      %v2314 = vsel %vm2184, %v2085, %v2087
      %v2315 = vsel %vm2184, %v2087, %v2089
      %v2316 = vsel %vm2184, %v2089, %v2091
      %v2317 = vsel %vm2184, %v2091, %v2093
      %v2318 = vsel %vm2184, %v2093, %v2095
      %v2319 = vsel %vm2184, %v2095, %v2097
      %v2320 = vsel %vm2184, %v2097, %v2099
      %v2321 = vsel %vm2184, %v2099, %v2101
      %v2322 = vsel %vm2184, %v2101, %v2103
      %v2323 = vsel %vm2184, %v2103, %v2105
      %v2324 = vsel %vm2184, %v2105, %v2107
      %v2325 = vsel %vm2184, %v2107, %v2109
      %v2326 = vsel %vm2184, %v2109, %v2111
      %v2327 = vsel %vm2184, %v2111, %v2113
      %v2328 = vsel %vm2184, %v2113, %v2115
      %v2329 = vsel %vm2184, %v2117, %v2119
      %v2330 = vsel %vm2184, %v2119, %v2121
      %v2331 = vsel %vm2184, %v2121, %v2123
      %v2332 = vsel %vm2184, %v2123, %v2125
      %v2333 = vsel %vm2184, %v2125, %v2127
      %v2334 = vsel %vm2184, %v2127, %v2129
      %v2335 = vsel %vm2184, %v2129, %v2131
      %v2336 = vsel %vm2184, %v2131, %v2133
      %v2337 = vsel %vm2184, %v2133, %v2135
      %v2338 = vsel %vm2184, %v2135, %v2137
      %v2339 = vsel %vm2184, %v2137, %v2139
      %v2340 = vsel %vm2184, %v2139, %v2141
      %v2341 = vsel %vm2184, %v2141, %v2143
      %v2342 = vsel %vm2184, %v2143, %v2145
      %v2343 = vsel %vm2184, %v2145, %v2147
      %v2344 = vsel %vm2184, %v2147, %v2149
      %v2345 = vsel %vm2184, %v2151, %v2153
      %v2346 = vsel %vm2184, %v2153, %v2155
      %v2347 = vsel %vm2184, %v2155, %v2157
      %v2348 = vsel %vm2184, %v2157, %v2159
      %v2349 = vsel %vm2184, %v2159, %v2161
      %v2350 = vsel %vm2184, %v2161, %v2163
      %v2351 = vsel %vm2184, %v2163, %v2165
      %v2352 = vsel %vm2184, %v2165, %v2167
      %v2353 = vsel %vm2184, %v2167, %v2169
      %v2354 = vsel %vm2184, %v2169, %v2171
      %v2355 = vsel %vm2184, %v2171, %v2173
      %v2356 = vsel %vm2184, %v2173, %v2175
      %v2357 = vsel %vm2184, %v2175, %v2177
      %v2358 = vsel %vm2184, %v2177, %v2179
      %v2359 = vsel %vm2184, %v2179, %v2181
      %v2360 = vsel %vm2184, %v2181, %v2183
      %v2537 = vld [vmem:[%s2] sm:$0xff]
      %v2538 = vld [vmem:[%s2 + $0x8] sm:$0xff]
      %vm2539 = vcmask 719872
      %v2541 = vsel %vm2539, %v2538, 0
      %2543 = vmatprep.subr.mxu0 %v381
      %2544 = vmatpush1.msra.mxu0 %v380
      %2545 = vmatprep.subr.mxu0 %v455
      %2546 = vmatpush1.msra.mxu0 %v454
      %2547 = vmatprep.subr.mxu0 %v522
      %2548 = vmatpush1.msra.mxu0 %v521
      %2549 = vmatprep.subr.mxu0 %v589
      %2550 = vmatpush1.msra.mxu0 %v588
      %2551 = vmatprep.subr.mxu0 %v656
      %2552 = vmatpush1.msra.mxu0 %v655
      %2553 = vmatprep.subr.mxu0 %v723
      %2554 = vmatpush1.msra.mxu0 %v722
      %2555 = vmatprep.subr.mxu0 %v790
      %2556 = vmatpush1.msra.mxu0 %v789
      %2557 = vmatprep.subr.mxu0 %v857
      %2558 = vmatpush1.msra.mxu0 %v856
      %2559 = vmatprep.subr.mxu0 %v924
      %2560 = vmatpush1.msra.mxu0 %v923
      %2561 = vmatprep.subr.mxu0 %v993
      %2562 = vmatpush1.msra.mxu0 %v992
      %2563 = vmatprep.subr.mxu0 %v1060
      %2564 = vmatpush1.msra.mxu0 %v1059
      %2565 = vmatprep.subr.mxu0 %v1127
      %2566 = vmatpush1.msra.mxu0 %v1126
      %2567 = vmatprep.subr.mxu0 %v1194
      %2568 = vmatpush1.msra.mxu0 %v1193
      %2569 = vmatprep.subr.mxu0 %v1261
      %2570 = vmatpush1.msra.mxu0 %v1260
      %2571 = vmatprep.subr.mxu0 %v1328
      %2572 = vmatpush1.msra.mxu0 %v1327
      %2573 = vmatprep.subr.mxu0 %v1395
      %2574 = vmatpush1.msra.mxu0 %v1394
      %2575 = vmatprep.subr.mxu0 %v2186
      %2576 = vmatpush1.msra.mxu0 %v2185
      %2577 = vmatprep.subr.mxu0 %v2202
      %2578 = vmatpush1.msra.mxu0 %v2201
      %2579 = vmatprep.subr.mxu0 %v2218
      %2580 = vmatpush1.msra.mxu0 %v2217
      %2581 = vmatprep.subr.mxu0 %v2234
      %2582 = vmatpush1.msra.mxu0 %v2233
      %2583 = vmatprep.subr.mxu0 %v2250
      %2584 = vmatpush1.msra.mxu0 %v2249
      %2585 = vmatprep.subr.mxu0 %v2266
      %2586 = vmatpush1.msra.mxu0 %v2265
      %2587 = vmatprep.subr.mxu0 %v2282
      %2588 = vmatpush1.msra.mxu0 %v2281
      %2589 = vmatprep.subr.mxu0 %v2298
      %2590 = vmatpush1.msra.mxu0 %v2297
      %2591 = vmatprep.subr.mxu0 %v2314
      %2592 = vmatpush1.msra.mxu0 %v2313
      %2593 = vmatprep.subr.mxu0 %v2330
      %2594 = vmatpush1.msra.mxu0 %v2329
      %2595 = vmatprep.subr.mxu0 %v2346
      %2596 = vmatpush1.msra.mxu0 %v2345
      %2597 = vmatprep.subr.mxu0 0.0
      %2598 = vmatpush1.msra.mxu0 0.0
      %2599 = vmatprep.subr.mxu0 0.0
      %2600 = vmatpush1.msra.mxu0 0.0
      %2601 = vmatprep.subr.mxu0 0.0
      %2602 = vmatpush1.msra.mxu0 0.0
      %2603 = vmatprep.subr.mxu0 0.0
      %2604 = vmatpush1.msra.mxu0 0.0
      %2605 = vmatprep.subr.mxu0 0.0
      %2606 = vmatpush1.msra.mxu0 0.0
      %2607 = vmatprep.mubr.f32.mxu0 %v2541
      %2608 = vmatmul.mubr.f32.gmra.mrb[0].mxu0 %v2537
      %v2609 = vpop.f32.mrb[0].mxu0
      %v2610 = vadd.f32 0.0, %v2609
      %v2611 = vpop.f32.mrb[0].mxu0
      %v2612 = vadd.f32 0.0, %v2611
      %2613 = vdwg.mxu0
      %2614 = vmatprep.subr.mxu0 %v383
      %2615 = vmatpush1.msra.mxu0 %v382
      %2616 = vmatprep.subr.mxu0 %v457
      %2617 = vmatpush1.msra.mxu0 %v456
      %2618 = vmatprep.subr.mxu0 %v524
      %2619 = vmatpush1.msra.mxu0 %v523
      %2620 = vmatprep.subr.mxu0 %v591
      %2621 = vmatpush1.msra.mxu0 %v590
      %2622 = vmatprep.subr.mxu0 %v658
      %2623 = vmatpush1.msra.mxu0 %v657
      %2624 = vmatprep.subr.mxu0 %v725
      %2625 = vmatpush1.msra.mxu0 %v724
      %2626 = vmatprep.subr.mxu0 %v792
      %2627 = vmatpush1.msra.mxu0 %v791
      %2628 = vmatprep.subr.mxu0 %v859
      %2629 = vmatpush1.msra.mxu0 %v858
      %2630 = vmatprep.subr.mxu0 %v926
      %2631 = vmatpush1.msra.mxu0 %v925
      %2632 = vmatprep.subr.mxu0 %v995
      %2633 = vmatpush1.msra.mxu0 %v994
      %2634 = vmatprep.subr.mxu0 %v1062
      %2635 = vmatpush1.msra.mxu0 %v1061
      %2636 = vmatprep.subr.mxu0 %v1129
      %2637 = vmatpush1.msra.mxu0 %v1128
      %2638 = vmatprep.subr.mxu0 %v1196
      %2639 = vmatpush1.msra.mxu0 %v1195
      %2640 = vmatprep.subr.mxu0 %v1263
      %2641 = vmatpush1.msra.mxu0 %v1262
      %2642 = vmatprep.subr.mxu0 %v1330
      %2643 = vmatpush1.msra.mxu0 %v1329
      %2644 = vmatprep.subr.mxu0 %v1397
      %2645 = vmatpush1.msra.mxu0 %v1396
      %2646 = vmatprep.subr.mxu0 %v2188
      %2647 = vmatpush1.msra.mxu0 %v2187
      %2648 = vmatprep.subr.mxu0 %v2204
      %2649 = vmatpush1.msra.mxu0 %v2203
      %2650 = vmatprep.subr.mxu0 %v2220
      %2651 = vmatpush1.msra.mxu0 %v2219
      %2652 = vmatprep.subr.mxu0 %v2236
      %2653 = vmatpush1.msra.mxu0 %v2235
      %2654 = vmatprep.subr.mxu0 %v2252
      %2655 = vmatpush1.msra.mxu0 %v2251
      %2656 = vmatprep.subr.mxu0 %v2268
      %2657 = vmatpush1.msra.mxu0 %v2267
      %2658 = vmatprep.subr.mxu0 %v2284
      %2659 = vmatpush1.msra.mxu0 %v2283
      %2660 = vmatprep.subr.mxu0 %v2300
      %2661 = vmatpush1.msra.mxu0 %v2299
      %2662 = vmatprep.subr.mxu0 %v2316
      %2663 = vmatpush1.msra.mxu0 %v2315
      %2664 = vmatprep.subr.mxu0 %v2332
      %2665 = vmatpush1.msra.mxu0 %v2331
      %2666 = vmatprep.subr.mxu0 %v2348
      %2667 = vmatpush1.msra.mxu0 %v2347
      %2668 = vmatprep.subr.mxu0 0.0
      %2669 = vmatpush1.msra.mxu0 0.0
      %2670 = vmatprep.subr.mxu0 0.0
      %2671 = vmatpush1.msra.mxu0 0.0
      %2672 = vmatprep.subr.mxu0 0.0
      %2673 = vmatpush1.msra.mxu0 0.0
      %2674 = vmatprep.subr.mxu0 0.0
      %2675 = vmatpush1.msra.mxu0 0.0
      %2676 = vmatprep.subr.mxu0 0.0
      %2677 = vmatpush1.msra.mxu0 0.0
      %2678 = vmatprep.mubr.f32.mxu0 %v2541
      %2679 = vmatmul.mubr.f32.gmra.mrb[0].mxu0 %v2537
      %v2680 = vpop.f32.mrb[0].mxu0
      %v2681 = vadd.f32 0.0, %v2680
      %v2682 = vpop.f32.mrb[0].mxu0
      %v2683 = vadd.f32 0.0, %v2682
      %2684 = vdwg.mxu0
      %2685 = vmatprep.subr.mxu0 %v385
      %2686 = vmatpush1.msra.mxu0 %v384
      %2687 = vmatprep.subr.mxu0 %v459
      %2688 = vmatpush1.msra.mxu0 %v458
      %2689 = vmatprep.subr.mxu0 %v526
      %2690 = vmatpush1.msra.mxu0 %v525
      %2691 = vmatprep.subr.mxu0 %v593
      %2692 = vmatpush1.msra.mxu0 %v592
      %2693 = vmatprep.subr.mxu0 %v660
      %2694 = vmatpush1.msra.mxu0 %v659
      %2695 = vmatprep.subr.mxu0 %v727
      %2696 = vmatpush1.msra.mxu0 %v726
      %2697 = vmatprep.subr.mxu0 %v794
      %2698 = vmatpush1.msra.mxu0 %v793
      %2699 = vmatprep.subr.mxu0 %v861
      %2700 = vmatpush1.msra.mxu0 %v860
      %2701 = vmatprep.subr.mxu0 %v928
      %2702 = vmatpush1.msra.mxu0 %v927
      %2703 = vmatprep.subr.mxu0 %v997
      %2704 = vmatpush1.msra.mxu0 %v996
      %2705 = vmatprep.subr.mxu0 %v1064
      %2706 = vmatpush1.msra.mxu0 %v1063
      %2707 = vmatprep.subr.mxu0 %v1131
      %2708 = vmatpush1.msra.mxu0 %v1130
      %2709 = vmatprep.subr.mxu0 %v1198
      %2710 = vmatpush1.msra.mxu0 %v1197
      %2711 = vmatprep.subr.mxu0 %v1265
      %2712 = vmatpush1.msra.mxu0 %v1264
      %2713 = vmatprep.subr.mxu0 %v1332
      %2714 = vmatpush1.msra.mxu0 %v1331
      %2715 = vmatprep.subr.mxu0 %v1399
      %2716 = vmatpush1.msra.mxu0 %v1398
      %2717 = vmatprep.subr.mxu0 %v2190
      %2718 = vmatpush1.msra.mxu0 %v2189
      %2719 = vmatprep.subr.mxu0 %v2206
      %2720 = vmatpush1.msra.mxu0 %v2205
      %2721 = vmatprep.subr.mxu0 %v2222
      %2722 = vmatpush1.msra.mxu0 %v2221
      %2723 = vmatprep.subr.mxu0 %v2238
      %2724 = vmatpush1.msra.mxu0 %v2237
      %2725 = vmatprep.subr.mxu0 %v2254
      %2726 = vmatpush1.msra.mxu0 %v2253
      %2727 = vmatprep.subr.mxu0 %v2270
      %2728 = vmatpush1.msra.mxu0 %v2269
      %2729 = vmatprep.subr.mxu0 %v2286
      %2730 = vmatpush1.msra.mxu0 %v2285
      %2731 = vmatprep.subr.mxu0 %v2302
      %2732 = vmatpush1.msra.mxu0 %v2301
      %2733 = vmatprep.subr.mxu0 %v2318
      %2734 = vmatpush1.msra.mxu0 %v2317
      %2735 = vmatprep.subr.mxu0 %v2334
      %2736 = vmatpush1.msra.mxu0 %v2333
      %2737 = vmatprep.subr.mxu0 %v2350
      %2738 = vmatpush1.msra.mxu0 %v2349
      %2739 = vmatprep.subr.mxu0 0.0
      %2740 = vmatpush1.msra.mxu0 0.0
      %2741 = vmatprep.subr.mxu0 0.0
      %2742 = vmatpush1.msra.mxu0 0.0
      %2743 = vmatprep.subr.mxu0 0.0
      %2744 = vmatpush1.msra.mxu0 0.0
      %2745 = vmatprep.subr.mxu0 0.0
      %2746 = vmatpush1.msra.mxu0 0.0
      %2747 = vmatprep.subr.mxu0 0.0
      %2748 = vmatpush1.msra.mxu0 0.0
      %2749 = vmatprep.mubr.f32.mxu0 %v2541
      %2750 = vmatmul.mubr.f32.gmra.mrb[0].mxu0 %v2537
      %v2751 = vpop.f32.mrb[0].mxu0
      %v2752 = vadd.f32 0.0, %v2751
      %v2753 = vpop.f32.mrb[0].mxu0
      %v2754 = vadd.f32 0.0, %v2753
      %2755 = vdwg.mxu0
      %2756 = vmatprep.subr.mxu0 %v387
      %2757 = vmatpush1.msra.mxu0 %v386
      %2758 = vmatprep.subr.mxu0 %v461
      %2759 = vmatpush1.msra.mxu0 %v460
      %2760 = vmatprep.subr.mxu0 %v528
      %2761 = vmatpush1.msra.mxu0 %v527
      %2762 = vmatprep.subr.mxu0 %v595
      %2763 = vmatpush1.msra.mxu0 %v594
      %2764 = vmatprep.subr.mxu0 %v662
      %2765 = vmatpush1.msra.mxu0 %v661
      %2766 = vmatprep.subr.mxu0 %v729
      %2767 = vmatpush1.msra.mxu0 %v728
      %2768 = vmatprep.subr.mxu0 %v796
      %2769 = vmatpush1.msra.mxu0 %v795
      %2770 = vmatprep.subr.mxu0 %v863
      %2771 = vmatpush1.msra.mxu0 %v862
      %2772 = vmatprep.subr.mxu0 %v930
      %2773 = vmatpush1.msra.mxu0 %v929
      %2774 = vmatprep.subr.mxu0 %v999
      %2775 = vmatpush1.msra.mxu0 %v998
      %2776 = vmatprep.subr.mxu0 %v1066
      %2777 = vmatpush1.msra.mxu0 %v1065
      %2778 = vmatprep.subr.mxu0 %v1133
      %2779 = vmatpush1.msra.mxu0 %v1132
      %2780 = vmatprep.subr.mxu0 %v1200
      %2781 = vmatpush1.msra.mxu0 %v1199
      %2782 = vmatprep.subr.mxu0 %v1267
      %2783 = vmatpush1.msra.mxu0 %v1266
      %2784 = vmatprep.subr.mxu0 %v1334
      %2785 = vmatpush1.msra.mxu0 %v1333
      %2786 = vmatprep.subr.mxu0 %v1401
      %2787 = vmatpush1.msra.mxu0 %v1400
      %2788 = vmatprep.subr.mxu0 %v2192
      %2789 = vmatpush1.msra.mxu0 %v2191
      %2790 = vmatprep.subr.mxu0 %v2208
      %2791 = vmatpush1.msra.mxu0 %v2207
      %2792 = vmatprep.subr.mxu0 %v2224
      %2793 = vmatpush1.msra.mxu0 %v2223
      %2794 = vmatprep.subr.mxu0 %v2240
      %2795 = vmatpush1.msra.mxu0 %v2239
      %2796 = vmatprep.subr.mxu0 %v2256
      %2797 = vmatpush1.msra.mxu0 %v2255
      %2798 = vmatprep.subr.mxu0 %v2272
      %2799 = vmatpush1.msra.mxu0 %v2271
      %2800 = vmatprep.subr.mxu0 %v2288
      %2801 = vmatpush1.msra.mxu0 %v2287
      %2802 = vmatprep.subr.mxu0 %v2304
      %2803 = vmatpush1.msra.mxu0 %v2303
      %2804 = vmatprep.subr.mxu0 %v2320
      %2805 = vmatpush1.msra.mxu0 %v2319
      %2806 = vmatprep.subr.mxu0 %v2336
      %2807 = vmatpush1.msra.mxu0 %v2335
      %2808 = vmatprep.subr.mxu0 %v2352
      %2809 = vmatpush1.msra.mxu0 %v2351
      %2810 = vmatprep.subr.mxu0 0.0
      %2811 = vmatpush1.msra.mxu0 0.0
      %2812 = vmatprep.subr.mxu0 0.0
      %2813 = vmatpush1.msra.mxu0 0.0
      %2814 = vmatprep.subr.mxu0 0.0
      %2815 = vmatpush1.msra.mxu0 0.0
      %2816 = vmatprep.subr.mxu0 0.0
      %2817 = vmatpush1.msra.mxu0 0.0
      %2818 = vmatprep.subr.mxu0 0.0
      %2819 = vmatpush1.msra.mxu0 0.0
      %2820 = vmatprep.mubr.f32.mxu0 %v2541
      %2821 = vmatmul.mubr.f32.gmra.mrb[0].mxu0 %v2537
      %v2822 = vpop.f32.mrb[0].mxu0
      %v2823 = vadd.f32 0.0, %v2822
      %v2824 = vpop.f32.mrb[0].mxu0
      %v2825 = vadd.f32 0.0, %v2824
      %2826 = vdwg.mxu0
      %2827 = vmatprep.subr.mxu0 %v389
      %2828 = vmatpush1.msra.mxu0 %v388
      %2829 = vmatprep.subr.mxu0 %v463
      %2830 = vmatpush1.msra.mxu0 %v462
      %2831 = vmatprep.subr.mxu0 %v530
      %2832 = vmatpush1.msra.mxu0 %v529
      %2833 = vmatprep.subr.mxu0 %v597
      %2834 = vmatpush1.msra.mxu0 %v596
      %2835 = vmatprep.subr.mxu0 %v664
      %2836 = vmatpush1.msra.mxu0 %v663
      %2837 = vmatprep.subr.mxu0 %v731
      %2838 = vmatpush1.msra.mxu0 %v730
      %2839 = vmatprep.subr.mxu0 %v798
      %2840 = vmatpush1.msra.mxu0 %v797
      %2841 = vmatprep.subr.mxu0 %v865
      %2842 = vmatpush1.msra.mxu0 %v864
      %2843 = vmatprep.subr.mxu0 %v932
      %2844 = vmatpush1.msra.mxu0 %v931
      %2845 = vmatprep.subr.mxu0 %v1001
      %2846 = vmatpush1.msra.mxu0 %v1000
      %2847 = vmatprep.subr.mxu0 %v1068
      %2848 = vmatpush1.msra.mxu0 %v1067
      %2849 = vmatprep.subr.mxu0 %v1135
      %2850 = vmatpush1.msra.mxu0 %v1134
      %2851 = vmatprep.subr.mxu0 %v1202
      %2852 = vmatpush1.msra.mxu0 %v1201
      %2853 = vmatprep.subr.mxu0 %v1269
      %2854 = vmatpush1.msra.mxu0 %v1268
      %2855 = vmatprep.subr.mxu0 %v1336
      %2856 = vmatpush1.msra.mxu0 %v1335
      %2857 = vmatprep.subr.mxu0 %v1403
      %2858 = vmatpush1.msra.mxu0 %v1402
      %2859 = vmatprep.subr.mxu0 %v2194
      %2860 = vmatpush1.msra.mxu0 %v2193
      %2861 = vmatprep.subr.mxu0 %v2210
      %2862 = vmatpush1.msra.mxu0 %v2209
      %2863 = vmatprep.subr.mxu0 %v2226
      %2864 = vmatpush1.msra.mxu0 %v2225
      %2865 = vmatprep.subr.mxu0 %v2242
      %2866 = vmatpush1.msra.mxu0 %v2241
      %2867 = vmatprep.subr.mxu0 %v2258
      %2868 = vmatpush1.msra.mxu0 %v2257
      %2869 = vmatprep.subr.mxu0 %v2274
      %2870 = vmatpush1.msra.mxu0 %v2273
      %2871 = vmatprep.subr.mxu0 %v2290
      %2872 = vmatpush1.msra.mxu0 %v2289
      %2873 = vmatprep.subr.mxu0 %v2306
      %2874 = vmatpush1.msra.mxu0 %v2305
      %2875 = vmatprep.subr.mxu0 %v2322
      %2876 = vmatpush1.msra.mxu0 %v2321
      %2877 = vmatprep.subr.mxu0 %v2338
      %2878 = vmatpush1.msra.mxu0 %v2337
      %2879 = vmatprep.subr.mxu0 %v2354
      %2880 = vmatpush1.msra.mxu0 %v2353
      %2881 = vmatprep.subr.mxu0 0.0
      %2882 = vmatpush1.msra.mxu0 0.0
      %2883 = vmatprep.subr.mxu0 0.0
      %2884 = vmatpush1.msra.mxu0 0.0
      %2885 = vmatprep.subr.mxu0 0.0
      %2886 = vmatpush1.msra.mxu0 0.0
      %2887 = vmatprep.subr.mxu0 0.0
      %2888 = vmatpush1.msra.mxu0 0.0
      %2889 = vmatprep.subr.mxu0 0.0
      %2890 = vmatpush1.msra.mxu0 0.0
      %2891 = vmatprep.mubr.f32.mxu0 %v2541
      %2892 = vmatmul.mubr.f32.gmra.mrb[0].mxu0 %v2537
      %v2893 = vpop.f32.mrb[0].mxu0
      %v2894 = vadd.f32 0.0, %v2893
      %v2895 = vpop.f32.mrb[0].mxu0
      %v2896 = vadd.f32 0.0, %v2895
      %2897 = vdwg.mxu0
      %2898 = vmatprep.subr.mxu0 %v391
      %2899 = vmatpush1.msra.mxu0 %v390
      %2900 = vmatprep.subr.mxu0 %v465
      %2901 = vmatpush1.msra.mxu0 %v464
      %2902 = vmatprep.subr.mxu0 %v532
      %2903 = vmatpush1.msra.mxu0 %v531
      %2904 = vmatprep.subr.mxu0 %v599
      %2905 = vmatpush1.msra.mxu0 %v598
      %2906 = vmatprep.subr.mxu0 %v666
      %2907 = vmatpush1.msra.mxu0 %v665
      %2908 = vmatprep.subr.mxu0 %v733
      %2909 = vmatpush1.msra.mxu0 %v732
      %2910 = vmatprep.subr.mxu0 %v800
      %2911 = vmatpush1.msra.mxu0 %v799
      %2912 = vmatprep.subr.mxu0 %v867
      %2913 = vmatpush1.msra.mxu0 %v866
      %2914 = vmatprep.subr.mxu0 %v934
      %2915 = vmatpush1.msra.mxu0 %v933
      %2916 = vmatprep.subr.mxu0 %v1003
      %2917 = vmatpush1.msra.mxu0 %v1002
      %2918 = vmatprep.subr.mxu0 %v1070
      %2919 = vmatpush1.msra.mxu0 %v1069
      %2920 = vmatprep.subr.mxu0 %v1137
      %2921 = vmatpush1.msra.mxu0 %v1136
      %2922 = vmatprep.subr.mxu0 %v1204
      %2923 = vmatpush1.msra.mxu0 %v1203
      %2924 = vmatprep.subr.mxu0 %v1271
      %2925 = vmatpush1.msra.mxu0 %v1270
      %2926 = vmatprep.subr.mxu0 %v1338
      %2927 = vmatpush1.msra.mxu0 %v1337
      %2928 = vmatprep.subr.mxu0 %v1405
      %2929 = vmatpush1.msra.mxu0 %v1404
      %2930 = vmatprep.subr.mxu0 %v2196
      %2931 = vmatpush1.msra.mxu0 %v2195
      %2932 = vmatprep.subr.mxu0 %v2212
      %2933 = vmatpush1.msra.mxu0 %v2211
      %2934 = vmatprep.subr.mxu0 %v2228
      %2935 = vmatpush1.msra.mxu0 %v2227
      %2936 = vmatprep.subr.mxu0 %v2244
      %2937 = vmatpush1.msra.mxu0 %v2243
      %2938 = vmatprep.subr.mxu0 %v2260
      %2939 = vmatpush1.msra.mxu0 %v2259
      %2940 = vmatprep.subr.mxu0 %v2276
      %2941 = vmatpush1.msra.mxu0 %v2275
      %2942 = vmatprep.subr.mxu0 %v2292
      %2943 = vmatpush1.msra.mxu0 %v2291
      %2944 = vmatprep.subr.mxu0 %v2308
      %2945 = vmatpush1.msra.mxu0 %v2307
      %2946 = vmatprep.subr.mxu0 %v2324
      %2947 = vmatpush1.msra.mxu0 %v2323
      %2948 = vmatprep.subr.mxu0 %v2340
      %2949 = vmatpush1.msra.mxu0 %v2339
      %2950 = vmatprep.subr.mxu0 %v2356
      %2951 = vmatpush1.msra.mxu0 %v2355
      %2952 = vmatprep.subr.mxu0 0.0
      %2953 = vmatpush1.msra.mxu0 0.0
      %2954 = vmatprep.subr.mxu0 0.0
      %2955 = vmatpush1.msra.mxu0 0.0
      %2956 = vmatprep.subr.mxu0 0.0
      %2957 = vmatpush1.msra.mxu0 0.0
      %2958 = vmatprep.subr.mxu0 0.0
      %2959 = vmatpush1.msra.mxu0 0.0
      %2960 = vmatprep.subr.mxu0 0.0
      %2961 = vmatpush1.msra.mxu0 0.0
      %2962 = vmatprep.mubr.f32.mxu0 %v2541
      %2963 = vmatmul.mubr.f32.gmra.mrb[0].mxu0 %v2537
      %v2964 = vpop.f32.mrb[0].mxu0
      %v2965 = vadd.f32 0.0, %v2964
      %v2966 = vpop.f32.mrb[0].mxu0
      %v2967 = vadd.f32 0.0, %v2966
      %2968 = vdwg.mxu0
      %2969 = vmatprep.subr.mxu0 %v393
      %2970 = vmatpush1.msra.mxu0 %v392
      %2971 = vmatprep.subr.mxu0 %v467
      %2972 = vmatpush1.msra.mxu0 %v466
      %2973 = vmatprep.subr.mxu0 %v534
      %2974 = vmatpush1.msra.mxu0 %v533
      %2975 = vmatprep.subr.mxu0 %v601
      %2976 = vmatpush1.msra.mxu0 %v600
      %2977 = vmatprep.subr.mxu0 %v668
      %2978 = vmatpush1.msra.mxu0 %v667
      %2979 = vmatprep.subr.mxu0 %v735
      %2980 = vmatpush1.msra.mxu0 %v734
      %2981 = vmatprep.subr.mxu0 %v802
      %2982 = vmatpush1.msra.mxu0 %v801
      %2983 = vmatprep.subr.mxu0 %v869
      %2984 = vmatpush1.msra.mxu0 %v868
      %2985 = vmatprep.subr.mxu0 %v936
      %2986 = vmatpush1.msra.mxu0 %v935
      %2987 = vmatprep.subr.mxu0 %v1005
      %2988 = vmatpush1.msra.mxu0 %v1004
      %2989 = vmatprep.subr.mxu0 %v1072
      %2990 = vmatpush1.msra.mxu0 %v1071
      %2991 = vmatprep.subr.mxu0 %v1139
      %2992 = vmatpush1.msra.mxu0 %v1138
      %2993 = vmatprep.subr.mxu0 %v1206
      %2994 = vmatpush1.msra.mxu0 %v1205
      %2995 = vmatprep.subr.mxu0 %v1273
      %2996 = vmatpush1.msra.mxu0 %v1272
      %2997 = vmatprep.subr.mxu0 %v1340
      %2998 = vmatpush1.msra.mxu0 %v1339
      %2999 = vmatprep.subr.mxu0 %v1407
      %3000 = vmatpush1.msra.mxu0 %v1406
      %3001 = vmatprep.subr.mxu0 %v2198
      %3002 = vmatpush1.msra.mxu0 %v2197
      %3003 = vmatprep.subr.mxu0 %v2214
      %3004 = vmatpush1.msra.mxu0 %v2213
      %3005 = vmatprep.subr.mxu0 %v2230
      %3006 = vmatpush1.msra.mxu0 %v2229
      %3007 = vmatprep.subr.mxu0 %v2246
      %3008 = vmatpush1.msra.mxu0 %v2245
      %3009 = vmatprep.subr.mxu0 %v2262
      %3010 = vmatpush1.msra.mxu0 %v2261
      %3011 = vmatprep.subr.mxu0 %v2278
      %3012 = vmatpush1.msra.mxu0 %v2277
      %3013 = vmatprep.subr.mxu0 %v2294
      %3014 = vmatpush1.msra.mxu0 %v2293
      %3015 = vmatprep.subr.mxu0 %v2310
      %3016 = vmatpush1.msra.mxu0 %v2309
      %3017 = vmatprep.subr.mxu0 %v2326
      %3018 = vmatpush1.msra.mxu0 %v2325
      %3019 = vmatprep.subr.mxu0 %v2342
      %3020 = vmatpush1.msra.mxu0 %v2341
      %3021 = vmatprep.subr.mxu0 %v2358
      %3022 = vmatpush1.msra.mxu0 %v2357
      %3023 = vmatprep.subr.mxu0 0.0
      %3024 = vmatpush1.msra.mxu0 0.0
      %3025 = vmatprep.subr.mxu0 0.0
      %3026 = vmatpush1.msra.mxu0 0.0
      %3027 = vmatprep.subr.mxu0 0.0
      %3028 = vmatpush1.msra.mxu0 0.0
      %3029 = vmatprep.subr.mxu0 0.0
      %3030 = vmatpush1.msra.mxu0 0.0
      %3031 = vmatprep.subr.mxu0 0.0
      %3032 = vmatpush1.msra.mxu0 0.0
      %3033 = vmatprep.mubr.f32.mxu0 %v2541
      %3034 = vmatmul.mubr.f32.gmra.mrb[0].mxu0 %v2537
      %v3035 = vpop.f32.mrb[0].mxu0
      %v3036 = vadd.f32 0.0, %v3035
      %v3037 = vpop.f32.mrb[0].mxu0
      %v3038 = vadd.f32 0.0, %v3037
      %3039 = vdwg.mxu0
      %3040 = vmatprep.subr.mxu0 %v395
      %3041 = vmatpush1.msra.mxu0 %v394
      %3042 = vmatprep.subr.mxu0 %v469
      %3043 = vmatpush1.msra.mxu0 %v468
      %3044 = vmatprep.subr.mxu0 %v536
      %3045 = vmatpush1.msra.mxu0 %v535
      %3046 = vmatprep.subr.mxu0 %v603
      %3047 = vmatpush1.msra.mxu0 %v602
      %3048 = vmatprep.subr.mxu0 %v670
      %3049 = vmatpush1.msra.mxu0 %v669
      %3050 = vmatprep.subr.mxu0 %v737
      %3051 = vmatpush1.msra.mxu0 %v736
      %3052 = vmatprep.subr.mxu0 %v804
      %3053 = vmatpush1.msra.mxu0 %v803
      %3054 = vmatprep.subr.mxu0 %v871
      %3055 = vmatpush1.msra.mxu0 %v870
      %3056 = vmatprep.subr.mxu0 %v938
      %3057 = vmatpush1.msra.mxu0 %v937
      %3058 = vmatprep.subr.mxu0 %v1007
      %3059 = vmatpush1.msra.mxu0 %v1006
      %3060 = vmatprep.subr.mxu0 %v1074
      %3061 = vmatpush1.msra.mxu0 %v1073
      %3062 = vmatprep.subr.mxu0 %v1141
      %3063 = vmatpush1.msra.mxu0 %v1140
      %3064 = vmatprep.subr.mxu0 %v1208
      %3065 = vmatpush1.msra.mxu0 %v1207
      %3066 = vmatprep.subr.mxu0 %v1275
      %3067 = vmatpush1.msra.mxu0 %v1274
      %3068 = vmatprep.subr.mxu0 %v1342
      %3069 = vmatpush1.msra.mxu0 %v1341
      %3070 = vmatprep.subr.mxu0 %v1409
      %3071 = vmatpush1.msra.mxu0 %v1408
      %3072 = vmatprep.subr.mxu0 %v2200
      %3073 = vmatpush1.msra.mxu0 %v2199
      %3074 = vmatprep.subr.mxu0 %v2216
      %3075 = vmatpush1.msra.mxu0 %v2215
      %3076 = vmatprep.subr.mxu0 %v2232
      %3077 = vmatpush1.msra.mxu0 %v2231
      %3078 = vmatprep.subr.mxu0 %v2248
      %3079 = vmatpush1.msra.mxu0 %v2247
      %3080 = vmatprep.subr.mxu0 %v2264
      %3081 = vmatpush1.msra.mxu0 %v2263
      %3082 = vmatprep.subr.mxu0 %v2280
      %3083 = vmatpush1.msra.mxu0 %v2279
      %3084 = vmatprep.subr.mxu0 %v2296
      %3085 = vmatpush1.msra.mxu0 %v2295
      %3086 = vmatprep.subr.mxu0 %v2312
      %3087 = vmatpush1.msra.mxu0 %v2311
      %3088 = vmatprep.subr.mxu0 %v2328
      %3089 = vmatpush1.msra.mxu0 %v2327
      %3090 = vmatprep.subr.mxu0 %v2344
      %3091 = vmatpush1.msra.mxu0 %v2343
      %3092 = vmatprep.subr.mxu0 %v2360
      %3093 = vmatpush1.msra.mxu0 %v2359
      %3094 = vmatprep.subr.mxu0 0.0
      %3095 = vmatpush1.msra.mxu0 0.0
      %3096 = vmatprep.subr.mxu0 0.0
      %3097 = vmatpush1.msra.mxu0 0.0
      %3098 = vmatprep.subr.mxu0 0.0
      %3099 = vmatpush1.msra.mxu0 0.0
      %3100 = vmatprep.subr.mxu0 0.0
      %3101 = vmatpush1.msra.mxu0 0.0
      %3102 = vmatprep.subr.mxu0 0.0
      %3103 = vmatpush1.msra.mxu0 0.0
      %3104 = vmatprep.mubr.f32.mxu0 %v2541
      %3105 = vmatmul.mubr.f32.gmra.mrb[0].mxu0 %v2537
      %v3106 = vpop.f32.mrb[0].mxu0
      %v3107 = vadd.f32 0.0, %v3106
      %v3108 = vpop.f32.mrb[0].mxu0
      %v3109 = vadd.f32 0.0, %v3108
      %3110 = vdwg.mxu0
      %3111 = vst [vmem:[%s364] sm:$0xff] %v2610
      %3112 = vst [vmem:[%s364 + $0x8] sm:$0xff] %v2612
      %3113 = vst [vmem:[%s364 + $0x10] sm:$0xff] %v2681
      %3114 = vst [vmem:[%s364 + $0x18] sm:$0xff] %v2683
      %3115 = vst [vmem:[%s364 + $0x20] sm:$0xff] %v2752
      %3116 = vst [vmem:[%s364 + $0x28] sm:$0xff] %v2754
      %3117 = vst [vmem:[%s364 + $0x30] sm:$0xff] %v2823
      %3118 = vst [vmem:[%s364 + $0x38] sm:$0xff] %v2825
      %3119 = vst [vmem:[%s364 + $0x40] sm:$0xff] %v2894
      %3120 = vst [vmem:[%s364 + $0x48] sm:$0xff] %v2896
      %3121 = vst [vmem:[%s364 + $0x50] sm:$0xff] %v2965
      %3122 = vst [vmem:[%s364 + $0x58] sm:$0xff] %v2967
      %3123 = vst [vmem:[%s364 + $0x60] sm:$0xff] %v3036
      %3124 = vst [vmem:[%s364 + $0x68] sm:$0xff] %v3038
      %3125 = vst [vmem:[%s364 + $0x70] sm:$0xff] %v3107
      %3126 = vst [vmem:[%s364 + $0x78] sm:$0xff] %v3109
      %v3127 = vld [vmem:[%s354] sm:$0xff]
      %v3128 = vld [vmem:[%s354 + $0x8] sm:$0xff]
      %v3131 = vlaneseq
      %v3132 = vshrl.u32 %v3131, 7
      %v3133 = vsub.s32 0, %v3132
      %v3134 = vrot.slane %v3127, %v3133
      %v3135 = vlaneseq
      %v3136 = vshrl.u32 %v3135, 7
      %v3137 = vsub.s32 1, %v3136
      %v3138 = vrot.slane %v3127, %v3137
      %v3139 = vlaneseq
      %v3140 = vshrl.u32 %v3139, 7
      %v3141 = vsub.s32 2, %v3140
      %v3142 = vrot.slane %v3127, %v3141
      %v3143 = vlaneseq
      %v3144 = vshrl.u32 %v3143, 7
      %v3145 = vsub.s32 3, %v3144
      %v3146 = vrot.slane %v3127, %v3145
      %v3147 = vlaneseq
      %v3148 = vshrl.u32 %v3147, 7
      %v3149 = vsub.s32 4, %v3148
      %v3150 = vrot.slane %v3127, %v3149
      %v3151 = vlaneseq
      %v3152 = vshrl.u32 %v3151, 7
      %v3153 = vsub.s32 5, %v3152
      %v3154 = vrot.slane %v3127, %v3153
      %v3155 = vlaneseq
      %v3156 = vshrl.u32 %v3155, 7
      %v3157 = vsub.s32 6, %v3156
      %v3158 = vrot.slane %v3127, %v3157
      %v3159 = vlaneseq
      %v3160 = vshrl.u32 %v3159, 7
      %v3161 = vsub.s32 7, %v3160
      %v3162 = vrot.slane %v3127, %v3161
      %v3163 = vlaneseq
      %v3164 = vshrl.u32 %v3163, 7
      %v3165 = vsub.s32 0, %v3164
      %v3166 = vrot.slane %v3128, %v3165
      %v3167 = vlaneseq
      %v3168 = vshrl.u32 %v3167, 7
      %v3169 = vsub.s32 1, %v3168
      %v3170 = vrot.slane %v3128, %v3169
      %v3171 = vlaneseq
      %v3172 = vshrl.u32 %v3171, 7
      %v3173 = vsub.s32 2, %v3172
      %v3174 = vrot.slane %v3128, %v3173
      %v3175 = vlaneseq
      %v3176 = vshrl.u32 %v3175, 7
      %v3177 = vsub.s32 3, %v3176
      %v3178 = vrot.slane %v3128, %v3177
      %v3179 = vlaneseq
      %v3180 = vshrl.u32 %v3179, 7
      %v3181 = vsub.s32 4, %v3180
      %v3182 = vrot.slane %v3128, %v3181
      %v3183 = vlaneseq
      %v3184 = vshrl.u32 %v3183, 7
      %v3185 = vsub.s32 5, %v3184
      %v3186 = vrot.slane %v3128, %v3185
      %v3187 = vlaneseq
      %v3188 = vshrl.u32 %v3187, 7
      %v3189 = vsub.s32 6, %v3188
      %v3190 = vrot.slane %v3128, %v3189
      %v3191 = vlaneseq
      %v3192 = vshrl.u32 %v3191, 7
      %v3193 = vsub.s32 7, %v3192
      %v3194 = vrot.slane %v3128, %v3193
      %v3211 = vmul.f32 %v2610, %v3134
      %v3212 = vmul.f32 %v2612, %v3138
      %v3213 = vmul.f32 %v2681, %v3142
      %v3214 = vmul.f32 %v2683, %v3146
      %v3215 = vmul.f32 %v2752, %v3150
      %v3216 = vmul.f32 %v2754, %v3154
      %v3217 = vmul.f32 %v2823, %v3158
      %v3218 = vmul.f32 %v2825, %v3162
      %v3219 = vmul.f32 %v2894, %v3166
      %v3220 = vmul.f32 %v2896, %v3170
      %v3221 = vmul.f32 %v2965, %v3174
      %v3222 = vmul.f32 %v2967, %v3178
      %v3223 = vmul.f32 %v3036, %v3182
      %v3224 = vmul.f32 %v3038, %v3186
      %v3225 = vmul.f32 %v3107, %v3190
      %v3226 = vmul.f32 %v3109, %v3194
      %v3227 = vld [vmem:[%s369] sm:$0xff]
      %v3228 = vadd.f32 %v3211, %v3212
      %v3229 = vadd.f32 %v3228, %v3213
      %v3230 = vadd.f32 %v3229, %v3214
      %v3231 = vadd.f32 %v3230, %v3215
      %v3232 = vadd.f32 %v3231, %v3216
      %v3233 = vadd.f32 %v3232, %v3217
      %v3234 = vadd.f32 %v3233, %v3218
      %v3235 = vadd.f32 %v3234, %v3219
      %v3236 = vadd.f32 %v3235, %v3220
      %v3237 = vadd.f32 %v3236, %v3221
      %v3238 = vadd.f32 %v3237, %v3222
      %v3239 = vadd.f32 %v3238, %v3223
      %v3240 = vadd.f32 %v3239, %v3224
      %v3241 = vadd.f32 %v3240, %v3225
      %v3242 = vadd.f32 %v3241, %v3226
      %3243 = vadd.xlane.f32.xlu0 %v3242
      %v3244 = vpop.xlane.xlu0 %3243
      %v3245 = vadd.f32 %v3227, %v3244
      %3246 = vst [vmem:[%s369] sm:$0xff] %v3245
      %v3247 = vld [vmem:[%s373] sm:$0xff]
      %v3248 = vmul.f32 %v3211, %v3211
      %v3249 = vmul.f32 %v3212, %v3212
      %v3250 = vmul.f32 %v3213, %v3213
      %v3251 = vmul.f32 %v3214, %v3214
      %v3252 = vmul.f32 %v3215, %v3215
      %v3253 = vmul.f32 %v3216, %v3216
      %v3254 = vmul.f32 %v3217, %v3217
      %v3255 = vmul.f32 %v3218, %v3218
      %v3256 = vmul.f32 %v3219, %v3219
      %v3257 = vmul.f32 %v3220, %v3220
      %v3258 = vmul.f32 %v3221, %v3221
      %v3259 = vmul.f32 %v3222, %v3222
      %v3260 = vmul.f32 %v3223, %v3223
      %v3261 = vmul.f32 %v3224, %v3224
      %v3262 = vmul.f32 %v3225, %v3225
      %v3263 = vmul.f32 %v3226, %v3226
      %v3264 = vadd.f32 %v3248, %v3249
      %v3265 = vadd.f32 %v3264, %v3250
      %v3266 = vadd.f32 %v3265, %v3251
      %v3267 = vadd.f32 %v3266, %v3252
      %v3268 = vadd.f32 %v3267, %v3253
      %v3269 = vadd.f32 %v3268, %v3254
      %v3270 = vadd.f32 %v3269, %v3255
      %v3271 = vadd.f32 %v3270, %v3256
      %v3272 = vadd.f32 %v3271, %v3257
      %v3273 = vadd.f32 %v3272, %v3258
      %v3274 = vadd.f32 %v3273, %v3259
      %v3275 = vadd.f32 %v3274, %v3260
      %v3276 = vadd.f32 %v3275, %v3261
      %v3277 = vadd.f32 %v3276, %v3262
      %v3278 = vadd.f32 %v3277, %v3263
      %3279 = vadd.xlane.f32.xlu0 %v3278
      %v3280 = vpop.xlane.xlu0 %3279
      %v3281 = vadd.f32 %v3247, %v3280
      %3282 = vst [vmem:[%s373] sm:$0xff] %v3281
      %s3283 = smul.u32 16, %s23
      %p3284 = scmp.lt.s32.totalorder %s22, 1
      %s3285 = scalar_select %p3284, %s22, 1
      %p3286 = scmp.lt.s32.totalorder %s3283, 47
      %s3287 = scalar_select %p3286, %s3283, 47
      %s3288 = smul.addr %s3285, 48
      %s3289 = sadd.s32 %s3287, %s3288
      %s3290 = smul.addr %s3289, 8
      %s3291 = scalar_lea.vmem %s4, %s3290
      %p3292 = scmp.lt.s32.totalorder %s22, 1
      %s3293 = scalar_select %p3292, %s22, 1
      %s3294 = smul.addr %s3293, 8
      %s3295 = scalar_lea.vmem %s5, %s3294
      %p3296 = scmp.lt.s32.totalorder %s22, 1
      %s3297 = scalar_select %p3296, %s22, 1
      %s3298 = smul.addr %s3297, 8
      %s3299 = scalar_lea.vmem %s6, %s3298
      // Predicated region
      $region41: #{conv_block_3d.2} parent=35 // pred_check
        %p3300 = pneg %p155
      $region42: #{conv_block_3d.2} parent=35 // pred_check_branch
        %3302 = sbr.rel (%p3300) target = $region44
      $region43: #{conv_block_3d.2} parent=35 // pred_region
        %s3303 = smul.u32 16, %s23
      $region44: #{conv_block_3d.2} parent=35 // pred_fallthru
        _
      // Predicated region
      $region45: #{conv_block_3d.2} parent=35 // pred_check
        %p3304 = pneg %p181
      $region46: #{conv_block_3d.2} parent=35 // pred_check_branch
        %3306 = sbr.rel (%p3304) target = $region48
      $region47: #{conv_block_3d.2} parent=35 // pred_region
        _
      $region48: #{conv_block_3d.2} parent=35 // pred_fallthru
        _
      // Predicated region
      $region49: #{conv_block_3d.2} parent=35 // pred_check
        %p3307 = pneg %p207
      $region50: #{conv_block_3d.2} parent=35 // pred_check_branch
        %3309 = sbr.rel (%p3307) target = $region52
      $region51: #{conv_block_3d.2} parent=35 // pred_region
        _
      $region52: #{conv_block_3d.2} parent=35 // pred_fallthru
        _
    $region36: #{conv_block_3d.2} parent=5 // pred_fallthru
      _
    %p3310 = scmp.le.s32.totalorder 2, %s13
    // Predicated region
    $region53: #{conv_block_3d.2} parent=5 // pred_check
      %p3311 = pneg %p3310
    $region54: #{conv_block_3d.2} parent=5 // pred_check_branch
      %3313 = sbr.rel (%p3311) target = $region56
    $region55: #{conv_block_3d.2} parent=5 // pred_region
      %s3314 = ssub.s32 %s13, 2
      // Predicated region
      $region57: #{conv_block_3d.2} parent=55 // pred_check
        %p3315 = pneg %p161
      $region58: #{conv_block_3d.2} parent=55 // pred_check_branch
        %3317 = sbr.rel (%p3315) target = $region60
      $region59: #{conv_block_3d.2} parent=55 // pred_region
        %s3318 = smul.u32 16, %s25
        %p3319 = scmp.lt.s32.totalorder %s24, 1
        %s3320 = scalar_select %p3319, %s24, 1
        %p3321 = scmp.lt.s32.totalorder %s3318, 47
        %s3322 = scalar_select %p3321, %s3318, 47
        %s3323 = smul.addr %s3320, 48
        %s3324 = sadd.s32 %s3322, %s3323
        %s3325 = smul.addr %s3324, 8
        %s3326 = scalar_lea.vmem %s4, %s3325
      $region60: #{conv_block_3d.2} parent=55 // pred_fallthru
        _
      // Predicated region
      $region61: #{conv_block_3d.2} parent=55 // pred_check
        %p3327 = pneg %p187
      $region62: #{conv_block_3d.2} parent=55 // pred_check_branch
        %3329 = sbr.rel (%p3327) target = $region64
      $region63: #{conv_block_3d.2} parent=55 // pred_region
        %p3330 = scmp.lt.s32.totalorder %s24, 1
        %s3331 = scalar_select %p3330, %s24, 1
        %s3332 = smul.addr %s3331, 8
        %s3333 = scalar_lea.vmem %s5, %s3332
      $region64: #{conv_block_3d.2} parent=55 // pred_fallthru
        _
      // Predicated region
      $region65: #{conv_block_3d.2} parent=55 // pred_check
        %p3334 = pneg %p213
      $region66: #{conv_block_3d.2} parent=55 // pred_check_branch
        %3336 = sbr.rel (%p3334) target = $region68
      $region67: #{conv_block_3d.2} parent=55 // pred_region
        %p3337 = scmp.lt.s32.totalorder %s24, 1
        %s3338 = scalar_select %p3337, %s24, 1
        %s3339 = smul.addr %s3338, 8
        %s3340 = scalar_lea.vmem %s6, %s3339
      $region68: #{conv_block_3d.2} parent=55 // pred_fallthru
        _
    $region56: #{conv_block_3d.2} parent=5 // pred_fallthru
      _
  $region6: #{conv_block_3d.2} parent=0 // loop_footer
    %s17 = sadd.s32 1, %s13
  $region7: #{conv_block_3d.2} parent=0 // loop_footer_branch
    %12 = sbr.rel target = $region3
  $region8: #{conv_block_3d.2} parent=0 // loop_exit
    _

</llo_original>
